<compile_context>
chip_gen: v7x
topology: tpu7x:2x2x1
jax: 0.10.0
libtpu: 0.0.40
codegen_flags: <defaults>
</compile_context>

<pallas_src>
import functools

import jax
import jax.numpy as jnp
from jax.experimental import pallas as pl
from jax.experimental.pallas import tpu as pltpu


def _discriminator_kernel(x_ref, w1_ref, b1_ref, w2_ref, b2_ref, w3_ref, b3_ref, o_ref):
    # x_ref : (784, tile_b) bf16   -- batch tile, transposed (batch on lanes)
    # w1_ref: (512, 784)  bf16     w2_ref: (256, 512) bf16
    # b1_ref: (512, 1)    f32      b2_ref: (256, 1)   f32
    # w3_ref: (256, 1)    f32      b3_ref: (1,)       f32 (SMEM scalar)
    # o_ref : (1, 1, tile_b) f32   -- lane-dense probabilities

    # Layer 1: Linear(784 -> 512) + LeakyReLU(0.2)   [MXU, bf16 in / f32 accum]
    h1 = jnp.dot(w1_ref[...], x_ref[...], preferred_element_type=jnp.float32)
    h1 = h1 + b1_ref[...]                    # (512, 1) broadcast over batch lanes
    h1 = jnp.maximum(h1, 0.2 * h1)           # LeakyReLU(0.2), single VALU op

    # Layer 2: Linear(512 -> 256) + LeakyReLU(0.2)
    h2 = jnp.dot(w2_ref[...], h1.astype(jnp.bfloat16),
                 preferred_element_type=jnp.float32)
    h2 = h2 + b2_ref[...]
    h2 = jnp.maximum(h2, 0.2 * h2)           # (256, tile_b) f32

    # Layer 3: Linear(256 -> 1) + Sigmoid, as VPU multiply + cross-sublane reduce
    # (keeps the 1-wide result off the MXU; output stays lane-dense).
    logit = jnp.sum(h2 * w3_ref[...], axis=0, keepdims=True) + b3_ref[0]  # (1, tile_b)
    o_ref[...] = jax.nn.sigmoid(logit).reshape(o_ref.shape).astype(o_ref.dtype)


def prepare_params(params):
    """One-time weight relayout/cast to the kernel's resident-in-VMEM layout."""
    return {
        "w1t": params["w1"].T.astype(jnp.bfloat16),          # (512, 784)
        "b1c": params["b1"].reshape(1, -1).T.astype(jnp.float32),  # (512, 1)
        "w2t": params["w2"].T.astype(jnp.bfloat16),          # (256, 512)
        "b2c": params["b2"].reshape(1, -1).T.astype(jnp.float32),  # (256, 1)
        "w3c": params["w3"].astype(jnp.float32),              # (256, 1)
        "b3s": params["b3"].reshape(1).astype(jnp.float32),    # (1,) SMEM scalar
    }


def _pick_tile(batch, tile_b):
    """Pick the per-step batch tile: as large as requested, but shrink (>=128,
    multiple of 128) so the grid has >= 2 tiles and both v7x TensorCores work."""
    tile = max(128, (tile_b // 128) * 128)
    while tile > 128 and pl.cdiv(batch, tile) < 2:
        tile = max(128, ((tile // 2) // 128) * 128)
    return tile


def discriminator_forward_t(x_t, p, *, tile_b=1024):
    """Core entry point. x_t: (784, B) bfloat16 (batch on lanes, already in the
    kernel's layout). p: output of prepare_params. Returns (B, 1) float32."""
    d_in, batch = x_t.shape
    assert d_in == 784

    tile = _pick_tile(batch, tile_b)
    num_tiles = pl.cdiv(batch, tile)
    b_pad = num_tiles * tile
    if b_pad != batch:
        x_t = jnp.pad(x_t, ((0, 0), (0, b_pad - batch)))

    out = pl.pallas_call(
        _discriminator_kernel,
        out_shape=jax.ShapeDtypeStruct((num_tiles, 1, tile), jnp.float32),
        grid_spec=pltpu.PrefetchScalarGridSpec(
            num_scalar_prefetch=0,
            grid=(num_tiles,),
            in_specs=[
                pl.BlockSpec((784, tile), lambda i: (0, i)),     # x^T batch tile
                pl.BlockSpec((512, 784), lambda i: (0, 0)),      # W1^T (resident)
                pl.BlockSpec((512, 1), lambda i: (0, 0)),        # b1 column
                pl.BlockSpec((256, 512), lambda i: (0, 0)),      # W2^T (resident)
                pl.BlockSpec((256, 1), lambda i: (0, 0)),        # b2 column
                pl.BlockSpec((256, 1), lambda i: (0, 0)),        # w3 column
                pl.BlockSpec(memory_space=pltpu.MemorySpace.SMEM),  # b3 scalar
            ],
            out_specs=pl.BlockSpec((1, 1, tile), lambda i: (i, 0, 0)),
        ),
        compiler_params=pltpu.CompilerParams(
            dimension_semantics=("parallel",),  # batch tiles shard across TCs (v7x)
            # Only needed when sweeping tile_b to 2048 (v5e's 16 MiB scoped default).
            vmem_limit_bytes=(32 * 1024 * 1024) if tile >= 2048 else None,
        ),
    )(x_t, p["w1t"], p["b1c"], p["w2t"], p["b2c"], p["w3c"], p["b3s"])

    return out.reshape(b_pad)[:batch].reshape(batch, 1)


@functools.partial(jax.jit, static_argnames=("tile_b",))
def discriminator_forward(x, prepped_params, tile_b=1024):
    """Convenience entry point: x (B, 784) float32 -> (B, 1) float32 probabilities.
    The transpose/bf16 cast fuses into the same XLA program as the kernel."""
    x_t = x.T.astype(jnp.bfloat16)     # (784, B), batch on lanes
    return discriminator_forward_t(x_t, prepped_params, tile_b=tile_b)


def init_params(key):
    """Deterministic init mimicking PyTorch nn.Linear default (U[-1/sqrt(fan_in), +])."""
    def linear(k, fan_in, fan_out):
        kw, kb = jax.random.split(k)
        bound = 1.0 / jnp.sqrt(fan_in)
        w = jax.random.uniform(kw, (fan_in, fan_out), jnp.float32, -bound, bound)
        b = jax.random.uniform(kb, (1, fan_out), jnp.float32, -bound, bound)
        return w, b

    k1, k2, k3 = jax.random.split(key, 3)
    w1, b1 = linear(k1, 784, 512)
    w2, b2 = linear(k2, 512, 256)
    w3, b3 = linear(k3, 256, 1)
    return {"w1": w1, "b1": b1, "w2": w2, "b2": b2, "w3": w3, "b3": b3}


def reference_forward(x, p):
    """Pure-JAX reference matching the module semantics (same bf16-in/f32-acc matmuls).
    NOTE: bf16 inputs with f32 accumulation is a deliberate precision tradeoff vs the
    pure-f32 PyTorch module (~1e-2-level deviation possible); documented, not a bug."""
    h = jnp.dot(x.astype(jnp.bfloat16), p["w1"].astype(jnp.bfloat16),
                preferred_element_type=jnp.float32) + p["b1"]
    h = jnp.where(h >= 0, h, 0.2 * h)
    h = jnp.dot(h.astype(jnp.bfloat16), p["w2"].astype(jnp.bfloat16),
                preferred_element_type=jnp.float32) + p["b2"]
    h = jnp.where(h >= 0, h, 0.2 * h)
    h = jnp.dot(h, p["w3"], preferred_element_type=jnp.float32) + p["b3"]
    return jax.nn.sigmoid(h)


if __name__ == "__main__":
    key = jax.random.PRNGKey(0)
    k_params, k_x = jax.random.split(key)
    params = init_params(k_params)
    prepped = prepare_params(params)   # one-time weight relayout (feedback item: no per-call prep)

    # Multi-tile batch (512 -> two 256-row tiles so both v7x TCs get work) and a
    # ragged batch (100 -> one 128-row tile, internally padded).
    for B in (512, 100):
        kx = jax.random.fold_in(k_x, B)
        x = jax.random.normal(kx, (B, 784), jnp.float32)

        out = jax.block_until_ready(discriminator_forward(x, prepped, tile_b=1024))
        ref = reference_forward(x, params)

        assert out.shape == (B, 1)
        err = float(jnp.max(jnp.abs(out - ref)))
        assert jnp.allclose(out, ref, atol=2e-3, rtol=2e-3), \
            f"mismatch vs reference (B={B}): max abs err {err}"

    print("KERNEL_OK")
</pallas_src>

<mosaic_0001>
module attributes {stable_mosaic.version = 11 : i64} {
  func.func @_discriminator_kernel(%arg0: i32, %arg1: memref<784x256xbf16, #tpu.memory_space<vmem>>, %arg2: memref<512x784xbf16, #tpu.memory_space<vmem>>, %arg3: memref<512x1xf32, #tpu.memory_space<vmem>>, %arg4: memref<256x512xbf16, #tpu.memory_space<vmem>>, %arg5: memref<256x1xf32, #tpu.memory_space<vmem>>, %arg6: memref<256x1xf32, #tpu.memory_space<vmem>>, %arg7: memref<1xf32, #tpu.memory_space<smem>>, %arg8: memref<1x1x256xf32, #tpu.memory_space<vmem>>) attributes {dimension_semantics = [#tpu.dimension_semantics<parallel>], iteration_bounds = array<i64: 2>, scalar_prefetch = 0 : i64, scratch_operands = 0 : i64, tpu.core_type = #tpu.core_type<tc>, window_params = [{transform_indices = @transform_0, window_bounds = array<i64: 784, 256>}, {pipeline_mode = #tpu.pipeline_mode<synchronous>, transform_indices = @transform_1, window_bounds = array<i64: 512, 784>}, {pipeline_mode = #tpu.pipeline_mode<synchronous>, transform_indices = @transform_2, window_bounds = array<i64: 512, 1>}, {pipeline_mode = #tpu.pipeline_mode<synchronous>, transform_indices = @transform_3, window_bounds = array<i64: 256, 512>}, {pipeline_mode = #tpu.pipeline_mode<synchronous>, transform_indices = @transform_4, window_bounds = array<i64: 256, 1>}, {pipeline_mode = #tpu.pipeline_mode<synchronous>, transform_indices = @transform_5, window_bounds = array<i64: 256, 1>}, {transform_indices = @transform_6, window_bounds = array<i64: 1>}, {transform_indices = @transform_7, window_bounds = array<i64: 1, 1, 256>}]} {
    %c0 = arith.constant 0 : index
    %c0_0 = arith.constant 0 : index
    %0 = vector.load %arg2[%c0, %c0_0] : memref<512x784xbf16, #tpu.memory_space<vmem>>, vector<512x784xbf16>
    %c0_1 = arith.constant 0 : index
    %c0_2 = arith.constant 0 : index
    %1 = vector.load %arg1[%c0_1, %c0_2] : memref<784x256xbf16, #tpu.memory_space<vmem>>, vector<784x256xbf16>
    %cst = arith.constant dense<0.000000e+00> : vector<512x256xf32>
    %2 = tpu.matmul %0, %1, %cst {dimension_numbers = #tpu.dot_dimension_numbers<[1], [0], [0], [1], [0, 0, 1, 1], [], []>} : vector<512x784xbf16>, vector<784x256xbf16>, vector<512x256xf32> -> vector<512x256xf32>
    %c0_3 = arith.constant 0 : index
    %c0_4 = arith.constant 0 : index
    %3 = vector.load %arg3[%c0_3, %c0_4] : memref<512x1xf32, #tpu.memory_space<vmem>>, vector<512x1xf32>
    %4 = vector.broadcast %3 : vector<512x1xf32> to vector<512x256xf32>
    %5 = arith.addf %2, %4 : vector<512x256xf32>
    %cst_5 = arith.constant 2.000000e-01 : f32
    %6 = vector.broadcast %cst_5 : f32 to vector<512x256xf32>
    %7 = arith.mulf %6, %5 : vector<512x256xf32>
    %8 = arith.maximumf %5, %7 : vector<512x256xf32>
    %c0_6 = arith.constant 0 : index
    %c0_7 = arith.constant 0 : index
    %9 = vector.load %arg4[%c0_6, %c0_7] : memref<256x512xbf16, #tpu.memory_space<vmem>>, vector<256x512xbf16>
    %10 = arith.truncf %8 : vector<512x256xf32> to vector<512x256xbf16>
    %cst_8 = arith.constant dense<0.000000e+00> : vector<256x256xf32>
    %11 = tpu.matmul %9, %10, %cst_8 {dimension_numbers = #tpu.dot_dimension_numbers<[1], [0], [0], [1], [0, 0, 1, 1], [], []>} : vector<256x512xbf16>, vector<512x256xbf16>, vector<256x256xf32> -> vector<256x256xf32>
    %c0_9 = arith.constant 0 : index
    %c0_10 = arith.constant 0 : index
    %12 = vector.load %arg5[%c0_9, %c0_10] : memref<256x1xf32, #tpu.memory_space<vmem>>, vector<256x1xf32>
    %13 = vector.broadcast %12 : vector<256x1xf32> to vector<256x256xf32>
    %14 = arith.addf %11, %13 : vector<256x256xf32>
    %cst_11 = arith.constant 2.000000e-01 : f32
    %15 = vector.broadcast %cst_11 : f32 to vector<256x256xf32>
    %16 = arith.mulf %15, %14 : vector<256x256xf32>
    %17 = arith.maximumf %14, %16 : vector<256x256xf32>
    %c0_12 = arith.constant 0 : index
    %c0_13 = arith.constant 0 : index
    %18 = vector.load %arg6[%c0_12, %c0_13] : memref<256x1xf32, #tpu.memory_space<vmem>>, vector<256x1xf32>
    %19 = vector.broadcast %18 : vector<256x1xf32> to vector<256x256xf32>
    %20 = arith.mulf %17, %19 : vector<256x256xf32>
    %cst_14 = arith.constant dense<0.000000e+00> : vector<256xf32>
    %21 = vector.multi_reduction <add>, %20, %cst_14 [0] : vector<256x256xf32> to vector<256xf32>
    %22 = vector.shape_cast %21 : vector<256xf32> to vector<1x256xf32>
    %c0_15 = arith.constant 0 : index
    %23 = memref.load %arg7[%c0_15] : memref<1xf32, #tpu.memory_space<smem>>
    %24 = vector.broadcast %23 : f32 to vector<1x256xf32>
    %25 = arith.addf %22, %24 : vector<1x256xf32>
    %26 = arith.negf %25 : vector<1x256xf32>
    %27 = math.exp %26 : vector<1x256xf32>
    %cst_16 = arith.constant 1.000000e+00 : f32
    %28 = vector.broadcast %cst_16 : f32 to vector<1x256xf32>
    %29 = arith.addf %28, %27 : vector<1x256xf32>
    %30 = arith.divf %28, %29 : vector<1x256xf32>
    %31 = vector.shape_cast %30 : vector<1x256xf32> to vector<1x1x256xf32>
    %c0_17 = arith.constant 0 : index
    %c0_18 = arith.constant 0 : index
    %c0_19 = arith.constant 0 : index
    %32 = vector.load %arg8[%c0_17, %c0_18, %c0_19] : memref<1x1x256xf32, #tpu.memory_space<vmem>>, vector<1x1x256xf32>
    tpu.vector_store %arg8[%c0_17, %c0_18, %c0_19], %31 {strides = array<i32>} : memref<1x1x256xf32, #tpu.memory_space<vmem>>, vector<1x1x256xf32>,
    return
  }
  func.func @transform_0(%arg0: i32) -> (i32, i32) {
    %c0_i32 = arith.constant 0 : i32
    %c0_i32_0 = arith.constant 0 : i32
    return %c0_i32, %arg0 : i32, i32
  }
  func.func @transform_1(%arg0: i32) -> (i32, i32) {
    %c0_i32 = arith.constant 0 : i32
    %c0_i32_0 = arith.constant 0 : i32
    %c0_i32_1 = arith.constant 0 : i32
    return %c0_i32, %c0_i32_0 : i32, i32
  }
  func.func @transform_2(%arg0: i32) -> (i32, i32) {
    %c0_i32 = arith.constant 0 : i32
    %c0_i32_0 = arith.constant 0 : i32
    %c0_i32_1 = arith.constant 0 : i32
    return %c0_i32, %c0_i32_0 : i32, i32
  }
  func.func @transform_3(%arg0: i32) -> (i32, i32) {
    %c0_i32 = arith.constant 0 : i32
    %c0_i32_0 = arith.constant 0 : i32
    %c0_i32_1 = arith.constant 0 : i32
    return %c0_i32, %c0_i32_0 : i32, i32
  }
  func.func @transform_4(%arg0: i32) -> (i32, i32) {
    %c0_i32 = arith.constant 0 : i32
    %c0_i32_0 = arith.constant 0 : i32
    %c0_i32_1 = arith.constant 0 : i32
    return %c0_i32, %c0_i32_0 : i32, i32
  }
  func.func @transform_5(%arg0: i32) -> (i32, i32) {
    %c0_i32 = arith.constant 0 : i32
    %c0_i32_0 = arith.constant 0 : i32
    %c0_i32_1 = arith.constant 0 : i32
    return %c0_i32, %c0_i32_0 : i32, i32
  }
  func.func @transform_6(%arg0: i32) -> i32 {
    %c0_i32 = arith.constant 0 : i32
    %c0_i32_0 = arith.constant 0 : i32
    return %c0_i32 : i32
  }
  func.func @transform_7(%arg0: i32) -> (i32, i32, i32) {
    %c0_i32 = arith.constant 0 : i32
    %c0_i32_0 = arith.constant 0 : i32
    %c0_i32_1 = arith.constant 0 : i32
    return %arg0, %c0_i32, %c0_i32_0 : i32, i32, i32
  }
}

</mosaic_0001>

<llo_original>
// kernel: discriminator_forward.1
$region0: #{discriminator_forward.1}
  #allocation0 [shape = 'u32[]', space=smem, size = 0x4, offset = 0x4, fixed_abs, tag = 'smem constant byte address 0x4 - core index']
  #allocation1 [shape = 'u32[144,128]{1,0:T(1,128)}', space=vmem, size = 0x12000, scoped, tag = 'internal scratch']
  #allocation2 [shape = 'f32[1]{0:T(128)S(6)}', space=smem, size = 0x200, scoped, tag = 'scoped memory for discriminator_forward.1']
  %s0 = inlined_call_operand.vmem [shape: bf16[784,512], index: 0, kind: input, shape index: {}]
  %s1 = inlined_call_operand.vmem [shape: bf16[512,784], index: 1, kind: input, shape index: {}]
  %s2 = inlined_call_operand.vmem [shape: f32[512,1], index: 2, kind: input, shape index: {}]
  %s3 = inlined_call_operand.vmem [shape: bf16[256,512], index: 3, kind: input, shape index: {}]
  %s4 = inlined_call_operand.vmem [shape: f32[256,1], index: 4, kind: input, shape index: {}]
  %s5 = inlined_call_operand.vmem [shape: f32[256,1], index: 5, kind: input, shape index: {}]
  %s6 = inlined_call_operand.<no memory space> [shape: f32[1], index: 6, kind: input, shape index: {}]
  %s7 = inlined_call_operand.hbm [shape: f32[2,1,256], index: 7, kind: output, shape index: {}]
  %s8 = sld [smem:[#allocation0]]
  $region99: #{discriminator_forward.1} parent=0
    _
  %s10 = ssub.s32 1, %s8
  %s11 = scalar_select 0, %s10, %s8
  %12 = sst [smem:[#allocation2]] %s6
  $region1: #{discriminator_forward.1} parent=0
    #allocation3 [shape = 'u8[802816]{0}', space=vmem, size = 0xc4000, scoped, tag = 'input window, operand 0']
    #allocation4 [shape = 'u8[2048]{0}', space=vmem, size = 0x800, scoped, tag = 'output window, operand 0']
    #allocation5 [shape = 's32[2]{0}', space=sflag, size = 0x8, scoped, tag = 'scoped memory for discriminator_forward.1']
    %13 = vsyncpa [#allocation5], 0
    %s14 = scalar_lea.sflag [#allocation5], 1
    %15 = vsyncpa %s14, 0
    loop: start=0, step=1, limit=4
    $region2: #{discriminator_forward.1} parent=1 // loop_pre_header
      _
    $region3: #{discriminator_forward.1} parent=1 // loop_header
      %s17 = sphi 0, %s21
      %p18 = scmp.ge.s32.totalorder %s17, 4
      %s27 = sphi 0, %s29
      %s30 = sphi 0, %s27
      %s31 = sphi 0, %s30
      %s47 = sphi 0, %s31
      %s51 = sphi 0, %s51
      %s53 = sphi 0, %s51
      %s54 = sphi 0, %s53
      %s68 = sphi 0, %s54
      %s72 = sphi 0, %s72
      %s74 = sphi 0, %s72
      %s75 = sphi 0, %s74
      %s89 = sphi 0, %s75
      %s93 = sphi 0, %s93
      %s95 = sphi 0, %s93
      %s96 = sphi 0, %s95
      %s110 = sphi 0, %s96
      %s114 = sphi 0, %s114
      %s116 = sphi 0, %s114
      %s117 = sphi 0, %s116
      %s131 = sphi 0, %s117
      %s135 = sphi 0, %s135
      %s137 = sphi 0, %s135
      %s138 = sphi 0, %s137
      %s152 = sphi 0, %s138
      %s156 = sphi 0, %s156
      %s158 = sphi 0, %s156
      %s159 = sphi 0, %s158
      %s173 = sphi 0, %s159
      %s179 = sphi 0, %s181
      %s182 = sphi 0, %s179
      %s183 = sphi 0, %s182
      %s199 = sphi 0, %s183
    $region4: #{discriminator_forward.1} parent=1 // loop_header_branch
      %20 = sbr.rel (%p18) target = $region8
    $region5: #{discriminator_forward.1} parent=1 // loop_body
      %s22 = ssub.s32 %s17, 1
      %s23 = ssub.s32 %s17, 2
      %s24 = sadd.s32 %s17, 1
      %s25 = ssub.s32 %s17, %s24
      %p26 = scmp.eq.s32.totalorder %s25, 0
      %s28 = sadd.s32 %s27, 1
      %s29 = scalar_select %p26, %s27, %s28
      %p32 = pneg %p26
      %p33 = scmp.eq.s32.totalorder %s17, 1
      %p34 = por %p32, %p33
      %p35 = scmp.ne.s32.totalorder %s27, %s30
      %p36 = scmp.eq.s32.totalorder %s17, 0
      %p37 = por %p35, %p36
      %p38 = scmp.ne.s32.totalorder %s27, %s30
      %p39 = scmp.eq.s32.totalorder %s22, 1
      %p40 = por %p38, %p39
      %p41 = scmp.ne.s32.totalorder %s30, %s31
      %p42 = scmp.eq.s32.totalorder %s22, 0
      %p43 = por %p41, %p42
      %p44 = scmp.ne.s32.totalorder %s30, %s31
      %p45 = scmp.eq.s32.totalorder %s23, 1
      %p46 = por %p44, %p45
      %p48 = scmp.ne.s32.totalorder %s31, %s47
      %p49 = scmp.eq.s32.totalorder %s23, 0
      %p50 = por %p48, %p49
      %s52 = sadd.s32 %s51, 1
      %p55 = scmp.eq.s32.totalorder %s17, 1
      %p56 = scmp.ne.s32.totalorder %s51, %s53
      %p57 = scmp.eq.s32.totalorder %s17, 0
      %p58 = por %p56, %p57
      %p59 = scmp.ne.s32.totalorder %s51, %s53
      %p60 = scmp.eq.s32.totalorder %s22, 1
      %p61 = por %p59, %p60
      %p62 = scmp.ne.s32.totalorder %s53, %s54
      %p63 = scmp.eq.s32.totalorder %s22, 0
      %p64 = por %p62, %p63
      %p65 = scmp.ne.s32.totalorder %s53, %s54
      %p66 = scmp.eq.s32.totalorder %s23, 1
      %p67 = por %p65, %p66
      %p69 = scmp.ne.s32.totalorder %s54, %s68
      %p70 = scmp.eq.s32.totalorder %s23, 0
      %p71 = por %p69, %p70
      %s73 = sadd.s32 %s72, 1
      %p76 = scmp.eq.s32.totalorder %s17, 1
      %p77 = scmp.ne.s32.totalorder %s72, %s74
      %p78 = scmp.eq.s32.totalorder %s17, 0
      %p79 = por %p77, %p78
      %p80 = scmp.ne.s32.totalorder %s72, %s74
      %p81 = scmp.eq.s32.totalorder %s22, 1
      %p82 = por %p80, %p81
      %p83 = scmp.ne.s32.totalorder %s74, %s75
      %p84 = scmp.eq.s32.totalorder %s22, 0
      %p85 = por %p83, %p84
      %p86 = scmp.ne.s32.totalorder %s74, %s75
      %p87 = scmp.eq.s32.totalorder %s23, 1
      %p88 = por %p86, %p87
      %p90 = scmp.ne.s32.totalorder %s75, %s89
      %p91 = scmp.eq.s32.totalorder %s23, 0
      %p92 = por %p90, %p91
      %s94 = sadd.s32 %s93, 1
      %p97 = scmp.eq.s32.totalorder %s17, 1
      %p98 = scmp.ne.s32.totalorder %s93, %s95
      %p99 = scmp.eq.s32.totalorder %s17, 0
      %p100 = por %p98, %p99
      %p101 = scmp.ne.s32.totalorder %s93, %s95
      %p102 = scmp.eq.s32.totalorder %s22, 1
      %p103 = por %p101, %p102
      %p104 = scmp.ne.s32.totalorder %s95, %s96
      %p105 = scmp.eq.s32.totalorder %s22, 0
      %p106 = por %p104, %p105
      %p107 = scmp.ne.s32.totalorder %s95, %s96
      %p108 = scmp.eq.s32.totalorder %s23, 1
      %p109 = por %p107, %p108
      %p111 = scmp.ne.s32.totalorder %s96, %s110
      %p112 = scmp.eq.s32.totalorder %s23, 0
      %p113 = por %p111, %p112
      %s115 = sadd.s32 %s114, 1
      %p118 = scmp.eq.s32.totalorder %s17, 1
      %p119 = scmp.ne.s32.totalorder %s114, %s116
      %p120 = scmp.eq.s32.totalorder %s17, 0
      %p121 = por %p119, %p120
      %p122 = scmp.ne.s32.totalorder %s114, %s116
      %p123 = scmp.eq.s32.totalorder %s22, 1
      %p124 = por %p122, %p123
      %p125 = scmp.ne.s32.totalorder %s116, %s117
      %p126 = scmp.eq.s32.totalorder %s22, 0
      %p127 = por %p125, %p126
      %p128 = scmp.ne.s32.totalorder %s116, %s117
      %p129 = scmp.eq.s32.totalorder %s23, 1
      %p130 = por %p128, %p129
      %p132 = scmp.ne.s32.totalorder %s117, %s131
      %p133 = scmp.eq.s32.totalorder %s23, 0
      %p134 = por %p132, %p133
      %s136 = sadd.s32 %s135, 1
      %p139 = scmp.eq.s32.totalorder %s17, 1
      %p140 = scmp.ne.s32.totalorder %s135, %s137
      %p141 = scmp.eq.s32.totalorder %s17, 0
      %p142 = por %p140, %p141
      %p143 = scmp.ne.s32.totalorder %s135, %s137
      %p144 = scmp.eq.s32.totalorder %s22, 1
      %p145 = por %p143, %p144
      %p146 = scmp.ne.s32.totalorder %s137, %s138
      %p147 = scmp.eq.s32.totalorder %s22, 0
      %p148 = por %p146, %p147
      %p149 = scmp.ne.s32.totalorder %s137, %s138
      %p150 = scmp.eq.s32.totalorder %s23, 1
      %p151 = por %p149, %p150
      %p153 = scmp.ne.s32.totalorder %s138, %s152
      %p154 = scmp.eq.s32.totalorder %s23, 0
      %p155 = por %p153, %p154
      %s157 = sadd.s32 %s156, 1
      %p160 = scmp.eq.s32.totalorder %s17, 1
      %p161 = scmp.ne.s32.totalorder %s156, %s158
      %p162 = scmp.eq.s32.totalorder %s17, 0
      %p163 = por %p161, %p162
      %p164 = scmp.ne.s32.totalorder %s156, %s158
      %p165 = scmp.eq.s32.totalorder %s22, 1
      %p166 = por %p164, %p165
      %p167 = scmp.ne.s32.totalorder %s158, %s159
      %p168 = scmp.eq.s32.totalorder %s22, 0
      %p169 = por %p167, %p168
      %p170 = scmp.ne.s32.totalorder %s158, %s159
      %p171 = scmp.eq.s32.totalorder %s23, 1
      %p172 = por %p170, %p171
      %p174 = scmp.ne.s32.totalorder %s159, %s173
      %p175 = scmp.eq.s32.totalorder %s23, 0
      %p176 = por %p174, %p175
      %s177 = ssub.s32 %s17, %s24
      %p178 = scmp.eq.s32.totalorder %s177, 0
      %s180 = sadd.s32 %s179, 1
      %s181 = scalar_select %p178, %s179, %s180
      %p184 = pneg %p178
      %p185 = scmp.eq.s32.totalorder %s17, 1
      %p186 = por %p184, %p185
      %p187 = scmp.ne.s32.totalorder %s179, %s182
      %p188 = scmp.eq.s32.totalorder %s17, 0
      %p189 = por %p187, %p188
      %p190 = scmp.ne.s32.totalorder %s179, %s182
      %p191 = scmp.eq.s32.totalorder %s22, 1
      %p192 = por %p190, %p191
      %p193 = scmp.ne.s32.totalorder %s182, %s183
      %p194 = scmp.eq.s32.totalorder %s22, 0
      %p195 = por %p193, %p194
      %p196 = scmp.ne.s32.totalorder %s182, %s183
      %p197 = scmp.eq.s32.totalorder %s23, 1
      %p198 = por %p196, %p197
      %p200 = scmp.ne.s32.totalorder %s183, %s199
      %p201 = scmp.eq.s32.totalorder %s23, 0
      %p202 = por %p200, %p201
      %p203 = scmp.le.s32.totalorder 1, %s17
      %p204 = scmp.lt.s32.totalorder %s17, 3
      %p205 = pnand %p203, %p204
      %p206 = pneg %p205
      // Predicated region
      $region9: #{discriminator_forward.1} parent=5 // pred_check
        _
      $region10: #{discriminator_forward.1} parent=5 // pred_check_branch
        %208 = sbr.rel (%p205) target = $region12
      $region11: #{discriminator_forward.1} parent=5 // pred_region
        %s209 = ssub.s32 %s17, 1
        // Predicated region
        $region13: #{discriminator_forward.1} parent=11 // pred_check
          %p210 = pneg %p64
        $region14: #{discriminator_forward.1} parent=11 // pred_check_branch
          %212 = sbr.rel (%p210) target = $region16
        $region15: #{discriminator_forward.1} parent=11 // pred_region
          _
        $region16: #{discriminator_forward.1} parent=11 // pred_fallthru
          _
        // Predicated region
        $region17: #{discriminator_forward.1} parent=11 // pred_check
          %p213 = pneg %p85
        $region18: #{discriminator_forward.1} parent=11 // pred_check_branch
          %215 = sbr.rel (%p213) target = $region20
        $region19: #{discriminator_forward.1} parent=11 // pred_region
          _
        $region20: #{discriminator_forward.1} parent=11 // pred_fallthru
          _
        // Predicated region
        $region21: #{discriminator_forward.1} parent=11 // pred_check
          %p216 = pneg %p106
        $region22: #{discriminator_forward.1} parent=11 // pred_check_branch
          %218 = sbr.rel (%p216) target = $region24
        $region23: #{discriminator_forward.1} parent=11 // pred_region
          _
        $region24: #{discriminator_forward.1} parent=11 // pred_fallthru
          _
        // Predicated region
        $region25: #{discriminator_forward.1} parent=11 // pred_check
          %p219 = pneg %p127
        $region26: #{discriminator_forward.1} parent=11 // pred_check_branch
          %221 = sbr.rel (%p219) target = $region28
        $region27: #{discriminator_forward.1} parent=11 // pred_region
          _
        $region28: #{discriminator_forward.1} parent=11 // pred_fallthru
          _
        // Predicated region
        $region29: #{discriminator_forward.1} parent=11 // pred_check
          %p222 = pneg %p148
        $region30: #{discriminator_forward.1} parent=11 // pred_check_branch
          %224 = sbr.rel (%p222) target = $region32
        $region31: #{discriminator_forward.1} parent=11 // pred_region
          _
        $region32: #{discriminator_forward.1} parent=11 // pred_fallthru
          _
        // Predicated region
        $region33: #{discriminator_forward.1} parent=11 // pred_check
          %p225 = pneg %p169
        $region34: #{discriminator_forward.1} parent=11 // pred_check_branch
          %227 = sbr.rel (%p225) target = $region36
        $region35: #{discriminator_forward.1} parent=11 // pred_region
          _
        $region36: #{discriminator_forward.1} parent=11 // pred_fallthru
          _
      $region12: #{discriminator_forward.1} parent=5 // pred_fallthru
        _
      %p228 = scmp.lt.s32.totalorder %s17, 2
      // Predicated region
      $region37: #{discriminator_forward.1} parent=5 // pred_check
        %p229 = pneg %p228
      $region38: #{discriminator_forward.1} parent=5 // pred_check_branch
        %231 = sbr.rel (%p229) target = $region40
      $region39: #{discriminator_forward.1} parent=5 // pred_region
        // Predicated region
        $region41: #{discriminator_forward.1} parent=39 // pred_check
          %p232 = pneg %p37
        $region42: #{discriminator_forward.1} parent=39 // pred_check_branch
          %234 = sbr.rel (%p232) target = $region44
        $region43: #{discriminator_forward.1} parent=39 // pred_region
          %s235 = sand.u32 %s27, 1
          %s236 = sand.u32 %s27, 1
          %s237 = smul.addr %s236, 784
          %s238 = scalar_lea.vmem [#allocation3], %s237
          %s239 = smul.u32 2, %s17
          %s240 = smul.addr %s239, 4
          %s241 = scalar_lea.vmem %s0, %s240
          // Predicated region
          $region45: #{discriminator_forward.1} parent=43 // pred_check
            _
          $region46: #{discriminator_forward.1} parent=43 // pred_check_branch
            %243 = sbr.rel (0) target = $region48
          $region47: #{discriminator_forward.1} parent=43 // pred_region
            // Predicated region
            $region49: #{discriminator_forward.1} parent=47 // pred_check
              _
            $region50: #{discriminator_forward.1} parent=47 // pred_check_branch
              %245 = sbr.rel (0) target = $region52
            $region51: #{discriminator_forward.1} parent=47 // pred_region
              // Predicated region
              $region64: #{discriminator_forward.1} parent=51 // pred_check
                _
              $region65: #{discriminator_forward.1} parent=51 // pred_check_branch
                %454 = sbr.rel (0) target = $region67
              $region66: #{discriminator_forward.1} parent=51 // pred_region
                loop: start=0, step=1, limit=1
                $region68: #{discriminator_forward.1} parent=66 // loop_pre_header
                  _
                $region69: #{discriminator_forward.1} parent=66 // loop_header
                  %s456 = sphi 0, %s460
                  %p457 = scmp.ge.s32.totalorder %s456, 1
                  %s461 = sphi %s241, %s241
                  %s462 = sphi %s238, %s238
                $region70: #{discriminator_forward.1} parent=66 // loop_header_branch
                  %459 = sbr.rel (%p457) target = $region74
                $region71: #{discriminator_forward.1} parent=66 // loop_body
                  %v463 = vld [vmem:[%s461] sm:$0xff]
                  %464 = vst [vmem:[%s462] sm:$0xff] %v463
                  %v465 = vld [vmem:[%s461 + $0x10] sm:$0xff]
                  %466 = vst [vmem:[%s462 + $0x8] sm:$0xff] %v465
                  %v467 = vld [vmem:[%s461 + $0x20] sm:$0xff]
                  %468 = vst [vmem:[%s462 + $0x10] sm:$0xff] %v467
                  %v469 = vld [vmem:[%s461 + $0x30] sm:$0xff]
                  %470 = vst [vmem:[%s462 + $0x18] sm:$0xff] %v469
                  %v471 = vld [vmem:[%s461 + $0x40] sm:$0xff]
                  %472 = vst [vmem:[%s462 + $0x20] sm:$0xff] %v471
                  %v473 = vld [vmem:[%s461 + $0x50] sm:$0xff]
                  %474 = vst [vmem:[%s462 + $0x28] sm:$0xff] %v473
                  %v475 = vld [vmem:[%s461 + $0x60] sm:$0xff]
                  %476 = vst [vmem:[%s462 + $0x30] sm:$0xff] %v475
                  %v477 = vld [vmem:[%s461 + $0x70] sm:$0xff]
                  %478 = vst [vmem:[%s462 + $0x38] sm:$0xff] %v477
                  %v479 = vld [vmem:[%s461 + $0x80] sm:$0xff]
                  %480 = vst [vmem:[%s462 + $0x40] sm:$0xff] %v479
                  %v481 = vld [vmem:[%s461 + $0x90] sm:$0xff]
                  %482 = vst [vmem:[%s462 + $0x48] sm:$0xff] %v481
                  %v483 = vld [vmem:[%s461 + $0xa0] sm:$0xff]
                  %484 = vst [vmem:[%s462 + $0x50] sm:$0xff] %v483
                  %v485 = vld [vmem:[%s461 + $0xb0] sm:$0xff]
                  %486 = vst [vmem:[%s462 + $0x58] sm:$0xff] %v485
                  %v487 = vld [vmem:[%s461 + $0xc0] sm:$0xff]
                  %488 = vst [vmem:[%s462 + $0x60] sm:$0xff] %v487
                  %v489 = vld [vmem:[%s461 + $0xd0] sm:$0xff]
                  %490 = vst [vmem:[%s462 + $0x68] sm:$0xff] %v489
                  %v491 = vld [vmem:[%s461 + $0xe0] sm:$0xff]
                  %492 = vst [vmem:[%s462 + $0x70] sm:$0xff] %v491
                  %v493 = vld [vmem:[%s461 + $0xf0] sm:$0xff]
                  %494 = vst [vmem:[%s462 + $0x78] sm:$0xff] %v493
                  %v495 = vld [vmem:[%s461 + $0x100] sm:$0xff]
                  %496 = vst [vmem:[%s462 + $0x80] sm:$0xff] %v495
                  %v497 = vld [vmem:[%s461 + $0x110] sm:$0xff]
                  %498 = vst [vmem:[%s462 + $0x88] sm:$0xff] %v497
                  %v499 = vld [vmem:[%s461 + $0x120] sm:$0xff]
                  %500 = vst [vmem:[%s462 + $0x90] sm:$0xff] %v499
                  %v501 = vld [vmem:[%s461 + $0x130] sm:$0xff]
                  %502 = vst [vmem:[%s462 + $0x98] sm:$0xff] %v501
                  %v503 = vld [vmem:[%s461 + $0x140] sm:$0xff]
                  %504 = vst [vmem:[%s462 + $0xa0] sm:$0xff] %v503
                  %v505 = vld [vmem:[%s461 + $0x150] sm:$0xff]
                  %506 = vst [vmem:[%s462 + $0xa8] sm:$0xff] %v505
                  %v507 = vld [vmem:[%s461 + $0x160] sm:$0xff]
                  %508 = vst [vmem:[%s462 + $0xb0] sm:$0xff] %v507
                  %v509 = vld [vmem:[%s461 + $0x170] sm:$0xff]
                  %510 = vst [vmem:[%s462 + $0xb8] sm:$0xff] %v509
                  %v511 = vld [vmem:[%s461 + $0x180] sm:$0xff]
                  %512 = vst [vmem:[%s462 + $0xc0] sm:$0xff] %v511
                  %v513 = vld [vmem:[%s461 + $0x190] sm:$0xff]
                  %514 = vst [vmem:[%s462 + $0xc8] sm:$0xff] %v513
                  %v515 = vld [vmem:[%s461 + $0x1a0] sm:$0xff]
                  %516 = vst [vmem:[%s462 + $0xd0] sm:$0xff] %v515
                  %v517 = vld [vmem:[%s461 + $0x1b0] sm:$0xff]
                  %518 = vst [vmem:[%s462 + $0xd8] sm:$0xff] %v517
                  %v519 = vld [vmem:[%s461 + $0x1c0] sm:$0xff]
                  %520 = vst [vmem:[%s462 + $0xe0] sm:$0xff] %v519
                  %v521 = vld [vmem:[%s461 + $0x1d0] sm:$0xff]
                  %522 = vst [vmem:[%s462 + $0xe8] sm:$0xff] %v521
                  %v523 = vld [vmem:[%s461 + $0x1e0] sm:$0xff]
                  %524 = vst [vmem:[%s462 + $0xf0] sm:$0xff] %v523
                  %v525 = vld [vmem:[%s461 + $0x1f0] sm:$0xff]
                  %526 = vst [vmem:[%s462 + $0xf8] sm:$0xff] %v525
                  %v527 = vld [vmem:[%s461 + $0x200] sm:$0xff]
                  %528 = vst [vmem:[%s462 + $0x100] sm:$0xff] %v527
                  %v529 = vld [vmem:[%s461 + $0x210] sm:$0xff]
                  %530 = vst [vmem:[%s462 + $0x108] sm:$0xff] %v529
                  %v531 = vld [vmem:[%s461 + $0x220] sm:$0xff]
                  %532 = vst [vmem:[%s462 + $0x110] sm:$0xff] %v531
                  %v533 = vld [vmem:[%s461 + $0x230] sm:$0xff]
                  %534 = vst [vmem:[%s462 + $0x118] sm:$0xff] %v533
                  %v535 = vld [vmem:[%s461 + $0x240] sm:$0xff]
                  %536 = vst [vmem:[%s462 + $0x120] sm:$0xff] %v535
                  %v537 = vld [vmem:[%s461 + $0x250] sm:$0xff]
                  %538 = vst [vmem:[%s462 + $0x128] sm:$0xff] %v537
                  %v539 = vld [vmem:[%s461 + $0x260] sm:$0xff]
                  %540 = vst [vmem:[%s462 + $0x130] sm:$0xff] %v539
                  %v541 = vld [vmem:[%s461 + $0x270] sm:$0xff]
                  %542 = vst [vmem:[%s462 + $0x138] sm:$0xff] %v541
                  %v543 = vld [vmem:[%s461 + $0x280] sm:$0xff]
                  %544 = vst [vmem:[%s462 + $0x140] sm:$0xff] %v543
                  %v545 = vld [vmem:[%s461 + $0x290] sm:$0xff]
                  %546 = vst [vmem:[%s462 + $0x148] sm:$0xff] %v545
                  %v547 = vld [vmem:[%s461 + $0x2a0] sm:$0xff]
                  %548 = vst [vmem:[%s462 + $0x150] sm:$0xff] %v547
                  %v549 = vld [vmem:[%s461 + $0x2b0] sm:$0xff]
                  %550 = vst [vmem:[%s462 + $0x158] sm:$0xff] %v549
                  %v551 = vld [vmem:[%s461 + $0x2c0] sm:$0xff]
                  %552 = vst [vmem:[%s462 + $0x160] sm:$0xff] %v551
                  %v553 = vld [vmem:[%s461 + $0x2d0] sm:$0xff]
                  %554 = vst [vmem:[%s462 + $0x168] sm:$0xff] %v553
                  %v555 = vld [vmem:[%s461 + $0x2e0] sm:$0xff]
                  %556 = vst [vmem:[%s462 + $0x170] sm:$0xff] %v555
                  %v557 = vld [vmem:[%s461 + $0x2f0] sm:$0xff]
                  %558 = vst [vmem:[%s462 + $0x178] sm:$0xff] %v557
                  %v559 = vld [vmem:[%s461 + $0x300] sm:$0xff]
                  %560 = vst [vmem:[%s462 + $0x180] sm:$0xff] %v559
                  %v561 = vld [vmem:[%s461 + $0x310] sm:$0xff]
                  %562 = vst [vmem:[%s462 + $0x188] sm:$0xff] %v561
                  %v563 = vld [vmem:[%s461 + $0x320] sm:$0xff]
                  %564 = vst [vmem:[%s462 + $0x190] sm:$0xff] %v563
                  %v565 = vld [vmem:[%s461 + $0x330] sm:$0xff]
                  %566 = vst [vmem:[%s462 + $0x198] sm:$0xff] %v565
                  %v567 = vld [vmem:[%s461 + $0x340] sm:$0xff]
                  %568 = vst [vmem:[%s462 + $0x1a0] sm:$0xff] %v567
                  %v569 = vld [vmem:[%s461 + $0x350] sm:$0xff]
                  %570 = vst [vmem:[%s462 + $0x1a8] sm:$0xff] %v569
                  %v571 = vld [vmem:[%s461 + $0x360] sm:$0xff]
                  %572 = vst [vmem:[%s462 + $0x1b0] sm:$0xff] %v571
                  %v573 = vld [vmem:[%s461 + $0x370] sm:$0xff]
                  %574 = vst [vmem:[%s462 + $0x1b8] sm:$0xff] %v573
                  %v575 = vld [vmem:[%s461 + $0x380] sm:$0xff]
                  %576 = vst [vmem:[%s462 + $0x1c0] sm:$0xff] %v575
                  %v577 = vld [vmem:[%s461 + $0x390] sm:$0xff]
                  %578 = vst [vmem:[%s462 + $0x1c8] sm:$0xff] %v577
                  %v579 = vld [vmem:[%s461 + $0x3a0] sm:$0xff]
                  %580 = vst [vmem:[%s462 + $0x1d0] sm:$0xff] %v579
                  %v581 = vld [vmem:[%s461 + $0x3b0] sm:$0xff]
                  %582 = vst [vmem:[%s462 + $0x1d8] sm:$0xff] %v581
                  %v583 = vld [vmem:[%s461 + $0x3c0] sm:$0xff]
                  %584 = vst [vmem:[%s462 + $0x1e0] sm:$0xff] %v583
                  %v585 = vld [vmem:[%s461 + $0x3d0] sm:$0xff]
                  %586 = vst [vmem:[%s462 + $0x1e8] sm:$0xff] %v585
                  %v587 = vld [vmem:[%s461 + $0x3e0] sm:$0xff]
                  %588 = vst [vmem:[%s462 + $0x1f0] sm:$0xff] %v587
                  %v589 = vld [vmem:[%s461 + $0x3f0] sm:$0xff]
                  %590 = vst [vmem:[%s462 + $0x1f8] sm:$0xff] %v589
                  %v591 = vld [vmem:[%s461 + $0x400] sm:$0xff]
                  %592 = vst [vmem:[%s462 + $0x200] sm:$0xff] %v591
                  %v593 = vld [vmem:[%s461 + $0x410] sm:$0xff]
                  %594 = vst [vmem:[%s462 + $0x208] sm:$0xff] %v593
                  %v595 = vld [vmem:[%s461 + $0x420] sm:$0xff]
                  %596 = vst [vmem:[%s462 + $0x210] sm:$0xff] %v595
                  %v597 = vld [vmem:[%s461 + $0x430] sm:$0xff]
                  %598 = vst [vmem:[%s462 + $0x218] sm:$0xff] %v597
                  %v599 = vld [vmem:[%s461 + $0x440] sm:$0xff]
                  %600 = vst [vmem:[%s462 + $0x220] sm:$0xff] %v599
                  %v601 = vld [vmem:[%s461 + $0x450] sm:$0xff]
                  %602 = vst [vmem:[%s462 + $0x228] sm:$0xff] %v601
                  %v603 = vld [vmem:[%s461 + $0x460] sm:$0xff]
                  %604 = vst [vmem:[%s462 + $0x230] sm:$0xff] %v603
                  %v605 = vld [vmem:[%s461 + $0x470] sm:$0xff]
                  %606 = vst [vmem:[%s462 + $0x238] sm:$0xff] %v605
                  %v607 = vld [vmem:[%s461 + $0x480] sm:$0xff]
                  %608 = vst [vmem:[%s462 + $0x240] sm:$0xff] %v607
                  %v609 = vld [vmem:[%s461 + $0x490] sm:$0xff]
                  %610 = vst [vmem:[%s462 + $0x248] sm:$0xff] %v609
                  %v611 = vld [vmem:[%s461 + $0x4a0] sm:$0xff]
                  %612 = vst [vmem:[%s462 + $0x250] sm:$0xff] %v611
                  %v613 = vld [vmem:[%s461 + $0x4b0] sm:$0xff]
                  %614 = vst [vmem:[%s462 + $0x258] sm:$0xff] %v613
                  %v615 = vld [vmem:[%s461 + $0x4c0] sm:$0xff]
                  %616 = vst [vmem:[%s462 + $0x260] sm:$0xff] %v615
                  %v617 = vld [vmem:[%s461 + $0x4d0] sm:$0xff]
                  %618 = vst [vmem:[%s462 + $0x268] sm:$0xff] %v617
                  %v619 = vld [vmem:[%s461 + $0x4e0] sm:$0xff]
                  %620 = vst [vmem:[%s462 + $0x270] sm:$0xff] %v619
                  %v621 = vld [vmem:[%s461 + $0x4f0] sm:$0xff]
                  %622 = vst [vmem:[%s462 + $0x278] sm:$0xff] %v621
                  %v623 = vld [vmem:[%s461 + $0x500] sm:$0xff]
                  %624 = vst [vmem:[%s462 + $0x280] sm:$0xff] %v623
                  %v625 = vld [vmem:[%s461 + $0x510] sm:$0xff]
                  %626 = vst [vmem:[%s462 + $0x288] sm:$0xff] %v625
                  %v627 = vld [vmem:[%s461 + $0x520] sm:$0xff]
                  %628 = vst [vmem:[%s462 + $0x290] sm:$0xff] %v627
                  %v629 = vld [vmem:[%s461 + $0x530] sm:$0xff]
                  %630 = vst [vmem:[%s462 + $0x298] sm:$0xff] %v629
                  %v631 = vld [vmem:[%s461 + $0x540] sm:$0xff]
                  %632 = vst [vmem:[%s462 + $0x2a0] sm:$0xff] %v631
                  %v633 = vld [vmem:[%s461 + $0x550] sm:$0xff]
                  %634 = vst [vmem:[%s462 + $0x2a8] sm:$0xff] %v633
                  %v635 = vld [vmem:[%s461 + $0x560] sm:$0xff]
                  %636 = vst [vmem:[%s462 + $0x2b0] sm:$0xff] %v635
                  %v637 = vld [vmem:[%s461 + $0x570] sm:$0xff]
                  %638 = vst [vmem:[%s462 + $0x2b8] sm:$0xff] %v637
                  %v639 = vld [vmem:[%s461 + $0x580] sm:$0xff]
                  %640 = vst [vmem:[%s462 + $0x2c0] sm:$0xff] %v639
                  %v641 = vld [vmem:[%s461 + $0x590] sm:$0xff]
                  %642 = vst [vmem:[%s462 + $0x2c8] sm:$0xff] %v641
                  %v643 = vld [vmem:[%s461 + $0x5a0] sm:$0xff]
                  %644 = vst [vmem:[%s462 + $0x2d0] sm:$0xff] %v643
                  %v645 = vld [vmem:[%s461 + $0x5b0] sm:$0xff]
                  %646 = vst [vmem:[%s462 + $0x2d8] sm:$0xff] %v645
                  %v647 = vld [vmem:[%s461 + $0x5c0] sm:$0xff]
                  %648 = vst [vmem:[%s462 + $0x2e0] sm:$0xff] %v647
                  %v649 = vld [vmem:[%s461 + $0x5d0] sm:$0xff]
                  %650 = vst [vmem:[%s462 + $0x2e8] sm:$0xff] %v649
                  %v651 = vld [vmem:[%s461 + $0x5e0] sm:$0xff]
                  %652 = vst [vmem:[%s462 + $0x2f0] sm:$0xff] %v651
                  %v653 = vld [vmem:[%s461 + $0x5f0] sm:$0xff]
                  %654 = vst [vmem:[%s462 + $0x2f8] sm:$0xff] %v653
                  %v655 = vld [vmem:[%s461 + $0x600] sm:$0xff]
                  %656 = vst [vmem:[%s462 + $0x300] sm:$0xff] %v655
                  %v657 = vld [vmem:[%s461 + $0x610] sm:$0xff]
                  %658 = vst [vmem:[%s462 + $0x308] sm:$0xff] %v657
                $region72: #{discriminator_forward.1} parent=66 // loop_footer
                  %s460 = sadd.s32 1, %s456
                $region73: #{discriminator_forward.1} parent=66 // loop_footer_branch
                  %455 = sbr.rel target = $region69
                $region74: #{discriminator_forward.1} parent=66 // loop_exit
                  _
              $region67: #{discriminator_forward.1} parent=51 // pred_fallthru
                _
              // Predicated region
              $region75: #{discriminator_forward.1} parent=51 // pred_check
                _
              $region76: #{discriminator_forward.1} parent=51 // pred_check_branch
                %660 = sbr.rel target = $region78
              $region77: #{discriminator_forward.1} parent=51 // pred_region
                _
              $region78: #{discriminator_forward.1} parent=51 // pred_fallthru
                _
            $region52: #{discriminator_forward.1} parent=47 // pred_fallthru
              _
            // Predicated region
            $region53: #{discriminator_forward.1} parent=47 // pred_check
              _
            $region54: #{discriminator_forward.1} parent=47 // pred_check_branch
              %247 = sbr.rel target = $region56
            $region55: #{discriminator_forward.1} parent=47 // pred_region
              loop: start=0, step=1, limit=1
              $region57: #{discriminator_forward.1} parent=55 // loop_pre_header
                _
              $region58: #{discriminator_forward.1} parent=55 // loop_header
                %s250 = sphi 0, %s254
                %p251 = scmp.ge.s32.totalorder %s250, 1
                %s255 = sphi %s241, %s241
                %s256 = sphi %s238, %s238
              $region59: #{discriminator_forward.1} parent=55 // loop_header_branch
                %253 = sbr.rel (%p251) target = $region63
              $region60: #{discriminator_forward.1} parent=55 // loop_body
                %v257 = vld [vmem:[%s255] sm:$0xff]
                %258 = vst [vmem:[%s256] sm:$0xff] %v257
                %v259 = vld [vmem:[%s255 + $0x10] sm:$0xff]
                %260 = vst [vmem:[%s256 + $0x8] sm:$0xff] %v259
                %v261 = vld [vmem:[%s255 + $0x20] sm:$0xff]
                %262 = vst [vmem:[%s256 + $0x10] sm:$0xff] %v261
                %v263 = vld [vmem:[%s255 + $0x30] sm:$0xff]
                %264 = vst [vmem:[%s256 + $0x18] sm:$0xff] %v263
                %v265 = vld [vmem:[%s255 + $0x40] sm:$0xff]
                %266 = vst [vmem:[%s256 + $0x20] sm:$0xff] %v265
                %v267 = vld [vmem:[%s255 + $0x50] sm:$0xff]
                %268 = vst [vmem:[%s256 + $0x28] sm:$0xff] %v267
                %v269 = vld [vmem:[%s255 + $0x60] sm:$0xff]
                %270 = vst [vmem:[%s256 + $0x30] sm:$0xff] %v269
                %v271 = vld [vmem:[%s255 + $0x70] sm:$0xff]
                %272 = vst [vmem:[%s256 + $0x38] sm:$0xff] %v271
                %v273 = vld [vmem:[%s255 + $0x80] sm:$0xff]
                %274 = vst [vmem:[%s256 + $0x40] sm:$0xff] %v273
                %v275 = vld [vmem:[%s255 + $0x90] sm:$0xff]
                %276 = vst [vmem:[%s256 + $0x48] sm:$0xff] %v275
                %v277 = vld [vmem:[%s255 + $0xa0] sm:$0xff]
                %278 = vst [vmem:[%s256 + $0x50] sm:$0xff] %v277
                %v279 = vld [vmem:[%s255 + $0xb0] sm:$0xff]
                %280 = vst [vmem:[%s256 + $0x58] sm:$0xff] %v279
                %v281 = vld [vmem:[%s255 + $0xc0] sm:$0xff]
                %282 = vst [vmem:[%s256 + $0x60] sm:$0xff] %v281
                %v283 = vld [vmem:[%s255 + $0xd0] sm:$0xff]
                %284 = vst [vmem:[%s256 + $0x68] sm:$0xff] %v283
                %v285 = vld [vmem:[%s255 + $0xe0] sm:$0xff]
                %286 = vst [vmem:[%s256 + $0x70] sm:$0xff] %v285
                %v287 = vld [vmem:[%s255 + $0xf0] sm:$0xff]
                %288 = vst [vmem:[%s256 + $0x78] sm:$0xff] %v287
                %v289 = vld [vmem:[%s255 + $0x100] sm:$0xff]
                %290 = vst [vmem:[%s256 + $0x80] sm:$0xff] %v289
                %v291 = vld [vmem:[%s255 + $0x110] sm:$0xff]
                %292 = vst [vmem:[%s256 + $0x88] sm:$0xff] %v291
                %v293 = vld [vmem:[%s255 + $0x120] sm:$0xff]
                %294 = vst [vmem:[%s256 + $0x90] sm:$0xff] %v293
                %v295 = vld [vmem:[%s255 + $0x130] sm:$0xff]
                %296 = vst [vmem:[%s256 + $0x98] sm:$0xff] %v295
                %v297 = vld [vmem:[%s255 + $0x140] sm:$0xff]
                %298 = vst [vmem:[%s256 + $0xa0] sm:$0xff] %v297
                %v299 = vld [vmem:[%s255 + $0x150] sm:$0xff]
                %300 = vst [vmem:[%s256 + $0xa8] sm:$0xff] %v299
                %v301 = vld [vmem:[%s255 + $0x160] sm:$0xff]
                %302 = vst [vmem:[%s256 + $0xb0] sm:$0xff] %v301
                %v303 = vld [vmem:[%s255 + $0x170] sm:$0xff]
                %304 = vst [vmem:[%s256 + $0xb8] sm:$0xff] %v303
                %v305 = vld [vmem:[%s255 + $0x180] sm:$0xff]
                %306 = vst [vmem:[%s256 + $0xc0] sm:$0xff] %v305
                %v307 = vld [vmem:[%s255 + $0x190] sm:$0xff]
                %308 = vst [vmem:[%s256 + $0xc8] sm:$0xff] %v307
                %v309 = vld [vmem:[%s255 + $0x1a0] sm:$0xff]
                %310 = vst [vmem:[%s256 + $0xd0] sm:$0xff] %v309
                %v311 = vld [vmem:[%s255 + $0x1b0] sm:$0xff]
                %312 = vst [vmem:[%s256 + $0xd8] sm:$0xff] %v311
                %v313 = vld [vmem:[%s255 + $0x1c0] sm:$0xff]
                %314 = vst [vmem:[%s256 + $0xe0] sm:$0xff] %v313
                %v315 = vld [vmem:[%s255 + $0x1d0] sm:$0xff]
                %316 = vst [vmem:[%s256 + $0xe8] sm:$0xff] %v315
                %v317 = vld [vmem:[%s255 + $0x1e0] sm:$0xff]
                %318 = vst [vmem:[%s256 + $0xf0] sm:$0xff] %v317
                %v319 = vld [vmem:[%s255 + $0x1f0] sm:$0xff]
                %320 = vst [vmem:[%s256 + $0xf8] sm:$0xff] %v319
                %v321 = vld [vmem:[%s255 + $0x200] sm:$0xff]
                %322 = vst [vmem:[%s256 + $0x100] sm:$0xff] %v321
                %v323 = vld [vmem:[%s255 + $0x210] sm:$0xff]
                %324 = vst [vmem:[%s256 + $0x108] sm:$0xff] %v323
                %v325 = vld [vmem:[%s255 + $0x220] sm:$0xff]
                %326 = vst [vmem:[%s256 + $0x110] sm:$0xff] %v325
                %v327 = vld [vmem:[%s255 + $0x230] sm:$0xff]
                %328 = vst [vmem:[%s256 + $0x118] sm:$0xff] %v327
                %v329 = vld [vmem:[%s255 + $0x240] sm:$0xff]
                %330 = vst [vmem:[%s256 + $0x120] sm:$0xff] %v329
                %v331 = vld [vmem:[%s255 + $0x250] sm:$0xff]
                %332 = vst [vmem:[%s256 + $0x128] sm:$0xff] %v331
                %v333 = vld [vmem:[%s255 + $0x260] sm:$0xff]
                %334 = vst [vmem:[%s256 + $0x130] sm:$0xff] %v333
                %v335 = vld [vmem:[%s255 + $0x270] sm:$0xff]
                %336 = vst [vmem:[%s256 + $0x138] sm:$0xff] %v335
                %v337 = vld [vmem:[%s255 + $0x280] sm:$0xff]
                %338 = vst [vmem:[%s256 + $0x140] sm:$0xff] %v337
                %v339 = vld [vmem:[%s255 + $0x290] sm:$0xff]
                %340 = vst [vmem:[%s256 + $0x148] sm:$0xff] %v339
                %v341 = vld [vmem:[%s255 + $0x2a0] sm:$0xff]
                %342 = vst [vmem:[%s256 + $0x150] sm:$0xff] %v341
                %v343 = vld [vmem:[%s255 + $0x2b0] sm:$0xff]
                %344 = vst [vmem:[%s256 + $0x158] sm:$0xff] %v343
                %v345 = vld [vmem:[%s255 + $0x2c0] sm:$0xff]
                %346 = vst [vmem:[%s256 + $0x160] sm:$0xff] %v345
                %v347 = vld [vmem:[%s255 + $0x2d0] sm:$0xff]
                %348 = vst [vmem:[%s256 + $0x168] sm:$0xff] %v347
                %v349 = vld [vmem:[%s255 + $0x2e0] sm:$0xff]
                %350 = vst [vmem:[%s256 + $0x170] sm:$0xff] %v349
                %v351 = vld [vmem:[%s255 + $0x2f0] sm:$0xff]
                %352 = vst [vmem:[%s256 + $0x178] sm:$0xff] %v351
                %v353 = vld [vmem:[%s255 + $0x300] sm:$0xff]
                %354 = vst [vmem:[%s256 + $0x180] sm:$0xff] %v353
                %v355 = vld [vmem:[%s255 + $0x310] sm:$0xff]
                %356 = vst [vmem:[%s256 + $0x188] sm:$0xff] %v355
                %v357 = vld [vmem:[%s255 + $0x320] sm:$0xff]
                %358 = vst [vmem:[%s256 + $0x190] sm:$0xff] %v357
                %v359 = vld [vmem:[%s255 + $0x330] sm:$0xff]
                %360 = vst [vmem:[%s256 + $0x198] sm:$0xff] %v359
                %v361 = vld [vmem:[%s255 + $0x340] sm:$0xff]
                %362 = vst [vmem:[%s256 + $0x1a0] sm:$0xff] %v361
                %v363 = vld [vmem:[%s255 + $0x350] sm:$0xff]
                %364 = vst [vmem:[%s256 + $0x1a8] sm:$0xff] %v363
                %v365 = vld [vmem:[%s255 + $0x360] sm:$0xff]
                %366 = vst [vmem:[%s256 + $0x1b0] sm:$0xff] %v365
                %v367 = vld [vmem:[%s255 + $0x370] sm:$0xff]
                %368 = vst [vmem:[%s256 + $0x1b8] sm:$0xff] %v367
                %v369 = vld [vmem:[%s255 + $0x380] sm:$0xff]
                %370 = vst [vmem:[%s256 + $0x1c0] sm:$0xff] %v369
                %v371 = vld [vmem:[%s255 + $0x390] sm:$0xff]
                %372 = vst [vmem:[%s256 + $0x1c8] sm:$0xff] %v371
                %v373 = vld [vmem:[%s255 + $0x3a0] sm:$0xff]
                %374 = vst [vmem:[%s256 + $0x1d0] sm:$0xff] %v373
                %v375 = vld [vmem:[%s255 + $0x3b0] sm:$0xff]
                %376 = vst [vmem:[%s256 + $0x1d8] sm:$0xff] %v375
                %v377 = vld [vmem:[%s255 + $0x3c0] sm:$0xff]
                %378 = vst [vmem:[%s256 + $0x1e0] sm:$0xff] %v377
                %v379 = vld [vmem:[%s255 + $0x3d0] sm:$0xff]
                %380 = vst [vmem:[%s256 + $0x1e8] sm:$0xff] %v379
                %v381 = vld [vmem:[%s255 + $0x3e0] sm:$0xff]
                %382 = vst [vmem:[%s256 + $0x1f0] sm:$0xff] %v381
                %v383 = vld [vmem:[%s255 + $0x3f0] sm:$0xff]
                %384 = vst [vmem:[%s256 + $0x1f8] sm:$0xff] %v383
                %v385 = vld [vmem:[%s255 + $0x400] sm:$0xff]
                %386 = vst [vmem:[%s256 + $0x200] sm:$0xff] %v385
                %v387 = vld [vmem:[%s255 + $0x410] sm:$0xff]
                %388 = vst [vmem:[%s256 + $0x208] sm:$0xff] %v387
                %v389 = vld [vmem:[%s255 + $0x420] sm:$0xff]
                %390 = vst [vmem:[%s256 + $0x210] sm:$0xff] %v389
                %v391 = vld [vmem:[%s255 + $0x430] sm:$0xff]
                %392 = vst [vmem:[%s256 + $0x218] sm:$0xff] %v391
                %v393 = vld [vmem:[%s255 + $0x440] sm:$0xff]
                %394 = vst [vmem:[%s256 + $0x220] sm:$0xff] %v393
                %v395 = vld [vmem:[%s255 + $0x450] sm:$0xff]
                %396 = vst [vmem:[%s256 + $0x228] sm:$0xff] %v395
                %v397 = vld [vmem:[%s255 + $0x460] sm:$0xff]
                %398 = vst [vmem:[%s256 + $0x230] sm:$0xff] %v397
                %v399 = vld [vmem:[%s255 + $0x470] sm:$0xff]
                %400 = vst [vmem:[%s256 + $0x238] sm:$0xff] %v399
                %v401 = vld [vmem:[%s255 + $0x480] sm:$0xff]
                %402 = vst [vmem:[%s256 + $0x240] sm:$0xff] %v401
                %v403 = vld [vmem:[%s255 + $0x490] sm:$0xff]
                %404 = vst [vmem:[%s256 + $0x248] sm:$0xff] %v403
                %v405 = vld [vmem:[%s255 + $0x4a0] sm:$0xff]
                %406 = vst [vmem:[%s256 + $0x250] sm:$0xff] %v405
                %v407 = vld [vmem:[%s255 + $0x4b0] sm:$0xff]
                %408 = vst [vmem:[%s256 + $0x258] sm:$0xff] %v407
                %v409 = vld [vmem:[%s255 + $0x4c0] sm:$0xff]
                %410 = vst [vmem:[%s256 + $0x260] sm:$0xff] %v409
                %v411 = vld [vmem:[%s255 + $0x4d0] sm:$0xff]
                %412 = vst [vmem:[%s256 + $0x268] sm:$0xff] %v411
                %v413 = vld [vmem:[%s255 + $0x4e0] sm:$0xff]
                %414 = vst [vmem:[%s256 + $0x270] sm:$0xff] %v413
                %v415 = vld [vmem:[%s255 + $0x4f0] sm:$0xff]
                %416 = vst [vmem:[%s256 + $0x278] sm:$0xff] %v415
                %v417 = vld [vmem:[%s255 + $0x500] sm:$0xff]
                %418 = vst [vmem:[%s256 + $0x280] sm:$0xff] %v417
                %v419 = vld [vmem:[%s255 + $0x510] sm:$0xff]
                %420 = vst [vmem:[%s256 + $0x288] sm:$0xff] %v419
                %v421 = vld [vmem:[%s255 + $0x520] sm:$0xff]
                %422 = vst [vmem:[%s256 + $0x290] sm:$0xff] %v421
                %v423 = vld [vmem:[%s255 + $0x530] sm:$0xff]
                %424 = vst [vmem:[%s256 + $0x298] sm:$0xff] %v423
                %v425 = vld [vmem:[%s255 + $0x540] sm:$0xff]
                %426 = vst [vmem:[%s256 + $0x2a0] sm:$0xff] %v425
                %v427 = vld [vmem:[%s255 + $0x550] sm:$0xff]
                %428 = vst [vmem:[%s256 + $0x2a8] sm:$0xff] %v427
                %v429 = vld [vmem:[%s255 + $0x560] sm:$0xff]
                %430 = vst [vmem:[%s256 + $0x2b0] sm:$0xff] %v429
                %v431 = vld [vmem:[%s255 + $0x570] sm:$0xff]
                %432 = vst [vmem:[%s256 + $0x2b8] sm:$0xff] %v431
                %v433 = vld [vmem:[%s255 + $0x580] sm:$0xff]
                %434 = vst [vmem:[%s256 + $0x2c0] sm:$0xff] %v433
                %v435 = vld [vmem:[%s255 + $0x590] sm:$0xff]
                %436 = vst [vmem:[%s256 + $0x2c8] sm:$0xff] %v435
                %v437 = vld [vmem:[%s255 + $0x5a0] sm:$0xff]
                %438 = vst [vmem:[%s256 + $0x2d0] sm:$0xff] %v437
                %v439 = vld [vmem:[%s255 + $0x5b0] sm:$0xff]
                %440 = vst [vmem:[%s256 + $0x2d8] sm:$0xff] %v439
                %v441 = vld [vmem:[%s255 + $0x5c0] sm:$0xff]
                %442 = vst [vmem:[%s256 + $0x2e0] sm:$0xff] %v441
                %v443 = vld [vmem:[%s255 + $0x5d0] sm:$0xff]
                %444 = vst [vmem:[%s256 + $0x2e8] sm:$0xff] %v443
                %v445 = vld [vmem:[%s255 + $0x5e0] sm:$0xff]
                %446 = vst [vmem:[%s256 + $0x2f0] sm:$0xff] %v445
                %v447 = vld [vmem:[%s255 + $0x5f0] sm:$0xff]
                %448 = vst [vmem:[%s256 + $0x2f8] sm:$0xff] %v447
                %v449 = vld [vmem:[%s255 + $0x600] sm:$0xff]
                %450 = vst [vmem:[%s256 + $0x300] sm:$0xff] %v449
                %v451 = vld [vmem:[%s255 + $0x610] sm:$0xff]
                %452 = vst [vmem:[%s256 + $0x308] sm:$0xff] %v451
              $region61: #{discriminator_forward.1} parent=55 // loop_footer
                %s254 = sadd.s32 1, %s250
              $region62: #{discriminator_forward.1} parent=55 // loop_footer_branch
                %249 = sbr.rel target = $region58
              $region63: #{discriminator_forward.1} parent=55 // loop_exit
                _
            $region56: #{discriminator_forward.1} parent=47 // pred_fallthru
              _
          $region48: #{discriminator_forward.1} parent=43 // pred_fallthru
            _
          %661 = vnop
        $region44: #{discriminator_forward.1} parent=39 // pred_fallthru
          _
      $region40: #{discriminator_forward.1} parent=5 // pred_fallthru
        _
      %p662 = scmp.le.s32.totalorder 1, %s17
      %p663 = scmp.lt.s32.totalorder %s17, 3
      %p664 = pnand %p662, %p663
      %p665 = pneg %p664
      // Predicated region
      $region79: #{discriminator_forward.1} parent=5 // pred_check
        _
      $region80: #{discriminator_forward.1} parent=5 // pred_check_branch
        %667 = sbr.rel (%p664) target = $region82
      $region81: #{discriminator_forward.1} parent=5 // pred_region
        %s668 = ssub.s32 %s17, 1
        %s669 = sand.u32 %s30, 1
        %s670 = sand.u32 %s30, 1
        %s671 = smul.addr %s670, 784
        %s672 = scalar_lea.vmem [#allocation3], %s671
        // Predicated region
        $region83: #{discriminator_forward.1} parent=81 // pred_check
          %p673 = pneg %p43
        $region84: #{discriminator_forward.1} parent=81 // pred_check_branch
          %675 = sbr.rel (%p673) target = $region86
        $region85: #{discriminator_forward.1} parent=81 // pred_region
          _
        $region86: #{discriminator_forward.1} parent=81 // pred_fallthru
          _
        %s676 = sand.u32 %s30, 1
        %s677 = sand.u32 %s30, 1
        %s678 = smul.addr %s677, 784
        %s679 = scalar_lea.vmem [#allocation3], %s678
        %p680 = pneg %p43
        %p681 = pneg %p40
        %p682 = pneg %p64
        %p683 = pneg %p61
        %p684 = pneg %p85
        %p685 = pneg %p82
        %p686 = pneg %p106
        %p687 = pneg %p103
        %p688 = pneg %p127
        %p689 = pneg %p124
        %p690 = pneg %p148
        %p691 = pneg %p145
        %p692 = pneg %p169
        %p693 = pneg %p166
        %p694 = pneg %p195
        %p695 = pneg %p192
        %s696 = sand.u32 %s182, 1
        %s697 = scalar_lea.sflag [#allocation5], %s696
        %s698 = sand.u32 %s182, 1
        %s699 = smul.addr %s698, 2
        %s700 = scalar_lea.vmem [#allocation4], %s699
        %s701 = smul.u32 2, %s22
        %v703 = vld [vmem:[%s1] sm:$0xff]
        %v704 = vld [vmem:[%s1 + $0x8] sm:$0xff]
        %v705 = vld [vmem:[%s1 + $0x10] sm:$0xff]
        %v706 = vld [vmem:[%s1 + $0x18] sm:$0xf]
        %v707 = vld [vmem:[%s1 + $0x1c] sm:$0xff]
        %v708 = vld [vmem:[%s1 + $0x24] sm:$0xff]
        %v709 = vld [vmem:[%s1 + $0x2c] sm:$0xff]
        %v710 = vld [vmem:[%s1 + $0x34] sm:$0xf]
        %v711 = vld [vmem:[%s1 + $0x38] sm:$0xff]
        %v712 = vld [vmem:[%s1 + $0x40] sm:$0xff]
        %v713 = vld [vmem:[%s1 + $0x48] sm:$0xff]
        %v714 = vld [vmem:[%s1 + $0x50] sm:$0xf]
        %v715 = vld [vmem:[%s1 + $0x54] sm:$0xff]
        %v716 = vld [vmem:[%s1 + $0x5c] sm:$0xff]
        %v717 = vld [vmem:[%s1 + $0x64] sm:$0xff]
        %v718 = vld [vmem:[%s1 + $0x6c] sm:$0xf]
        %v719 = vld [vmem:[%s1 + $0x70] sm:$0xff]
        %v720 = vld [vmem:[%s1 + $0x78] sm:$0xff]
        %v721 = vld [vmem:[%s1 + $0x80] sm:$0xff]
        %v722 = vld [vmem:[%s1 + $0x88] sm:$0xf]
        %v723 = vld [vmem:[%s1 + $0x8c] sm:$0xff]
        %v724 = vld [vmem:[%s1 + $0x94] sm:$0xff]
        %v725 = vld [vmem:[%s1 + $0x9c] sm:$0xff]
        %v726 = vld [vmem:[%s1 + $0xa4] sm:$0xf]
        %v727 = vld [vmem:[%s1 + $0xa8] sm:$0xff]
        %v728 = vld [vmem:[%s1 + $0xb0] sm:$0xff]
        %v729 = vld [vmem:[%s1 + $0xb8] sm:$0xff]
        %v730 = vld [vmem:[%s1 + $0xc0] sm:$0xf]
        %v731 = vld [vmem:[%s1 + $0xc4] sm:$0xff]
        %v732 = vld [vmem:[%s1 + $0xcc] sm:$0xff]
        %v733 = vld [vmem:[%s1 + $0xd4] sm:$0xff]
        %v734 = vld [vmem:[%s1 + $0xdc] sm:$0xf]
        %v735 = vld [vmem:[%s1 + $0xe0] sm:$0xff]
        %v736 = vld [vmem:[%s1 + $0xe8] sm:$0xff]
        %v737 = vld [vmem:[%s1 + $0xf0] sm:$0xff]
        %v738 = vld [vmem:[%s1 + $0xf8] sm:$0xf]
        %v739 = vld [vmem:[%s1 + $0xfc] sm:$0xff]
        %v740 = vld [vmem:[%s1 + $0x104] sm:$0xff]
        %v741 = vld [vmem:[%s1 + $0x10c] sm:$0xff]
        %v742 = vld [vmem:[%s1 + $0x114] sm:$0xf]
        %v743 = vld [vmem:[%s1 + $0x118] sm:$0xff]
        %v744 = vld [vmem:[%s1 + $0x120] sm:$0xff]
        %v745 = vld [vmem:[%s1 + $0x128] sm:$0xff]
        %v746 = vld [vmem:[%s1 + $0x130] sm:$0xf]
        %v747 = vld [vmem:[%s1 + $0x134] sm:$0xff]
        %v748 = vld [vmem:[%s1 + $0x13c] sm:$0xff]
        %v749 = vld [vmem:[%s1 + $0x144] sm:$0xff]
        %v750 = vld [vmem:[%s1 + $0x14c] sm:$0xf]
        %v751 = vld [vmem:[%s1 + $0x150] sm:$0xff]
        %v752 = vld [vmem:[%s1 + $0x158] sm:$0xff]
        %v753 = vld [vmem:[%s1 + $0x160] sm:$0xff]
        %v754 = vld [vmem:[%s1 + $0x168] sm:$0xf]
        %v755 = vld [vmem:[%s1 + $0x16c] sm:$0xff]
        %v756 = vld [vmem:[%s1 + $0x174] sm:$0xff]
        %v757 = vld [vmem:[%s1 + $0x17c] sm:$0xff]
        %v758 = vld [vmem:[%s1 + $0x184] sm:$0xf]
        %v759 = vld [vmem:[%s1 + $0x188] sm:$0xff]
        %v760 = vld [vmem:[%s1 + $0x190] sm:$0xff]
        %v761 = vld [vmem:[%s1 + $0x198] sm:$0xff]
        %v762 = vld [vmem:[%s1 + $0x1a0] sm:$0xf]
        %v763 = vld [vmem:[%s1 + $0x1a4] sm:$0xff]
        %v764 = vld [vmem:[%s1 + $0x1ac] sm:$0xff]
        %v765 = vld [vmem:[%s1 + $0x1b4] sm:$0xff]
        %v766 = vld [vmem:[%s1 + $0x1bc] sm:$0xf]
        %v767 = vld [vmem:[%s1 + $0x1c0] sm:$0xff]
        %v768 = vld [vmem:[%s1 + $0x1c8] sm:$0xff]
        %v769 = vld [vmem:[%s1 + $0x1d0] sm:$0xff]
        %v770 = vld [vmem:[%s1 + $0x1d8] sm:$0xf]
        %v771 = vld [vmem:[%s1 + $0x1dc] sm:$0xff]
        %v772 = vld [vmem:[%s1 + $0x1e4] sm:$0xff]
        %v773 = vld [vmem:[%s1 + $0x1ec] sm:$0xff]
        %v774 = vld [vmem:[%s1 + $0x1f4] sm:$0xf]
        %v775 = vld [vmem:[%s1 + $0x1f8] sm:$0xff]
        %v776 = vld [vmem:[%s1 + $0x200] sm:$0xff]
        %v777 = vld [vmem:[%s1 + $0x208] sm:$0xff]
        %v778 = vld [vmem:[%s1 + $0x210] sm:$0xf]
        %v779 = vld [vmem:[%s1 + $0x214] sm:$0xff]
        %v780 = vld [vmem:[%s1 + $0x21c] sm:$0xff]
        %v781 = vld [vmem:[%s1 + $0x224] sm:$0xff]
        %v782 = vld [vmem:[%s1 + $0x22c] sm:$0xf]
        %v783 = vld [vmem:[%s1 + $0x230] sm:$0xff]
        %v784 = vld [vmem:[%s1 + $0x238] sm:$0xff]
        %v785 = vld [vmem:[%s1 + $0x240] sm:$0xff]
        %v786 = vld [vmem:[%s1 + $0x248] sm:$0xf]
        %v787 = vld [vmem:[%s1 + $0x24c] sm:$0xff]
        %v788 = vld [vmem:[%s1 + $0x254] sm:$0xff]
        %v789 = vld [vmem:[%s1 + $0x25c] sm:$0xff]
        %v790 = vld [vmem:[%s1 + $0x264] sm:$0xf]
        %v791 = vld [vmem:[%s1 + $0x268] sm:$0xff]
        %v792 = vld [vmem:[%s1 + $0x270] sm:$0xff]
        %v793 = vld [vmem:[%s1 + $0x278] sm:$0xff]
        %v794 = vld [vmem:[%s1 + $0x280] sm:$0xf]
        %v795 = vld [vmem:[%s1 + $0x284] sm:$0xff]
        %v796 = vld [vmem:[%s1 + $0x28c] sm:$0xff]
        %v797 = vld [vmem:[%s1 + $0x294] sm:$0xff]
        %v798 = vld [vmem:[%s1 + $0x29c] sm:$0xf]
        %v799 = vld [vmem:[%s1 + $0x2a0] sm:$0xff]
        %v800 = vld [vmem:[%s1 + $0x2a8] sm:$0xff]
        %v801 = vld [vmem:[%s1 + $0x2b0] sm:$0xff]
        %v802 = vld [vmem:[%s1 + $0x2b8] sm:$0xf]
        %v803 = vld [vmem:[%s1 + $0x2bc] sm:$0xff]
        %v804 = vld [vmem:[%s1 + $0x2c4] sm:$0xff]
        %v805 = vld [vmem:[%s1 + $0x2cc] sm:$0xff]
        %v806 = vld [vmem:[%s1 + $0x2d4] sm:$0xf]
        %v807 = vld [vmem:[%s1 + $0x2d8] sm:$0xff]
        %v808 = vld [vmem:[%s1 + $0x2e0] sm:$0xff]
        %v809 = vld [vmem:[%s1 + $0x2e8] sm:$0xff]
        %v810 = vld [vmem:[%s1 + $0x2f0] sm:$0xf]
        %v811 = vld [vmem:[%s1 + $0x2f4] sm:$0xff]
        %v812 = vld [vmem:[%s1 + $0x2fc] sm:$0xff]
        %v813 = vld [vmem:[%s1 + $0x304] sm:$0xff]
        %v814 = vld [vmem:[%s1 + $0x30c] sm:$0xf]
        %v815 = vld [vmem:[%s1 + $0x310] sm:$0xff]
        %v816 = vld [vmem:[%s1 + $0x318] sm:$0xff]
        %v817 = vld [vmem:[%s1 + $0x320] sm:$0xff]
        %v818 = vld [vmem:[%s1 + $0x328] sm:$0xf]
        %v819 = vld [vmem:[%s1 + $0x32c] sm:$0xff]
        %v820 = vld [vmem:[%s1 + $0x334] sm:$0xff]
        %v821 = vld [vmem:[%s1 + $0x33c] sm:$0xff]
        %v822 = vld [vmem:[%s1 + $0x344] sm:$0xf]
        %v823 = vld [vmem:[%s1 + $0x348] sm:$0xff]
        %v824 = vld [vmem:[%s1 + $0x350] sm:$0xff]
        %v825 = vld [vmem:[%s1 + $0x358] sm:$0xff]
        %v826 = vld [vmem:[%s1 + $0x360] sm:$0xf]
        %v827 = vld [vmem:[%s1 + $0x364] sm:$0xff]
        %v828 = vld [vmem:[%s1 + $0x36c] sm:$0xff]
        %v829 = vld [vmem:[%s1 + $0x374] sm:$0xff]
        %v830 = vld [vmem:[%s1 + $0x37c] sm:$0xf]
        %v831 = vld [vmem:[%s1 + $0x380] sm:$0xff]
        %v832 = vld [vmem:[%s1 + $0x388] sm:$0xff]
        %v833 = vld [vmem:[%s1 + $0x390] sm:$0xff]
        %v834 = vld [vmem:[%s1 + $0x398] sm:$0xf]
        %v835 = vld [vmem:[%s1 + $0x39c] sm:$0xff]
        %v836 = vld [vmem:[%s1 + $0x3a4] sm:$0xff]
        %v837 = vld [vmem:[%s1 + $0x3ac] sm:$0xff]
        %v838 = vld [vmem:[%s1 + $0x3b4] sm:$0xf]
        %v839 = vld [vmem:[%s1 + $0x3b8] sm:$0xff]
        %v840 = vld [vmem:[%s1 + $0x3c0] sm:$0xff]
        %v841 = vld [vmem:[%s1 + $0x3c8] sm:$0xff]
        %v842 = vld [vmem:[%s1 + $0x3d0] sm:$0xf]
        %v843 = vld [vmem:[%s1 + $0x3d4] sm:$0xff]
        %v844 = vld [vmem:[%s1 + $0x3dc] sm:$0xff]
        %v845 = vld [vmem:[%s1 + $0x3e4] sm:$0xff]
        %v846 = vld [vmem:[%s1 + $0x3ec] sm:$0xf]
        %v847 = vld [vmem:[%s1 + $0x3f0] sm:$0xff]
        %v848 = vld [vmem:[%s1 + $0x3f8] sm:$0xff]
        %v849 = vld [vmem:[%s1 + $0x400] sm:$0xff]
        %v850 = vld [vmem:[%s1 + $0x408] sm:$0xf]
        %v851 = vld [vmem:[%s1 + $0x40c] sm:$0xff]
        %v852 = vld [vmem:[%s1 + $0x414] sm:$0xff]
        %v853 = vld [vmem:[%s1 + $0x41c] sm:$0xff]
        %v854 = vld [vmem:[%s1 + $0x424] sm:$0xf]
        %v855 = vld [vmem:[%s1 + $0x428] sm:$0xff]
        %v856 = vld [vmem:[%s1 + $0x430] sm:$0xff]
        %v857 = vld [vmem:[%s1 + $0x438] sm:$0xff]
        %v858 = vld [vmem:[%s1 + $0x440] sm:$0xf]
        %v859 = vld [vmem:[%s1 + $0x444] sm:$0xff]
        %v860 = vld [vmem:[%s1 + $0x44c] sm:$0xff]
        %v861 = vld [vmem:[%s1 + $0x454] sm:$0xff]
        %v862 = vld [vmem:[%s1 + $0x45c] sm:$0xf]
        %v863 = vld [vmem:[%s1 + $0x460] sm:$0xff]
        %v864 = vld [vmem:[%s1 + $0x468] sm:$0xff]
        %v865 = vld [vmem:[%s1 + $0x470] sm:$0xff]
        %v866 = vld [vmem:[%s1 + $0x478] sm:$0xf]
        %v867 = vld [vmem:[%s1 + $0x47c] sm:$0xff]
        %v868 = vld [vmem:[%s1 + $0x484] sm:$0xff]
        %v869 = vld [vmem:[%s1 + $0x48c] sm:$0xff]
        %v870 = vld [vmem:[%s1 + $0x494] sm:$0xf]
        %v871 = vld [vmem:[%s1 + $0x498] sm:$0xff]
        %v872 = vld [vmem:[%s1 + $0x4a0] sm:$0xff]
        %v873 = vld [vmem:[%s1 + $0x4a8] sm:$0xff]
        %v874 = vld [vmem:[%s1 + $0x4b0] sm:$0xf]
        %v875 = vld [vmem:[%s1 + $0x4b4] sm:$0xff]
        %v876 = vld [vmem:[%s1 + $0x4bc] sm:$0xff]
        %v877 = vld [vmem:[%s1 + $0x4c4] sm:$0xff]
        %v878 = vld [vmem:[%s1 + $0x4cc] sm:$0xf]
        %v879 = vld [vmem:[%s1 + $0x4d0] sm:$0xff]
        %v880 = vld [vmem:[%s1 + $0x4d8] sm:$0xff]
        %v881 = vld [vmem:[%s1 + $0x4e0] sm:$0xff]
        %v882 = vld [vmem:[%s1 + $0x4e8] sm:$0xf]
        %v883 = vld [vmem:[%s1 + $0x4ec] sm:$0xff]
        %v884 = vld [vmem:[%s1 + $0x4f4] sm:$0xff]
        %v885 = vld [vmem:[%s1 + $0x4fc] sm:$0xff]
        %v886 = vld [vmem:[%s1 + $0x504] sm:$0xf]
        %v887 = vld [vmem:[%s1 + $0x508] sm:$0xff]
        %v888 = vld [vmem:[%s1 + $0x510] sm:$0xff]
        %v889 = vld [vmem:[%s1 + $0x518] sm:$0xff]
        %v890 = vld [vmem:[%s1 + $0x520] sm:$0xf]
        %v891 = vld [vmem:[%s1 + $0x524] sm:$0xff]
        %v892 = vld [vmem:[%s1 + $0x52c] sm:$0xff]
        %v893 = vld [vmem:[%s1 + $0x534] sm:$0xff]
        %v894 = vld [vmem:[%s1 + $0x53c] sm:$0xf]
        %v895 = vld [vmem:[%s1 + $0x540] sm:$0xff]
        %v896 = vld [vmem:[%s1 + $0x548] sm:$0xff]
        %v897 = vld [vmem:[%s1 + $0x550] sm:$0xff]
        %v898 = vld [vmem:[%s1 + $0x558] sm:$0xf]
        %v899 = vld [vmem:[%s1 + $0x55c] sm:$0xff]
        %v900 = vld [vmem:[%s1 + $0x564] sm:$0xff]
        %v901 = vld [vmem:[%s1 + $0x56c] sm:$0xff]
        %v902 = vld [vmem:[%s1 + $0x574] sm:$0xf]
        %v903 = vld [vmem:[%s1 + $0x578] sm:$0xff]
        %v904 = vld [vmem:[%s1 + $0x580] sm:$0xff]
        %v905 = vld [vmem:[%s1 + $0x588] sm:$0xff]
        %v906 = vld [vmem:[%s1 + $0x590] sm:$0xf]
        %v907 = vld [vmem:[%s1 + $0x594] sm:$0xff]
        %v908 = vld [vmem:[%s1 + $0x59c] sm:$0xff]
        %v909 = vld [vmem:[%s1 + $0x5a4] sm:$0xff]
        %v910 = vld [vmem:[%s1 + $0x5ac] sm:$0xf]
        %v911 = vld [vmem:[%s1 + $0x5b0] sm:$0xff]
        %v912 = vld [vmem:[%s1 + $0x5b8] sm:$0xff]
        %v913 = vld [vmem:[%s1 + $0x5c0] sm:$0xff]
        %v914 = vld [vmem:[%s1 + $0x5c8] sm:$0xf]
        %v915 = vld [vmem:[%s1 + $0x5cc] sm:$0xff]
        %v916 = vld [vmem:[%s1 + $0x5d4] sm:$0xff]
        %v917 = vld [vmem:[%s1 + $0x5dc] sm:$0xff]
        %v918 = vld [vmem:[%s1 + $0x5e4] sm:$0xf]
        %v919 = vld [vmem:[%s1 + $0x5e8] sm:$0xff]
        %v920 = vld [vmem:[%s1 + $0x5f0] sm:$0xff]
        %v921 = vld [vmem:[%s1 + $0x5f8] sm:$0xff]
        %v922 = vld [vmem:[%s1 + $0x600] sm:$0xf]
        %v923 = vld [vmem:[%s1 + $0x604] sm:$0xff]
        %v924 = vld [vmem:[%s1 + $0x60c] sm:$0xff]
        %v925 = vld [vmem:[%s1 + $0x614] sm:$0xff]
        %v926 = vld [vmem:[%s1 + $0x61c] sm:$0xf]
        %v927 = vld [vmem:[%s1 + $0x620] sm:$0xff]
        %v928 = vld [vmem:[%s1 + $0x628] sm:$0xff]
        %v929 = vld [vmem:[%s1 + $0x630] sm:$0xff]
        %v930 = vld [vmem:[%s1 + $0x638] sm:$0xf]
        %v931 = vld [vmem:[%s1 + $0x63c] sm:$0xff]
        %v932 = vld [vmem:[%s1 + $0x644] sm:$0xff]
        %v933 = vld [vmem:[%s1 + $0x64c] sm:$0xff]
        %v934 = vld [vmem:[%s1 + $0x654] sm:$0xf]
        %v935 = vld [vmem:[%s1 + $0x658] sm:$0xff]
        %v936 = vld [vmem:[%s1 + $0x660] sm:$0xff]
        %v937 = vld [vmem:[%s1 + $0x668] sm:$0xff]
        %v938 = vld [vmem:[%s1 + $0x670] sm:$0xf]
        %v939 = vld [vmem:[%s1 + $0x674] sm:$0xff]
        %v940 = vld [vmem:[%s1 + $0x67c] sm:$0xff]
        %v941 = vld [vmem:[%s1 + $0x684] sm:$0xff]
        %v942 = vld [vmem:[%s1 + $0x68c] sm:$0xf]
        %v943 = vld [vmem:[%s1 + $0x690] sm:$0xff]
        %v944 = vld [vmem:[%s1 + $0x698] sm:$0xff]
        %v945 = vld [vmem:[%s1 + $0x6a0] sm:$0xff]
        %v946 = vld [vmem:[%s1 + $0x6a8] sm:$0xf]
        %v947 = vld [vmem:[%s1 + $0x6ac] sm:$0xff]
        %v948 = vld [vmem:[%s1 + $0x6b4] sm:$0xff]
        %v949 = vld [vmem:[%s1 + $0x6bc] sm:$0xff]
        %v950 = vld [vmem:[%s1 + $0x6c4] sm:$0xf]
        %v951 = vld [vmem:[%s1 + $0x6c8] sm:$0xff]
        %v952 = vld [vmem:[%s1 + $0x6d0] sm:$0xff]
        %v953 = vld [vmem:[%s1 + $0x6d8] sm:$0xff]
        %v954 = vld [vmem:[%s1 + $0x6e0] sm:$0xf]
        %v955 = vld [vmem:[%s1 + $0x6e4] sm:$0xff]
        %v956 = vld [vmem:[%s1 + $0x6ec] sm:$0xff]
        %v957 = vld [vmem:[%s1 + $0x6f4] sm:$0xff]
        %v958 = vld [vmem:[%s1 + $0x6fc] sm:$0xf]
        %v959 = vld [vmem:[%s672] sm:$0xff]
        %v960 = vld [vmem:[%s672 + $0x8] sm:$0xff]
        %v961 = vld [vmem:[%s672 + $0x10] sm:$0xff]
        %v962 = vld [vmem:[%s672 + $0x18] sm:$0xff]
        %v963 = vld [vmem:[%s672 + $0x20] sm:$0xff]
        %v964 = vld [vmem:[%s672 + $0x28] sm:$0xff]
        %v965 = vld [vmem:[%s672 + $0x30] sm:$0xff]
        %v966 = vld [vmem:[%s672 + $0x38] sm:$0xff]
        %v967 = vld [vmem:[%s672 + $0x40] sm:$0xff]
        %v968 = vld [vmem:[%s672 + $0x48] sm:$0xff]
        %v969 = vld [vmem:[%s672 + $0x50] sm:$0xff]
        %v970 = vld [vmem:[%s672 + $0x58] sm:$0xff]
        %v971 = vld [vmem:[%s672 + $0x60] sm:$0xff]
        %v972 = vld [vmem:[%s672 + $0x68] sm:$0xff]
        %v973 = vld [vmem:[%s672 + $0x70] sm:$0xff]
        %v974 = vld [vmem:[%s672 + $0x78] sm:$0xff]
        %v975 = vld [vmem:[%s672 + $0x80] sm:$0xff]
        %v976 = vld [vmem:[%s672 + $0x88] sm:$0xff]
        %v977 = vld [vmem:[%s672 + $0x90] sm:$0xff]
        %v978 = vld [vmem:[%s672 + $0x98] sm:$0xff]
        %v979 = vld [vmem:[%s672 + $0xa0] sm:$0xff]
        %v980 = vld [vmem:[%s672 + $0xa8] sm:$0xff]
        %v981 = vld [vmem:[%s672 + $0xb0] sm:$0xff]
        %v982 = vld [vmem:[%s672 + $0xb8] sm:$0xff]
        %v983 = vld [vmem:[%s672 + $0xc0] sm:$0xff]
        %v984 = vld [vmem:[%s672 + $0xc8] sm:$0xff]
        %v985 = vld [vmem:[%s672 + $0xd0] sm:$0xff]
        %v986 = vld [vmem:[%s672 + $0xd8] sm:$0xff]
        %v987 = vld [vmem:[%s672 + $0xe0] sm:$0xff]
        %v988 = vld [vmem:[%s672 + $0xe8] sm:$0xff]
        %v989 = vld [vmem:[%s672 + $0xf0] sm:$0xff]
        %v990 = vld [vmem:[%s672 + $0xf8] sm:$0xff]
        %v991 = vld [vmem:[%s672 + $0x100] sm:$0xff]
        %v992 = vld [vmem:[%s672 + $0x108] sm:$0xff]
        %v993 = vld [vmem:[%s672 + $0x110] sm:$0xff]
        %v994 = vld [vmem:[%s672 + $0x118] sm:$0xff]
        %v995 = vld [vmem:[%s672 + $0x120] sm:$0xff]
        %v996 = vld [vmem:[%s672 + $0x128] sm:$0xff]
        %v997 = vld [vmem:[%s672 + $0x130] sm:$0xff]
        %v998 = vld [vmem:[%s672 + $0x138] sm:$0xff]
        %v999 = vld [vmem:[%s672 + $0x140] sm:$0xff]
        %v1000 = vld [vmem:[%s672 + $0x148] sm:$0xff]
        %v1001 = vld [vmem:[%s672 + $0x150] sm:$0xff]
        %v1002 = vld [vmem:[%s672 + $0x158] sm:$0xff]
        %v1003 = vld [vmem:[%s672 + $0x160] sm:$0xff]
        %v1004 = vld [vmem:[%s672 + $0x168] sm:$0xff]
        %v1005 = vld [vmem:[%s672 + $0x170] sm:$0xff]
        %v1006 = vld [vmem:[%s672 + $0x178] sm:$0xff]
        %v1007 = vld [vmem:[%s672 + $0x180] sm:$0xff]
        %v1008 = vld [vmem:[%s672 + $0x188] sm:$0xff]
        %v1009 = vld [vmem:[%s672 + $0x190] sm:$0xff]
        %v1010 = vld [vmem:[%s672 + $0x198] sm:$0xff]
        %v1011 = vld [vmem:[%s672 + $0x1a0] sm:$0xff]
        %v1012 = vld [vmem:[%s672 + $0x1a8] sm:$0xff]
        %v1013 = vld [vmem:[%s672 + $0x1b0] sm:$0xff]
        %v1014 = vld [vmem:[%s672 + $0x1b8] sm:$0xff]
        %v1015 = vld [vmem:[%s672 + $0x1c0] sm:$0xff]
        %v1016 = vld [vmem:[%s672 + $0x1c8] sm:$0xff]
        %v1017 = vld [vmem:[%s672 + $0x1d0] sm:$0xff]
        %v1018 = vld [vmem:[%s672 + $0x1d8] sm:$0xff]
        %v1019 = vld [vmem:[%s672 + $0x1e0] sm:$0xff]
        %v1020 = vld [vmem:[%s672 + $0x1e8] sm:$0xff]
        %v1021 = vld [vmem:[%s672 + $0x1f0] sm:$0xff]
        %v1022 = vld [vmem:[%s672 + $0x1f8] sm:$0xff]
        %v1023 = vld [vmem:[%s672 + $0x200] sm:$0xff]
        %v1024 = vld [vmem:[%s672 + $0x208] sm:$0xff]
        %v1025 = vld [vmem:[%s672 + $0x210] sm:$0xff]
        %v1026 = vld [vmem:[%s672 + $0x218] sm:$0xff]
        %v1027 = vld [vmem:[%s672 + $0x220] sm:$0xff]
        %v1028 = vld [vmem:[%s672 + $0x228] sm:$0xff]
        %v1029 = vld [vmem:[%s672 + $0x230] sm:$0xff]
        %v1030 = vld [vmem:[%s672 + $0x238] sm:$0xff]
        %v1031 = vld [vmem:[%s672 + $0x240] sm:$0xff]
        %v1032 = vld [vmem:[%s672 + $0x248] sm:$0xff]
        %v1033 = vld [vmem:[%s672 + $0x250] sm:$0xff]
        %v1034 = vld [vmem:[%s672 + $0x258] sm:$0xff]
        %v1035 = vld [vmem:[%s672 + $0x260] sm:$0xff]
        %v1036 = vld [vmem:[%s672 + $0x268] sm:$0xff]
        %v1037 = vld [vmem:[%s672 + $0x270] sm:$0xff]
        %v1038 = vld [vmem:[%s672 + $0x278] sm:$0xff]
        %v1039 = vld [vmem:[%s672 + $0x280] sm:$0xff]
        %v1040 = vld [vmem:[%s672 + $0x288] sm:$0xff]
        %v1041 = vld [vmem:[%s672 + $0x290] sm:$0xff]
        %v1042 = vld [vmem:[%s672 + $0x298] sm:$0xff]
        %v1043 = vld [vmem:[%s672 + $0x2a0] sm:$0xff]
        %v1044 = vld [vmem:[%s672 + $0x2a8] sm:$0xff]
        %v1045 = vld [vmem:[%s672 + $0x2b0] sm:$0xff]
        %v1046 = vld [vmem:[%s672 + $0x2b8] sm:$0xff]
        %v1047 = vld [vmem:[%s672 + $0x2c0] sm:$0xff]
        %v1048 = vld [vmem:[%s672 + $0x2c8] sm:$0xff]
        %v1049 = vld [vmem:[%s672 + $0x2d0] sm:$0xff]
        %v1050 = vld [vmem:[%s672 + $0x2d8] sm:$0xff]
        %v1051 = vld [vmem:[%s672 + $0x2e0] sm:$0xff]
        %v1052 = vld [vmem:[%s672 + $0x2e8] sm:$0xff]
        %v1053 = vld [vmem:[%s672 + $0x2f0] sm:$0xff]
        %v1054 = vld [vmem:[%s672 + $0x2f8] sm:$0xff]
        %v1055 = vld [vmem:[%s672 + $0x300] sm:$0xff]
        %v1056 = vld [vmem:[%s672 + $0x308] sm:$0xff]
        %v1057 = vld [vmem:[%s2] sm:$0xff]
        %v1058 = vld [vmem:[%s2 + $0x8] sm:$0xff]
        %v1059 = vld [vmem:[%s2 + $0x10] sm:$0xff]
        %v1060 = vld [vmem:[%s2 + $0x18] sm:$0xff]
        %v1061 = vld [vmem:[%s2 + $0x20] sm:$0xff]
        %v1062 = vld [vmem:[%s2 + $0x28] sm:$0xff]
        %v1063 = vld [vmem:[%s2 + $0x30] sm:$0xff]
        %v1064 = vld [vmem:[%s2 + $0x38] sm:$0xff]
        %v1065 = vld [vmem:[%s2 + $0x40] sm:$0xff]
        %v1066 = vld [vmem:[%s2 + $0x48] sm:$0xff]
        %v1067 = vld [vmem:[%s2 + $0x50] sm:$0xff]
        %v1068 = vld [vmem:[%s2 + $0x58] sm:$0xff]
        %v1069 = vld [vmem:[%s2 + $0x60] sm:$0xff]
        %v1070 = vld [vmem:[%s2 + $0x68] sm:$0xff]
        %v1071 = vld [vmem:[%s2 + $0x70] sm:$0xff]
        %v1072 = vld [vmem:[%s2 + $0x78] sm:$0xff]
        %v1073 = vld [vmem:[%s2 + $0x80] sm:$0xff]
        %v1074 = vld [vmem:[%s2 + $0x88] sm:$0xff]
        %v1075 = vld [vmem:[%s2 + $0x90] sm:$0xff]
        %v1076 = vld [vmem:[%s2 + $0x98] sm:$0xff]
        %v1077 = vld [vmem:[%s2 + $0xa0] sm:$0xff]
        %v1078 = vld [vmem:[%s2 + $0xa8] sm:$0xff]
        %v1079 = vld [vmem:[%s2 + $0xb0] sm:$0xff]
        %v1080 = vld [vmem:[%s2 + $0xb8] sm:$0xff]
        %v1081 = vld [vmem:[%s2 + $0xc0] sm:$0xff]
        %v1082 = vld [vmem:[%s2 + $0xc8] sm:$0xff]
        %v1083 = vld [vmem:[%s2 + $0xd0] sm:$0xff]
        %v1084 = vld [vmem:[%s2 + $0xd8] sm:$0xff]
        %v1085 = vld [vmem:[%s2 + $0xe0] sm:$0xff]
        %v1086 = vld [vmem:[%s2 + $0xe8] sm:$0xff]
        %v1087 = vld [vmem:[%s2 + $0xf0] sm:$0xff]
        %v1088 = vld [vmem:[%s2 + $0xf8] sm:$0xff]
        %v1089 = vld [vmem:[%s2 + $0x100] sm:$0xff]
        %v1090 = vld [vmem:[%s2 + $0x108] sm:$0xff]
        %v1091 = vld [vmem:[%s2 + $0x110] sm:$0xff]
        %v1092 = vld [vmem:[%s2 + $0x118] sm:$0xff]
        %v1093 = vld [vmem:[%s2 + $0x120] sm:$0xff]
        %v1094 = vld [vmem:[%s2 + $0x128] sm:$0xff]
        %v1095 = vld [vmem:[%s2 + $0x130] sm:$0xff]
        %v1096 = vld [vmem:[%s2 + $0x138] sm:$0xff]
        %v1097 = vld [vmem:[%s2 + $0x140] sm:$0xff]
        %v1098 = vld [vmem:[%s2 + $0x148] sm:$0xff]
        %v1099 = vld [vmem:[%s2 + $0x150] sm:$0xff]
        %v1100 = vld [vmem:[%s2 + $0x158] sm:$0xff]
        %v1101 = vld [vmem:[%s2 + $0x160] sm:$0xff]
        %v1102 = vld [vmem:[%s2 + $0x168] sm:$0xff]
        %v1103 = vld [vmem:[%s2 + $0x170] sm:$0xff]
        %v1104 = vld [vmem:[%s2 + $0x178] sm:$0xff]
        %v1105 = vld [vmem:[%s2 + $0x180] sm:$0xff]
        %v1106 = vld [vmem:[%s2 + $0x188] sm:$0xff]
        %v1107 = vld [vmem:[%s2 + $0x190] sm:$0xff]
        %v1108 = vld [vmem:[%s2 + $0x198] sm:$0xff]
        %v1109 = vld [vmem:[%s2 + $0x1a0] sm:$0xff]
        %v1110 = vld [vmem:[%s2 + $0x1a8] sm:$0xff]
        %v1111 = vld [vmem:[%s2 + $0x1b0] sm:$0xff]
        %v1112 = vld [vmem:[%s2 + $0x1b8] sm:$0xff]
        %v1113 = vld [vmem:[%s2 + $0x1c0] sm:$0xff]
        %v1114 = vld [vmem:[%s2 + $0x1c8] sm:$0xff]
        %v1115 = vld [vmem:[%s2 + $0x1d0] sm:$0xff]
        %v1116 = vld [vmem:[%s2 + $0x1d8] sm:$0xff]
        %v1117 = vld [vmem:[%s2 + $0x1e0] sm:$0xff]
        %v1118 = vld [vmem:[%s2 + $0x1e8] sm:$0xff]
        %v1119 = vld [vmem:[%s2 + $0x1f0] sm:$0xff]
        %v1120 = vld [vmem:[%s2 + $0x1f8] sm:$0xff]
        %1122 = vset.pattern.permute.xlu0 0
        %1123 = vperm.xlu0 %1122, %v1057
        %v1124 = vpop.permute.xlu0 %1123
        %1127 = vset.pattern.permute.xlu0 0
        %1128 = vperm.xlu0 %1127, %v1058
        %v1129 = vpop.permute.xlu0 %1128
        %1132 = vset.pattern.permute.xlu0 0
        %1133 = vperm.xlu0 %1132, %v1059
        %v1134 = vpop.permute.xlu0 %1133
        %1137 = vset.pattern.permute.xlu0 0
        %1138 = vperm.xlu0 %1137, %v1060
        %v1139 = vpop.permute.xlu0 %1138
        %1142 = vset.pattern.permute.xlu0 0
        %1143 = vperm.xlu0 %1142, %v1061
        %v1144 = vpop.permute.xlu0 %1143
        %1147 = vset.pattern.permute.xlu0 0
        %1148 = vperm.xlu0 %1147, %v1062
        %v1149 = vpop.permute.xlu0 %1148
        %1152 = vset.pattern.permute.xlu0 0
        %1153 = vperm.xlu0 %1152, %v1063
        %v1154 = vpop.permute.xlu0 %1153
        %1157 = vset.pattern.permute.xlu0 0
        %1158 = vperm.xlu0 %1157, %v1064
        %v1159 = vpop.permute.xlu0 %1158
        %1162 = vset.pattern.permute.xlu0 0
        %1163 = vperm.xlu0 %1162, %v1065
        %v1164 = vpop.permute.xlu0 %1163
        %1167 = vset.pattern.permute.xlu0 0
        %1168 = vperm.xlu0 %1167, %v1066
        %v1169 = vpop.permute.xlu0 %1168
        %1172 = vset.pattern.permute.xlu0 0
        %1173 = vperm.xlu0 %1172, %v1067
        %v1174 = vpop.permute.xlu0 %1173
        %1177 = vset.pattern.permute.xlu0 0
        %1178 = vperm.xlu0 %1177, %v1068
        %v1179 = vpop.permute.xlu0 %1178
        %1182 = vset.pattern.permute.xlu0 0
        %1183 = vperm.xlu0 %1182, %v1069
        %v1184 = vpop.permute.xlu0 %1183
        %1187 = vset.pattern.permute.xlu0 0
        %1188 = vperm.xlu0 %1187, %v1070
        %v1189 = vpop.permute.xlu0 %1188
        %1192 = vset.pattern.permute.xlu0 0
        %1193 = vperm.xlu0 %1192, %v1071
        %v1194 = vpop.permute.xlu0 %1193
        %1197 = vset.pattern.permute.xlu0 0
        %1198 = vperm.xlu0 %1197, %v1072
        %v1199 = vpop.permute.xlu0 %1198
        %1202 = vset.pattern.permute.xlu0 0
        %1203 = vperm.xlu0 %1202, %v1073
        %v1204 = vpop.permute.xlu0 %1203
        %1207 = vset.pattern.permute.xlu0 0
        %1208 = vperm.xlu0 %1207, %v1074
        %v1209 = vpop.permute.xlu0 %1208
        %1212 = vset.pattern.permute.xlu0 0
        %1213 = vperm.xlu0 %1212, %v1075
        %v1214 = vpop.permute.xlu0 %1213
        %1217 = vset.pattern.permute.xlu0 0
        %1218 = vperm.xlu0 %1217, %v1076
        %v1219 = vpop.permute.xlu0 %1218
        %1222 = vset.pattern.permute.xlu0 0
        %1223 = vperm.xlu0 %1222, %v1077
        %v1224 = vpop.permute.xlu0 %1223
        %1227 = vset.pattern.permute.xlu0 0
        %1228 = vperm.xlu0 %1227, %v1078
        %v1229 = vpop.permute.xlu0 %1228
        %1232 = vset.pattern.permute.xlu0 0
        %1233 = vperm.xlu0 %1232, %v1079
        %v1234 = vpop.permute.xlu0 %1233
        %1237 = vset.pattern.permute.xlu0 0
        %1238 = vperm.xlu0 %1237, %v1080
        %v1239 = vpop.permute.xlu0 %1238
        %1242 = vset.pattern.permute.xlu0 0
        %1243 = vperm.xlu0 %1242, %v1081
        %v1244 = vpop.permute.xlu0 %1243
        %1247 = vset.pattern.permute.xlu0 0
        %1248 = vperm.xlu0 %1247, %v1082
        %v1249 = vpop.permute.xlu0 %1248
        %1252 = vset.pattern.permute.xlu0 0
        %1253 = vperm.xlu0 %1252, %v1083
        %v1254 = vpop.permute.xlu0 %1253
        %1257 = vset.pattern.permute.xlu0 0
        %1258 = vperm.xlu0 %1257, %v1084
        %v1259 = vpop.permute.xlu0 %1258
        %1262 = vset.pattern.permute.xlu0 0
        %1263 = vperm.xlu0 %1262, %v1085
        %v1264 = vpop.permute.xlu0 %1263
        %1267 = vset.pattern.permute.xlu0 0
        %1268 = vperm.xlu0 %1267, %v1086
        %v1269 = vpop.permute.xlu0 %1268
        %1272 = vset.pattern.permute.xlu0 0
        %1273 = vperm.xlu0 %1272, %v1087
        %v1274 = vpop.permute.xlu0 %1273
        %1277 = vset.pattern.permute.xlu0 0
        %1278 = vperm.xlu0 %1277, %v1088
        %v1279 = vpop.permute.xlu0 %1278
        %1282 = vset.pattern.permute.xlu0 0
        %1283 = vperm.xlu0 %1282, %v1089
        %v1284 = vpop.permute.xlu0 %1283
        %1287 = vset.pattern.permute.xlu0 0
        %1288 = vperm.xlu0 %1287, %v1090
        %v1289 = vpop.permute.xlu0 %1288
        %1292 = vset.pattern.permute.xlu0 0
        %1293 = vperm.xlu0 %1292, %v1091
        %v1294 = vpop.permute.xlu0 %1293
        %1297 = vset.pattern.permute.xlu0 0
        %1298 = vperm.xlu0 %1297, %v1092
        %v1299 = vpop.permute.xlu0 %1298
        %1302 = vset.pattern.permute.xlu0 0
        %1303 = vperm.xlu0 %1302, %v1093
        %v1304 = vpop.permute.xlu0 %1303
        %1307 = vset.pattern.permute.xlu0 0
        %1308 = vperm.xlu0 %1307, %v1094
        %v1309 = vpop.permute.xlu0 %1308
        %1312 = vset.pattern.permute.xlu0 0
        %1313 = vperm.xlu0 %1312, %v1095
        %v1314 = vpop.permute.xlu0 %1313
        %1317 = vset.pattern.permute.xlu0 0
        %1318 = vperm.xlu0 %1317, %v1096
        %v1319 = vpop.permute.xlu0 %1318
        %1322 = vset.pattern.permute.xlu0 0
        %1323 = vperm.xlu0 %1322, %v1097
        %v1324 = vpop.permute.xlu0 %1323
        %1327 = vset.pattern.permute.xlu0 0
        %1328 = vperm.xlu0 %1327, %v1098
        %v1329 = vpop.permute.xlu0 %1328
        %1332 = vset.pattern.permute.xlu0 0
        %1333 = vperm.xlu0 %1332, %v1099
        %v1334 = vpop.permute.xlu0 %1333
        %1337 = vset.pattern.permute.xlu0 0
        %1338 = vperm.xlu0 %1337, %v1100
        %v1339 = vpop.permute.xlu0 %1338
        %1342 = vset.pattern.permute.xlu0 0
        %1343 = vperm.xlu0 %1342, %v1101
        %v1344 = vpop.permute.xlu0 %1343
        %1347 = vset.pattern.permute.xlu0 0
        %1348 = vperm.xlu0 %1347, %v1102
        %v1349 = vpop.permute.xlu0 %1348
        %1352 = vset.pattern.permute.xlu0 0
        %1353 = vperm.xlu0 %1352, %v1103
        %v1354 = vpop.permute.xlu0 %1353
        %1357 = vset.pattern.permute.xlu0 0
        %1358 = vperm.xlu0 %1357, %v1104
        %v1359 = vpop.permute.xlu0 %1358
        %1362 = vset.pattern.permute.xlu0 0
        %1363 = vperm.xlu0 %1362, %v1105
        %v1364 = vpop.permute.xlu0 %1363
        %1367 = vset.pattern.permute.xlu0 0
        %1368 = vperm.xlu0 %1367, %v1106
        %v1369 = vpop.permute.xlu0 %1368
        %1372 = vset.pattern.permute.xlu0 0
        %1373 = vperm.xlu0 %1372, %v1107
        %v1374 = vpop.permute.xlu0 %1373
        %1377 = vset.pattern.permute.xlu0 0
        %1378 = vperm.xlu0 %1377, %v1108
        %v1379 = vpop.permute.xlu0 %1378
        %1382 = vset.pattern.permute.xlu0 0
        %1383 = vperm.xlu0 %1382, %v1109
        %v1384 = vpop.permute.xlu0 %1383
        %1387 = vset.pattern.permute.xlu0 0
        %1388 = vperm.xlu0 %1387, %v1110
        %v1389 = vpop.permute.xlu0 %1388
        %1392 = vset.pattern.permute.xlu0 0
        %1393 = vperm.xlu0 %1392, %v1111
        %v1394 = vpop.permute.xlu0 %1393
        %1397 = vset.pattern.permute.xlu0 0
        %1398 = vperm.xlu0 %1397, %v1112
        %v1399 = vpop.permute.xlu0 %1398
        %1402 = vset.pattern.permute.xlu0 0
        %1403 = vperm.xlu0 %1402, %v1113
        %v1404 = vpop.permute.xlu0 %1403
        %1407 = vset.pattern.permute.xlu0 0
        %1408 = vperm.xlu0 %1407, %v1114
        %v1409 = vpop.permute.xlu0 %1408
        %1412 = vset.pattern.permute.xlu0 0
        %1413 = vperm.xlu0 %1412, %v1115
        %v1414 = vpop.permute.xlu0 %1413
        %1417 = vset.pattern.permute.xlu0 0
        %1418 = vperm.xlu0 %1417, %v1116
        %v1419 = vpop.permute.xlu0 %1418
        %1422 = vset.pattern.permute.xlu0 0
        %1423 = vperm.xlu0 %1422, %v1117
        %v1424 = vpop.permute.xlu0 %1423
        %1427 = vset.pattern.permute.xlu0 0
        %1428 = vperm.xlu0 %1427, %v1118
        %v1429 = vpop.permute.xlu0 %1428
        %1432 = vset.pattern.permute.xlu0 0
        %1433 = vperm.xlu0 %1432, %v1119
        %v1434 = vpop.permute.xlu0 %1433
        %1437 = vset.pattern.permute.xlu0 0
        %1438 = vperm.xlu0 %1437, %v1120
        %v1439 = vpop.permute.xlu0 %1438
        %v1697 = vunpack.c.l.b16 %v703
        %v1698 = vunpack.c.h.b16 %v703
        %v1699 = vunpack.c.l.b16 %v704
        %v1700 = vunpack.c.h.b16 %v704
        %v1701 = vunpack.c.l.b16 %v705
        %v1702 = vunpack.c.h.b16 %v705
        %v1703 = vunpack.c.l.b16 %v706
        %v1704 = vunpack.c.l.b16 %v707
        %v1705 = vunpack.c.h.b16 %v707
        %v1706 = vunpack.c.l.b16 %v708
        %v1707 = vunpack.c.h.b16 %v708
        %v1708 = vunpack.c.l.b16 %v709
        %v1709 = vunpack.c.h.b16 %v709
        %v1710 = vunpack.c.l.b16 %v710
        %v1711 = vunpack.c.l.b16 %v711
        %v1712 = vunpack.c.h.b16 %v711
        %v1713 = vunpack.c.l.b16 %v712
        %v1714 = vunpack.c.h.b16 %v712
        %v1715 = vunpack.c.l.b16 %v713
        %v1716 = vunpack.c.h.b16 %v713
        %v1717 = vunpack.c.l.b16 %v714
        %v1718 = vunpack.c.l.b16 %v715
        %v1719 = vunpack.c.h.b16 %v715
        %v1720 = vunpack.c.l.b16 %v716
        %v1721 = vunpack.c.h.b16 %v716
        %v1722 = vunpack.c.l.b16 %v717
        %v1723 = vunpack.c.h.b16 %v717
        %v1724 = vunpack.c.l.b16 %v718
        %v1725 = vunpack.c.l.b16 %v719
        %v1726 = vunpack.c.h.b16 %v719
        %v1727 = vunpack.c.l.b16 %v720
        %v1728 = vunpack.c.h.b16 %v720
        %v1729 = vunpack.c.l.b16 %v721
        %v1730 = vunpack.c.h.b16 %v721
        %v1731 = vunpack.c.l.b16 %v722
        %v1732 = vunpack.c.l.b16 %v723
        %v1733 = vunpack.c.h.b16 %v723
        %v1734 = vunpack.c.l.b16 %v724
        %v1735 = vunpack.c.h.b16 %v724
        %v1736 = vunpack.c.l.b16 %v725
        %v1737 = vunpack.c.h.b16 %v725
        %v1738 = vunpack.c.l.b16 %v726
        %v1739 = vunpack.c.l.b16 %v727
        %v1740 = vunpack.c.h.b16 %v727
        %v1741 = vunpack.c.l.b16 %v728
        %v1742 = vunpack.c.h.b16 %v728
        %v1743 = vunpack.c.l.b16 %v729
        %v1744 = vunpack.c.h.b16 %v729
        %v1745 = vunpack.c.l.b16 %v730
        %v1746 = vunpack.c.l.b16 %v731
        %v1747 = vunpack.c.h.b16 %v731
        %v1748 = vunpack.c.l.b16 %v732
        %v1749 = vunpack.c.h.b16 %v732
        %v1750 = vunpack.c.l.b16 %v733
        %v1751 = vunpack.c.h.b16 %v733
        %v1752 = vunpack.c.l.b16 %v734
        %v1753 = vunpack.c.l.b16 %v735
        %v1754 = vunpack.c.h.b16 %v735
        %v1755 = vunpack.c.l.b16 %v736
        %v1756 = vunpack.c.h.b16 %v736
        %v1757 = vunpack.c.l.b16 %v737
        %v1758 = vunpack.c.h.b16 %v737
        %v1759 = vunpack.c.l.b16 %v738
        %v1760 = vunpack.c.l.b16 %v739
        %v1761 = vunpack.c.h.b16 %v739
        %v1762 = vunpack.c.l.b16 %v740
        %v1763 = vunpack.c.h.b16 %v740
        %v1764 = vunpack.c.l.b16 %v741
        %v1765 = vunpack.c.h.b16 %v741
        %v1766 = vunpack.c.l.b16 %v742
        %v1767 = vunpack.c.l.b16 %v743
        %v1768 = vunpack.c.h.b16 %v743
        %v1769 = vunpack.c.l.b16 %v744
        %v1770 = vunpack.c.h.b16 %v744
        %v1771 = vunpack.c.l.b16 %v745
        %v1772 = vunpack.c.h.b16 %v745
        %v1773 = vunpack.c.l.b16 %v746
        %v1774 = vunpack.c.l.b16 %v747
        %v1775 = vunpack.c.h.b16 %v747
        %v1776 = vunpack.c.l.b16 %v748
        %v1777 = vunpack.c.h.b16 %v748
        %v1778 = vunpack.c.l.b16 %v749
        %v1779 = vunpack.c.h.b16 %v749
        %v1780 = vunpack.c.l.b16 %v750
        %v1781 = vunpack.c.l.b16 %v751
        %v1782 = vunpack.c.h.b16 %v751
        %v1783 = vunpack.c.l.b16 %v752
        %v1784 = vunpack.c.h.b16 %v752
        %v1785 = vunpack.c.l.b16 %v753
        %v1786 = vunpack.c.h.b16 %v753
        %v1787 = vunpack.c.l.b16 %v754
        %v1788 = vunpack.c.l.b16 %v755
        %v1789 = vunpack.c.h.b16 %v755
        %v1790 = vunpack.c.l.b16 %v756
        %v1791 = vunpack.c.h.b16 %v756
        %v1792 = vunpack.c.l.b16 %v757
        %v1793 = vunpack.c.h.b16 %v757
        %v1794 = vunpack.c.l.b16 %v758
        %v1795 = vunpack.c.l.b16 %v759
        %v1796 = vunpack.c.h.b16 %v759
        %v1797 = vunpack.c.l.b16 %v760
        %v1798 = vunpack.c.h.b16 %v760
        %v1799 = vunpack.c.l.b16 %v761
        %v1800 = vunpack.c.h.b16 %v761
        %v1801 = vunpack.c.l.b16 %v762
        %v1802 = vunpack.c.l.b16 %v763
        %v1803 = vunpack.c.h.b16 %v763
        %v1804 = vunpack.c.l.b16 %v764
        %v1805 = vunpack.c.h.b16 %v764
        %v1806 = vunpack.c.l.b16 %v765
        %v1807 = vunpack.c.h.b16 %v765
        %v1808 = vunpack.c.l.b16 %v766
        %v1809 = vunpack.c.l.b16 %v767
        %v1810 = vunpack.c.h.b16 %v767
        %v1811 = vunpack.c.l.b16 %v768
        %v1812 = vunpack.c.h.b16 %v768
        %v1813 = vunpack.c.l.b16 %v769
        %v1814 = vunpack.c.h.b16 %v769
        %v1815 = vunpack.c.l.b16 %v770
        %v1816 = vunpack.c.l.b16 %v771
        %v1817 = vunpack.c.h.b16 %v771
        %v1818 = vunpack.c.l.b16 %v772
        %v1819 = vunpack.c.h.b16 %v772
        %v1820 = vunpack.c.l.b16 %v773
        %v1821 = vunpack.c.h.b16 %v773
        %v1822 = vunpack.c.l.b16 %v774
        %v1823 = vunpack.c.l.b16 %v775
        %v1824 = vunpack.c.h.b16 %v775
        %v1825 = vunpack.c.l.b16 %v776
        %v1826 = vunpack.c.h.b16 %v776
        %v1827 = vunpack.c.l.b16 %v777
        %v1828 = vunpack.c.h.b16 %v777
        %v1829 = vunpack.c.l.b16 %v778
        %v1830 = vunpack.c.l.b16 %v779
        %v1831 = vunpack.c.h.b16 %v779
        %v1832 = vunpack.c.l.b16 %v780
        %v1833 = vunpack.c.h.b16 %v780
        %v1834 = vunpack.c.l.b16 %v781
        %v1835 = vunpack.c.h.b16 %v781
        %v1836 = vunpack.c.l.b16 %v782
        %v1837 = vunpack.c.l.b16 %v783
        %v1838 = vunpack.c.h.b16 %v783
        %v1839 = vunpack.c.l.b16 %v784
        %v1840 = vunpack.c.h.b16 %v784
        %v1841 = vunpack.c.l.b16 %v785
        %v1842 = vunpack.c.h.b16 %v785
        %v1843 = vunpack.c.l.b16 %v786
        %v1844 = vunpack.c.l.b16 %v787
        %v1845 = vunpack.c.h.b16 %v787
        %v1846 = vunpack.c.l.b16 %v788
        %v1847 = vunpack.c.h.b16 %v788
        %v1848 = vunpack.c.l.b16 %v789
        %v1849 = vunpack.c.h.b16 %v789
        %v1850 = vunpack.c.l.b16 %v790
        %v1851 = vunpack.c.l.b16 %v791
        %v1852 = vunpack.c.h.b16 %v791
        %v1853 = vunpack.c.l.b16 %v792
        %v1854 = vunpack.c.h.b16 %v792
        %v1855 = vunpack.c.l.b16 %v793
        %v1856 = vunpack.c.h.b16 %v793
        %v1857 = vunpack.c.l.b16 %v794
        %v1858 = vunpack.c.l.b16 %v795
        %v1859 = vunpack.c.h.b16 %v795
        %v1860 = vunpack.c.l.b16 %v796
        %v1861 = vunpack.c.h.b16 %v796
        %v1862 = vunpack.c.l.b16 %v797
        %v1863 = vunpack.c.h.b16 %v797
        %v1864 = vunpack.c.l.b16 %v798
        %v1865 = vunpack.c.l.b16 %v799
        %v1866 = vunpack.c.h.b16 %v799
        %v1867 = vunpack.c.l.b16 %v800
        %v1868 = vunpack.c.h.b16 %v800
        %v1869 = vunpack.c.l.b16 %v801
        %v1870 = vunpack.c.h.b16 %v801
        %v1871 = vunpack.c.l.b16 %v802
        %v1872 = vunpack.c.l.b16 %v803
        %v1873 = vunpack.c.h.b16 %v803
        %v1874 = vunpack.c.l.b16 %v804
        %v1875 = vunpack.c.h.b16 %v804
        %v1876 = vunpack.c.l.b16 %v805
        %v1877 = vunpack.c.h.b16 %v805
        %v1878 = vunpack.c.l.b16 %v806
        %v1879 = vunpack.c.l.b16 %v807
        %v1880 = vunpack.c.h.b16 %v807
        %v1881 = vunpack.c.l.b16 %v808
        %v1882 = vunpack.c.h.b16 %v808
        %v1883 = vunpack.c.l.b16 %v809
        %v1884 = vunpack.c.h.b16 %v809
        %v1885 = vunpack.c.l.b16 %v810
        %v1886 = vunpack.c.l.b16 %v811
        %v1887 = vunpack.c.h.b16 %v811
        %v1888 = vunpack.c.l.b16 %v812
        %v1889 = vunpack.c.h.b16 %v812
        %v1890 = vunpack.c.l.b16 %v813
        %v1891 = vunpack.c.h.b16 %v813
        %v1892 = vunpack.c.l.b16 %v814
        %v1893 = vunpack.c.l.b16 %v815
        %v1894 = vunpack.c.h.b16 %v815
        %v1895 = vunpack.c.l.b16 %v816
        %v1896 = vunpack.c.h.b16 %v816
        %v1897 = vunpack.c.l.b16 %v817
        %v1898 = vunpack.c.h.b16 %v817
        %v1899 = vunpack.c.l.b16 %v818
        %v1900 = vunpack.c.l.b16 %v819
        %v1901 = vunpack.c.h.b16 %v819
        %v1902 = vunpack.c.l.b16 %v820
        %v1903 = vunpack.c.h.b16 %v820
        %v1904 = vunpack.c.l.b16 %v821
        %v1905 = vunpack.c.h.b16 %v821
        %v1906 = vunpack.c.l.b16 %v822
        %v1907 = vunpack.c.l.b16 %v823
        %v1908 = vunpack.c.h.b16 %v823
        %v1909 = vunpack.c.l.b16 %v824
        %v1910 = vunpack.c.h.b16 %v824
        %v1911 = vunpack.c.l.b16 %v825
        %v1912 = vunpack.c.h.b16 %v825
        %v1913 = vunpack.c.l.b16 %v826
        %v1914 = vunpack.c.l.b16 %v827
        %v1915 = vunpack.c.h.b16 %v827
        %v1916 = vunpack.c.l.b16 %v828
        %v1917 = vunpack.c.h.b16 %v828
        %v1918 = vunpack.c.l.b16 %v829
        %v1919 = vunpack.c.h.b16 %v829
        %v1920 = vunpack.c.l.b16 %v830
        %v1921 = vunpack.c.l.b16 %v831
        %v1922 = vunpack.c.h.b16 %v831
        %v1923 = vunpack.c.l.b16 %v832
        %v1924 = vunpack.c.h.b16 %v832
        %v1925 = vunpack.c.l.b16 %v833
        %v1926 = vunpack.c.h.b16 %v833
        %v1927 = vunpack.c.l.b16 %v834
        %v1928 = vunpack.c.l.b16 %v835
        %v1929 = vunpack.c.h.b16 %v835
        %v1930 = vunpack.c.l.b16 %v836
        %v1931 = vunpack.c.h.b16 %v836
        %v1932 = vunpack.c.l.b16 %v837
        %v1933 = vunpack.c.h.b16 %v837
        %v1934 = vunpack.c.l.b16 %v838
        %v1935 = vunpack.c.l.b16 %v839
        %v1936 = vunpack.c.h.b16 %v839
        %v1937 = vunpack.c.l.b16 %v840
        %v1938 = vunpack.c.h.b16 %v840
        %v1939 = vunpack.c.l.b16 %v841
        %v1940 = vunpack.c.h.b16 %v841
        %v1941 = vunpack.c.l.b16 %v842
        %v1942 = vunpack.c.l.b16 %v843
        %v1943 = vunpack.c.h.b16 %v843
        %v1944 = vunpack.c.l.b16 %v844
        %v1945 = vunpack.c.h.b16 %v844
        %v1946 = vunpack.c.l.b16 %v845
        %v1947 = vunpack.c.h.b16 %v845
        %v1948 = vunpack.c.l.b16 %v846
        %v1949 = vunpack.c.l.b16 %v847
        %v1950 = vunpack.c.h.b16 %v847
        %v1951 = vunpack.c.l.b16 %v848
        %v1952 = vunpack.c.h.b16 %v848
        %v1953 = vunpack.c.l.b16 %v849
        %v1954 = vunpack.c.h.b16 %v849
        %v1955 = vunpack.c.l.b16 %v850
        %v1956 = vunpack.c.l.b16 %v851
        %v1957 = vunpack.c.h.b16 %v851
        %v1958 = vunpack.c.l.b16 %v852
        %v1959 = vunpack.c.h.b16 %v852
        %v1960 = vunpack.c.l.b16 %v853
        %v1961 = vunpack.c.h.b16 %v853
        %v1962 = vunpack.c.l.b16 %v854
        %v1963 = vunpack.c.l.b16 %v855
        %v1964 = vunpack.c.h.b16 %v855
        %v1965 = vunpack.c.l.b16 %v856
        %v1966 = vunpack.c.h.b16 %v856
        %v1967 = vunpack.c.l.b16 %v857
        %v1968 = vunpack.c.h.b16 %v857
        %v1969 = vunpack.c.l.b16 %v858
        %v1970 = vunpack.c.l.b16 %v859
        %v1971 = vunpack.c.h.b16 %v859
        %v1972 = vunpack.c.l.b16 %v860
        %v1973 = vunpack.c.h.b16 %v860
        %v1974 = vunpack.c.l.b16 %v861
        %v1975 = vunpack.c.h.b16 %v861
        %v1976 = vunpack.c.l.b16 %v862
        %v1977 = vunpack.c.l.b16 %v863
        %v1978 = vunpack.c.h.b16 %v863
        %v1979 = vunpack.c.l.b16 %v864
        %v1980 = vunpack.c.h.b16 %v864
        %v1981 = vunpack.c.l.b16 %v865
        %v1982 = vunpack.c.h.b16 %v865
        %v1983 = vunpack.c.l.b16 %v866
        %v1984 = vunpack.c.l.b16 %v867
        %v1985 = vunpack.c.h.b16 %v867
        %v1986 = vunpack.c.l.b16 %v868
        %v1987 = vunpack.c.h.b16 %v868
        %v1988 = vunpack.c.l.b16 %v869
        %v1989 = vunpack.c.h.b16 %v869
        %v1990 = vunpack.c.l.b16 %v870
        %v1991 = vunpack.c.l.b16 %v871
        %v1992 = vunpack.c.h.b16 %v871
        %v1993 = vunpack.c.l.b16 %v872
        %v1994 = vunpack.c.h.b16 %v872
        %v1995 = vunpack.c.l.b16 %v873
        %v1996 = vunpack.c.h.b16 %v873
        %v1997 = vunpack.c.l.b16 %v874
        %v1998 = vunpack.c.l.b16 %v875
        %v1999 = vunpack.c.h.b16 %v875
        %v2000 = vunpack.c.l.b16 %v876
        %v2001 = vunpack.c.h.b16 %v876
        %v2002 = vunpack.c.l.b16 %v877
        %v2003 = vunpack.c.h.b16 %v877
        %v2004 = vunpack.c.l.b16 %v878
        %v2005 = vunpack.c.l.b16 %v879
        %v2006 = vunpack.c.h.b16 %v879
        %v2007 = vunpack.c.l.b16 %v880
        %v2008 = vunpack.c.h.b16 %v880
        %v2009 = vunpack.c.l.b16 %v881
        %v2010 = vunpack.c.h.b16 %v881
        %v2011 = vunpack.c.l.b16 %v882
        %v2012 = vunpack.c.l.b16 %v883
        %v2013 = vunpack.c.h.b16 %v883
        %v2014 = vunpack.c.l.b16 %v884
        %v2015 = vunpack.c.h.b16 %v884
        %v2016 = vunpack.c.l.b16 %v885
        %v2017 = vunpack.c.h.b16 %v885
        %v2018 = vunpack.c.l.b16 %v886
        %v2019 = vunpack.c.l.b16 %v887
        %v2020 = vunpack.c.h.b16 %v887
        %v2021 = vunpack.c.l.b16 %v888
        %v2022 = vunpack.c.h.b16 %v888
        %v2023 = vunpack.c.l.b16 %v889
        %v2024 = vunpack.c.h.b16 %v889
        %v2025 = vunpack.c.l.b16 %v890
        %v2026 = vunpack.c.l.b16 %v891
        %v2027 = vunpack.c.h.b16 %v891
        %v2028 = vunpack.c.l.b16 %v892
        %v2029 = vunpack.c.h.b16 %v892
        %v2030 = vunpack.c.l.b16 %v893
        %v2031 = vunpack.c.h.b16 %v893
        %v2032 = vunpack.c.l.b16 %v894
        %v2033 = vunpack.c.l.b16 %v895
        %v2034 = vunpack.c.h.b16 %v895
        %v2035 = vunpack.c.l.b16 %v896
        %v2036 = vunpack.c.h.b16 %v896
        %v2037 = vunpack.c.l.b16 %v897
        %v2038 = vunpack.c.h.b16 %v897
        %v2039 = vunpack.c.l.b16 %v898
        %v2040 = vunpack.c.l.b16 %v899
        %v2041 = vunpack.c.h.b16 %v899
        %v2042 = vunpack.c.l.b16 %v900
        %v2043 = vunpack.c.h.b16 %v900
        %v2044 = vunpack.c.l.b16 %v901
        %v2045 = vunpack.c.h.b16 %v901
        %v2046 = vunpack.c.l.b16 %v902
        %v2047 = vunpack.c.l.b16 %v903
        %v2048 = vunpack.c.h.b16 %v903
        %v2049 = vunpack.c.l.b16 %v904
        %v2050 = vunpack.c.h.b16 %v904
        %v2051 = vunpack.c.l.b16 %v905
        %v2052 = vunpack.c.h.b16 %v905
        %v2053 = vunpack.c.l.b16 %v906
        %v2054 = vunpack.c.l.b16 %v907
        %v2055 = vunpack.c.h.b16 %v907
        %v2056 = vunpack.c.l.b16 %v908
        %v2057 = vunpack.c.h.b16 %v908
        %v2058 = vunpack.c.l.b16 %v909
        %v2059 = vunpack.c.h.b16 %v909
        %v2060 = vunpack.c.l.b16 %v910
        %v2061 = vunpack.c.l.b16 %v911
        %v2062 = vunpack.c.h.b16 %v911
        %v2063 = vunpack.c.l.b16 %v912
        %v2064 = vunpack.c.h.b16 %v912
        %v2065 = vunpack.c.l.b16 %v913
        %v2066 = vunpack.c.h.b16 %v913
        %v2067 = vunpack.c.l.b16 %v914
        %v2068 = vunpack.c.l.b16 %v915
        %v2069 = vunpack.c.h.b16 %v915
        %v2070 = vunpack.c.l.b16 %v916
        %v2071 = vunpack.c.h.b16 %v916
        %v2072 = vunpack.c.l.b16 %v917
        %v2073 = vunpack.c.h.b16 %v917
        %v2074 = vunpack.c.l.b16 %v918
        %v2075 = vunpack.c.l.b16 %v919
        %v2076 = vunpack.c.h.b16 %v919
        %v2077 = vunpack.c.l.b16 %v920
        %v2078 = vunpack.c.h.b16 %v920
        %v2079 = vunpack.c.l.b16 %v921
        %v2080 = vunpack.c.h.b16 %v921
        %v2081 = vunpack.c.l.b16 %v922
        %v2082 = vunpack.c.l.b16 %v923
        %v2083 = vunpack.c.h.b16 %v923
        %v2084 = vunpack.c.l.b16 %v924
        %v2085 = vunpack.c.h.b16 %v924
        %v2086 = vunpack.c.l.b16 %v925
        %v2087 = vunpack.c.h.b16 %v925
        %v2088 = vunpack.c.l.b16 %v926
        %v2089 = vunpack.c.l.b16 %v927
        %v2090 = vunpack.c.h.b16 %v927
        %v2091 = vunpack.c.l.b16 %v928
        %v2092 = vunpack.c.h.b16 %v928
        %v2093 = vunpack.c.l.b16 %v929
        %v2094 = vunpack.c.h.b16 %v929
        %v2095 = vunpack.c.l.b16 %v930
        %v2096 = vunpack.c.l.b16 %v931
        %v2097 = vunpack.c.h.b16 %v931
        %v2098 = vunpack.c.l.b16 %v932
        %v2099 = vunpack.c.h.b16 %v932
        %v2100 = vunpack.c.l.b16 %v933
        %v2101 = vunpack.c.h.b16 %v933
        %v2102 = vunpack.c.l.b16 %v934
        %v2103 = vunpack.c.l.b16 %v935
        %v2104 = vunpack.c.h.b16 %v935
        %v2105 = vunpack.c.l.b16 %v936
        %v2106 = vunpack.c.h.b16 %v936
        %v2107 = vunpack.c.l.b16 %v937
        %v2108 = vunpack.c.h.b16 %v937
        %v2109 = vunpack.c.l.b16 %v938
        %v2110 = vunpack.c.l.b16 %v939
        %v2111 = vunpack.c.h.b16 %v939
        %v2112 = vunpack.c.l.b16 %v940
        %v2113 = vunpack.c.h.b16 %v940
        %v2114 = vunpack.c.l.b16 %v941
        %v2115 = vunpack.c.h.b16 %v941
        %v2116 = vunpack.c.l.b16 %v942
        %v2117 = vunpack.c.l.b16 %v943
        %v2118 = vunpack.c.h.b16 %v943
        %v2119 = vunpack.c.l.b16 %v944
        %v2120 = vunpack.c.h.b16 %v944
        %v2121 = vunpack.c.l.b16 %v945
        %v2122 = vunpack.c.h.b16 %v945
        %v2123 = vunpack.c.l.b16 %v946
        %v2124 = vunpack.c.l.b16 %v947
        %v2125 = vunpack.c.h.b16 %v947
        %v2126 = vunpack.c.l.b16 %v948
        %v2127 = vunpack.c.h.b16 %v948
        %v2128 = vunpack.c.l.b16 %v949
        %v2129 = vunpack.c.h.b16 %v949
        %v2130 = vunpack.c.l.b16 %v950
        %v2131 = vunpack.c.l.b16 %v951
        %v2132 = vunpack.c.h.b16 %v951
        %v2133 = vunpack.c.l.b16 %v952
        %v2134 = vunpack.c.h.b16 %v952
        %v2135 = vunpack.c.l.b16 %v953
        %v2136 = vunpack.c.h.b16 %v953
        %v2137 = vunpack.c.l.b16 %v954
        %v2138 = vunpack.c.l.b16 %v955
        %v2139 = vunpack.c.h.b16 %v955
        %v2140 = vunpack.c.l.b16 %v956
        %v2141 = vunpack.c.h.b16 %v956
        %v2142 = vunpack.c.l.b16 %v957
        %v2143 = vunpack.c.h.b16 %v957
        %v2144 = vunpack.c.l.b16 %v958
        %v2145 = vpack.c.b16 %v1704, %v1697
        %v2146 = vpack.c.b16 %v1705, %v1698
        %v2147 = vpack.c.b16 %v1706, %v1699
        %v2148 = vpack.c.b16 %v1707, %v1700
        %v2149 = vpack.c.b16 %v1708, %v1701
        %v2150 = vpack.c.b16 %v1709, %v1702
        %v2151 = vpack.c.b16 %v1710, %v1703
        %v2152 = vpack.c.b16 %v1718, %v1711
        %v2153 = vpack.c.b16 %v1719, %v1712
        %v2154 = vpack.c.b16 %v1720, %v1713
        %v2155 = vpack.c.b16 %v1721, %v1714
        %v2156 = vpack.c.b16 %v1722, %v1715
        %v2157 = vpack.c.b16 %v1723, %v1716
        %v2158 = vpack.c.b16 %v1724, %v1717
        %v2159 = vpack.c.b16 %v1732, %v1725
        %v2160 = vpack.c.b16 %v1733, %v1726
        %v2161 = vpack.c.b16 %v1734, %v1727
        %v2162 = vpack.c.b16 %v1735, %v1728
        %v2163 = vpack.c.b16 %v1736, %v1729
        %v2164 = vpack.c.b16 %v1737, %v1730
        %v2165 = vpack.c.b16 %v1738, %v1731
        %v2166 = vpack.c.b16 %v1746, %v1739
        %v2167 = vpack.c.b16 %v1747, %v1740
        %v2168 = vpack.c.b16 %v1748, %v1741
        %v2169 = vpack.c.b16 %v1749, %v1742
        %v2170 = vpack.c.b16 %v1750, %v1743
        %v2171 = vpack.c.b16 %v1751, %v1744
        %v2172 = vpack.c.b16 %v1752, %v1745
        %v2173 = vpack.c.b16 %v1760, %v1753
        %v2174 = vpack.c.b16 %v1761, %v1754
        %v2175 = vpack.c.b16 %v1762, %v1755
        %v2176 = vpack.c.b16 %v1763, %v1756
        %v2177 = vpack.c.b16 %v1764, %v1757
        %v2178 = vpack.c.b16 %v1765, %v1758
        %v2179 = vpack.c.b16 %v1766, %v1759
        %v2180 = vpack.c.b16 %v1774, %v1767
        %v2181 = vpack.c.b16 %v1775, %v1768
        %v2182 = vpack.c.b16 %v1776, %v1769
        %v2183 = vpack.c.b16 %v1777, %v1770
        %v2184 = vpack.c.b16 %v1778, %v1771
        %v2185 = vpack.c.b16 %v1779, %v1772
        %v2186 = vpack.c.b16 %v1780, %v1773
        %v2187 = vpack.c.b16 %v1788, %v1781
        %v2188 = vpack.c.b16 %v1789, %v1782
        %v2189 = vpack.c.b16 %v1790, %v1783
        %v2190 = vpack.c.b16 %v1791, %v1784
        %v2191 = vpack.c.b16 %v1792, %v1785
        %v2192 = vpack.c.b16 %v1793, %v1786
        %v2193 = vpack.c.b16 %v1794, %v1787
        %v2194 = vpack.c.b16 %v1802, %v1795
        %v2195 = vpack.c.b16 %v1803, %v1796
        %v2196 = vpack.c.b16 %v1804, %v1797
        %v2197 = vpack.c.b16 %v1805, %v1798
        %v2198 = vpack.c.b16 %v1806, %v1799
        %v2199 = vpack.c.b16 %v1807, %v1800
        %v2200 = vpack.c.b16 %v1808, %v1801
        %v2201 = vpack.c.b16 %v1816, %v1809
        %v2202 = vpack.c.b16 %v1817, %v1810
        %v2203 = vpack.c.b16 %v1818, %v1811
        %v2204 = vpack.c.b16 %v1819, %v1812
        %v2205 = vpack.c.b16 %v1820, %v1813
        %v2206 = vpack.c.b16 %v1821, %v1814
        %v2207 = vpack.c.b16 %v1822, %v1815
        %v2208 = vpack.c.b16 %v1830, %v1823
        %v2209 = vpack.c.b16 %v1831, %v1824
        %v2210 = vpack.c.b16 %v1832, %v1825
        %v2211 = vpack.c.b16 %v1833, %v1826
        %v2212 = vpack.c.b16 %v1834, %v1827
        %v2213 = vpack.c.b16 %v1835, %v1828
        %v2214 = vpack.c.b16 %v1836, %v1829
        %v2215 = vpack.c.b16 %v1844, %v1837
        %v2216 = vpack.c.b16 %v1845, %v1838
        %v2217 = vpack.c.b16 %v1846, %v1839
        %v2218 = vpack.c.b16 %v1847, %v1840
        %v2219 = vpack.c.b16 %v1848, %v1841
        %v2220 = vpack.c.b16 %v1849, %v1842
        %v2221 = vpack.c.b16 %v1850, %v1843
        %v2222 = vpack.c.b16 %v1858, %v1851
        %v2223 = vpack.c.b16 %v1859, %v1852
        %v2224 = vpack.c.b16 %v1860, %v1853
        %v2225 = vpack.c.b16 %v1861, %v1854
        %v2226 = vpack.c.b16 %v1862, %v1855
        %v2227 = vpack.c.b16 %v1863, %v1856
        %v2228 = vpack.c.b16 %v1864, %v1857
        %v2229 = vpack.c.b16 %v1872, %v1865
        %v2230 = vpack.c.b16 %v1873, %v1866
        %v2231 = vpack.c.b16 %v1874, %v1867
        %v2232 = vpack.c.b16 %v1875, %v1868
        %v2233 = vpack.c.b16 %v1876, %v1869
        %v2234 = vpack.c.b16 %v1877, %v1870
        %v2235 = vpack.c.b16 %v1878, %v1871
        %v2236 = vpack.c.b16 %v1886, %v1879
        %v2237 = vpack.c.b16 %v1887, %v1880
        %v2238 = vpack.c.b16 %v1888, %v1881
        %v2239 = vpack.c.b16 %v1889, %v1882
        %v2240 = vpack.c.b16 %v1890, %v1883
        %v2241 = vpack.c.b16 %v1891, %v1884
        %v2242 = vpack.c.b16 %v1892, %v1885
        %v2243 = vpack.c.b16 %v1900, %v1893
        %v2244 = vpack.c.b16 %v1901, %v1894
        %v2245 = vpack.c.b16 %v1902, %v1895
        %v2246 = vpack.c.b16 %v1903, %v1896
        %v2247 = vpack.c.b16 %v1904, %v1897
        %v2248 = vpack.c.b16 %v1905, %v1898
        %v2249 = vpack.c.b16 %v1906, %v1899
        %v2250 = vpack.c.b16 %v1914, %v1907
        %v2251 = vpack.c.b16 %v1915, %v1908
        %v2252 = vpack.c.b16 %v1916, %v1909
        %v2253 = vpack.c.b16 %v1917, %v1910
        %v2254 = vpack.c.b16 %v1918, %v1911
        %v2255 = vpack.c.b16 %v1919, %v1912
        %v2256 = vpack.c.b16 %v1920, %v1913
        %v2257 = vpack.c.b16 %v1928, %v1921
        %v2258 = vpack.c.b16 %v1929, %v1922
        %v2259 = vpack.c.b16 %v1930, %v1923
        %v2260 = vpack.c.b16 %v1931, %v1924
        %v2261 = vpack.c.b16 %v1932, %v1925
        %v2262 = vpack.c.b16 %v1933, %v1926
        %v2263 = vpack.c.b16 %v1934, %v1927
        %v2264 = vpack.c.b16 %v1942, %v1935
        %v2265 = vpack.c.b16 %v1943, %v1936
        %v2266 = vpack.c.b16 %v1944, %v1937
        %v2267 = vpack.c.b16 %v1945, %v1938
        %v2268 = vpack.c.b16 %v1946, %v1939
        %v2269 = vpack.c.b16 %v1947, %v1940
        %v2270 = vpack.c.b16 %v1948, %v1941
        %v2271 = vpack.c.b16 %v1956, %v1949
        %v2272 = vpack.c.b16 %v1957, %v1950
        %v2273 = vpack.c.b16 %v1958, %v1951
        %v2274 = vpack.c.b16 %v1959, %v1952
        %v2275 = vpack.c.b16 %v1960, %v1953
        %v2276 = vpack.c.b16 %v1961, %v1954
        %v2277 = vpack.c.b16 %v1962, %v1955
        %v2278 = vpack.c.b16 %v1970, %v1963
        %v2279 = vpack.c.b16 %v1971, %v1964
        %v2280 = vpack.c.b16 %v1972, %v1965
        %v2281 = vpack.c.b16 %v1973, %v1966
        %v2282 = vpack.c.b16 %v1974, %v1967
        %v2283 = vpack.c.b16 %v1975, %v1968
        %v2284 = vpack.c.b16 %v1976, %v1969
        %v2285 = vpack.c.b16 %v1984, %v1977
        %v2286 = vpack.c.b16 %v1985, %v1978
        %v2287 = vpack.c.b16 %v1986, %v1979
        %v2288 = vpack.c.b16 %v1987, %v1980
        %v2289 = vpack.c.b16 %v1988, %v1981
        %v2290 = vpack.c.b16 %v1989, %v1982
        %v2291 = vpack.c.b16 %v1990, %v1983
        %v2292 = vpack.c.b16 %v1998, %v1991
        %v2293 = vpack.c.b16 %v1999, %v1992
        %v2294 = vpack.c.b16 %v2000, %v1993
        %v2295 = vpack.c.b16 %v2001, %v1994
        %v2296 = vpack.c.b16 %v2002, %v1995
        %v2297 = vpack.c.b16 %v2003, %v1996
        %v2298 = vpack.c.b16 %v2004, %v1997
        %v2299 = vpack.c.b16 %v2012, %v2005
        %v2300 = vpack.c.b16 %v2013, %v2006
        %v2301 = vpack.c.b16 %v2014, %v2007
        %v2302 = vpack.c.b16 %v2015, %v2008
        %v2303 = vpack.c.b16 %v2016, %v2009
        %v2304 = vpack.c.b16 %v2017, %v2010
        %v2305 = vpack.c.b16 %v2018, %v2011
        %v2306 = vpack.c.b16 %v2026, %v2019
        %v2307 = vpack.c.b16 %v2027, %v2020
        %v2308 = vpack.c.b16 %v2028, %v2021
        %v2309 = vpack.c.b16 %v2029, %v2022
        %v2310 = vpack.c.b16 %v2030, %v2023
        %v2311 = vpack.c.b16 %v2031, %v2024
        %v2312 = vpack.c.b16 %v2032, %v2025
        %v2313 = vpack.c.b16 %v2040, %v2033
        %v2314 = vpack.c.b16 %v2041, %v2034
        %v2315 = vpack.c.b16 %v2042, %v2035
        %v2316 = vpack.c.b16 %v2043, %v2036
        %v2317 = vpack.c.b16 %v2044, %v2037
        %v2318 = vpack.c.b16 %v2045, %v2038
        %v2319 = vpack.c.b16 %v2046, %v2039
        %v2320 = vpack.c.b16 %v2054, %v2047
        %v2321 = vpack.c.b16 %v2055, %v2048
        %v2322 = vpack.c.b16 %v2056, %v2049
        %v2323 = vpack.c.b16 %v2057, %v2050
        %v2324 = vpack.c.b16 %v2058, %v2051
        %v2325 = vpack.c.b16 %v2059, %v2052
        %v2326 = vpack.c.b16 %v2060, %v2053
        %v2327 = vpack.c.b16 %v2068, %v2061
        %v2328 = vpack.c.b16 %v2069, %v2062
        %v2329 = vpack.c.b16 %v2070, %v2063
        %v2330 = vpack.c.b16 %v2071, %v2064
        %v2331 = vpack.c.b16 %v2072, %v2065
        %v2332 = vpack.c.b16 %v2073, %v2066
        %v2333 = vpack.c.b16 %v2074, %v2067
        %v2334 = vpack.c.b16 %v2082, %v2075
        %v2335 = vpack.c.b16 %v2083, %v2076
        %v2336 = vpack.c.b16 %v2084, %v2077
        %v2337 = vpack.c.b16 %v2085, %v2078
        %v2338 = vpack.c.b16 %v2086, %v2079
        %v2339 = vpack.c.b16 %v2087, %v2080
        %v2340 = vpack.c.b16 %v2088, %v2081
        %v2341 = vpack.c.b16 %v2096, %v2089
        %v2342 = vpack.c.b16 %v2097, %v2090
        %v2343 = vpack.c.b16 %v2098, %v2091
        %v2344 = vpack.c.b16 %v2099, %v2092
        %v2345 = vpack.c.b16 %v2100, %v2093
        %v2346 = vpack.c.b16 %v2101, %v2094
        %v2347 = vpack.c.b16 %v2102, %v2095
        %v2348 = vpack.c.b16 %v2110, %v2103
        %v2349 = vpack.c.b16 %v2111, %v2104
        %v2350 = vpack.c.b16 %v2112, %v2105
        %v2351 = vpack.c.b16 %v2113, %v2106
        %v2352 = vpack.c.b16 %v2114, %v2107
        %v2353 = vpack.c.b16 %v2115, %v2108
        %v2354 = vpack.c.b16 %v2116, %v2109
        %v2355 = vpack.c.b16 %v2124, %v2117
        %v2356 = vpack.c.b16 %v2125, %v2118
        %v2357 = vpack.c.b16 %v2126, %v2119
        %v2358 = vpack.c.b16 %v2127, %v2120
        %v2359 = vpack.c.b16 %v2128, %v2121
        %v2360 = vpack.c.b16 %v2129, %v2122
        %v2361 = vpack.c.b16 %v2130, %v2123
        %v2362 = vpack.c.b16 %v2138, %v2131
        %v2363 = vpack.c.b16 %v2139, %v2132
        %v2364 = vpack.c.b16 %v2140, %v2133
        %v2365 = vpack.c.b16 %v2141, %v2134
        %v2366 = vpack.c.b16 %v2142, %v2135
        %v2367 = vpack.c.b16 %v2143, %v2136
        %v2368 = vpack.c.b16 %v2144, %v2137
        %v2659 = vunpack.c.l.b16 %v959
        %v2660 = vunpack.c.h.b16 %v959
        %v2661 = vunpack.c.l.b16 %v960
        %v2662 = vunpack.c.h.b16 %v960
        %v2663 = vunpack.c.l.b16 %v961
        %v2664 = vunpack.c.h.b16 %v961
        %v2665 = vunpack.c.l.b16 %v962
        %v2666 = vunpack.c.h.b16 %v962
        %v2667 = vunpack.c.l.b16 %v963
        %v2668 = vunpack.c.h.b16 %v963
        %v2669 = vunpack.c.l.b16 %v964
        %v2670 = vunpack.c.h.b16 %v964
        %v2671 = vunpack.c.l.b16 %v965
        %v2672 = vunpack.c.h.b16 %v965
        %v2673 = vunpack.c.l.b16 %v966
        %v2674 = vunpack.c.h.b16 %v966
        %v2675 = vunpack.c.l.b16 %v967
        %v2676 = vunpack.c.h.b16 %v967
        %v2677 = vunpack.c.l.b16 %v968
        %v2678 = vunpack.c.h.b16 %v968
        %v2679 = vunpack.c.l.b16 %v969
        %v2680 = vunpack.c.h.b16 %v969
        %v2681 = vunpack.c.l.b16 %v970
        %v2682 = vunpack.c.h.b16 %v970
        %v2683 = vunpack.c.l.b16 %v971
        %v2684 = vunpack.c.h.b16 %v971
        %v2685 = vunpack.c.l.b16 %v972
        %v2686 = vunpack.c.h.b16 %v972
        %v2687 = vunpack.c.l.b16 %v973
        %v2688 = vunpack.c.h.b16 %v973
        %v2689 = vunpack.c.l.b16 %v974
        %v2690 = vunpack.c.h.b16 %v974
        %v2691 = vunpack.c.l.b16 %v975
        %v2692 = vunpack.c.h.b16 %v975
        %v2693 = vunpack.c.l.b16 %v976
        %v2694 = vunpack.c.h.b16 %v976
        %v2695 = vunpack.c.l.b16 %v977
        %v2696 = vunpack.c.h.b16 %v977
        %v2697 = vunpack.c.l.b16 %v978
        %v2698 = vunpack.c.h.b16 %v978
        %v2699 = vunpack.c.l.b16 %v979
        %v2700 = vunpack.c.h.b16 %v979
        %v2701 = vunpack.c.l.b16 %v980
        %v2702 = vunpack.c.h.b16 %v980
        %v2703 = vunpack.c.l.b16 %v981
        %v2704 = vunpack.c.h.b16 %v981
        %v2705 = vunpack.c.l.b16 %v982
        %v2706 = vunpack.c.h.b16 %v982
        %v2707 = vunpack.c.l.b16 %v983
        %v2708 = vunpack.c.h.b16 %v983
        %v2709 = vunpack.c.l.b16 %v984
        %v2710 = vunpack.c.h.b16 %v984
        %v2711 = vunpack.c.l.b16 %v985
        %v2712 = vunpack.c.h.b16 %v985
        %v2713 = vunpack.c.l.b16 %v986
        %v2714 = vunpack.c.h.b16 %v986
        %v2715 = vunpack.c.l.b16 %v987
        %v2716 = vunpack.c.h.b16 %v987
        %v2717 = vunpack.c.l.b16 %v988
        %v2718 = vunpack.c.h.b16 %v988
        %v2719 = vunpack.c.l.b16 %v989
        %v2720 = vunpack.c.h.b16 %v989
        %v2721 = vunpack.c.l.b16 %v990
        %v2722 = vunpack.c.h.b16 %v990
        %v2723 = vunpack.c.l.b16 %v991
        %v2724 = vunpack.c.h.b16 %v991
        %v2725 = vunpack.c.l.b16 %v992
        %v2726 = vunpack.c.h.b16 %v992
        %v2727 = vunpack.c.l.b16 %v993
        %v2728 = vunpack.c.h.b16 %v993
        %v2729 = vunpack.c.l.b16 %v994
        %v2730 = vunpack.c.h.b16 %v994
        %v2731 = vunpack.c.l.b16 %v995
        %v2732 = vunpack.c.h.b16 %v995
        %v2733 = vunpack.c.l.b16 %v996
        %v2734 = vunpack.c.h.b16 %v996
        %v2735 = vunpack.c.l.b16 %v997
        %v2736 = vunpack.c.h.b16 %v997
        %v2737 = vunpack.c.l.b16 %v998
        %v2738 = vunpack.c.h.b16 %v998
        %v2739 = vunpack.c.l.b16 %v999
        %v2740 = vunpack.c.h.b16 %v999
        %v2741 = vunpack.c.l.b16 %v1000
        %v2742 = vunpack.c.h.b16 %v1000
        %v2743 = vunpack.c.l.b16 %v1001
        %v2744 = vunpack.c.h.b16 %v1001
        %v2745 = vunpack.c.l.b16 %v1002
        %v2746 = vunpack.c.h.b16 %v1002
        %v2747 = vunpack.c.l.b16 %v1003
        %v2748 = vunpack.c.h.b16 %v1003
        %v2749 = vunpack.c.l.b16 %v1004
        %v2750 = vunpack.c.h.b16 %v1004
        %v2751 = vunpack.c.l.b16 %v1005
        %v2752 = vunpack.c.h.b16 %v1005
        %v2753 = vunpack.c.l.b16 %v1006
        %v2754 = vunpack.c.h.b16 %v1006
        %v2755 = vunpack.c.l.b16 %v1007
        %v2756 = vunpack.c.h.b16 %v1007
        %v2757 = vunpack.c.l.b16 %v1008
        %v2758 = vunpack.c.h.b16 %v1008
        %v2759 = vunpack.c.l.b16 %v1009
        %v2760 = vunpack.c.h.b16 %v1009
        %v2761 = vunpack.c.l.b16 %v1010
        %v2762 = vunpack.c.h.b16 %v1010
        %v2763 = vunpack.c.l.b16 %v1011
        %v2764 = vunpack.c.h.b16 %v1011
        %v2765 = vunpack.c.l.b16 %v1012
        %v2766 = vunpack.c.h.b16 %v1012
        %v2767 = vunpack.c.l.b16 %v1013
        %v2768 = vunpack.c.h.b16 %v1013
        %v2769 = vunpack.c.l.b16 %v1014
        %v2770 = vunpack.c.h.b16 %v1014
        %v2771 = vunpack.c.l.b16 %v1015
        %v2772 = vunpack.c.h.b16 %v1015
        %v2773 = vunpack.c.l.b16 %v1016
        %v2774 = vunpack.c.h.b16 %v1016
        %v2775 = vunpack.c.l.b16 %v1017
        %v2776 = vunpack.c.h.b16 %v1017
        %v2777 = vunpack.c.l.b16 %v1018
        %v2778 = vunpack.c.h.b16 %v1018
        %v2779 = vunpack.c.l.b16 %v1019
        %v2780 = vunpack.c.h.b16 %v1019
        %v2781 = vunpack.c.l.b16 %v1020
        %v2782 = vunpack.c.h.b16 %v1020
        %v2783 = vunpack.c.l.b16 %v1021
        %v2784 = vunpack.c.h.b16 %v1021
        %v2785 = vunpack.c.l.b16 %v1022
        %v2786 = vunpack.c.h.b16 %v1022
        %v2787 = vunpack.c.l.b16 %v1023
        %v2788 = vunpack.c.h.b16 %v1023
        %v2789 = vunpack.c.l.b16 %v1024
        %v2790 = vunpack.c.h.b16 %v1024
        %v2791 = vunpack.c.l.b16 %v1025
        %v2792 = vunpack.c.h.b16 %v1025
        %v2793 = vunpack.c.l.b16 %v1026
        %v2794 = vunpack.c.h.b16 %v1026
        %v2795 = vunpack.c.l.b16 %v1027
        %v2796 = vunpack.c.h.b16 %v1027
        %v2797 = vunpack.c.l.b16 %v1028
        %v2798 = vunpack.c.h.b16 %v1028
        %v2799 = vunpack.c.l.b16 %v1029
        %v2800 = vunpack.c.h.b16 %v1029
        %v2801 = vunpack.c.l.b16 %v1030
        %v2802 = vunpack.c.h.b16 %v1030
        %v2803 = vunpack.c.l.b16 %v1031
        %v2804 = vunpack.c.h.b16 %v1031
        %v2805 = vunpack.c.l.b16 %v1032
        %v2806 = vunpack.c.h.b16 %v1032
        %v2807 = vunpack.c.l.b16 %v1033
        %v2808 = vunpack.c.h.b16 %v1033
        %v2809 = vunpack.c.l.b16 %v1034
        %v2810 = vunpack.c.h.b16 %v1034
        %v2811 = vunpack.c.l.b16 %v1035
        %v2812 = vunpack.c.h.b16 %v1035
        %v2813 = vunpack.c.l.b16 %v1036
        %v2814 = vunpack.c.h.b16 %v1036
        %v2815 = vunpack.c.l.b16 %v1037
        %v2816 = vunpack.c.h.b16 %v1037
        %v2817 = vunpack.c.l.b16 %v1038
        %v2818 = vunpack.c.h.b16 %v1038
        %v2819 = vunpack.c.l.b16 %v1039
        %v2820 = vunpack.c.h.b16 %v1039
        %v2821 = vunpack.c.l.b16 %v1040
        %v2822 = vunpack.c.h.b16 %v1040
        %v2823 = vunpack.c.l.b16 %v1041
        %v2824 = vunpack.c.h.b16 %v1041
        %v2825 = vunpack.c.l.b16 %v1042
        %v2826 = vunpack.c.h.b16 %v1042
        %v2827 = vunpack.c.l.b16 %v1043
        %v2828 = vunpack.c.h.b16 %v1043
        %v2829 = vunpack.c.l.b16 %v1044
        %v2830 = vunpack.c.h.b16 %v1044
        %v2831 = vunpack.c.l.b16 %v1045
        %v2832 = vunpack.c.h.b16 %v1045
        %v2833 = vunpack.c.l.b16 %v1046
        %v2834 = vunpack.c.h.b16 %v1046
        %v2835 = vunpack.c.l.b16 %v1047
        %v2836 = vunpack.c.h.b16 %v1047
        %v2837 = vunpack.c.l.b16 %v1048
        %v2838 = vunpack.c.h.b16 %v1048
        %v2839 = vunpack.c.l.b16 %v1049
        %v2840 = vunpack.c.h.b16 %v1049
        %v2841 = vunpack.c.l.b16 %v1050
        %v2842 = vunpack.c.h.b16 %v1050
        %v2843 = vunpack.c.l.b16 %v1051
        %v2844 = vunpack.c.h.b16 %v1051
        %v2845 = vunpack.c.l.b16 %v1052
        %v2846 = vunpack.c.h.b16 %v1052
        %v2847 = vunpack.c.l.b16 %v1053
        %v2848 = vunpack.c.h.b16 %v1053
        %v2849 = vunpack.c.l.b16 %v1054
        %v2850 = vunpack.c.h.b16 %v1054
        %v2851 = vunpack.c.l.b16 %v1055
        %v2852 = vunpack.c.h.b16 %v1055
        %v2853 = vunpack.c.l.b16 %v1056
        %v2854 = vunpack.c.h.b16 %v1056
        %v2855 = vpack.c.b16 %v2661, %v2659
        %v2856 = vpack.c.b16 %v2662, %v2660
        %v2857 = vpack.c.b16 %v2665, %v2663
        %v2858 = vpack.c.b16 %v2666, %v2664
        %v2859 = vpack.c.b16 %v2669, %v2667
        %v2860 = vpack.c.b16 %v2670, %v2668
        %v2861 = vpack.c.b16 %v2673, %v2671
        %v2862 = vpack.c.b16 %v2674, %v2672
        %v2863 = vpack.c.b16 %v2677, %v2675
        %v2864 = vpack.c.b16 %v2678, %v2676
        %v2865 = vpack.c.b16 %v2681, %v2679
        %v2866 = vpack.c.b16 %v2682, %v2680
        %v2867 = vpack.c.b16 %v2685, %v2683
        %v2868 = vpack.c.b16 %v2686, %v2684
        %v2869 = vpack.c.b16 %v2689, %v2687
        %v2870 = vpack.c.b16 %v2690, %v2688
        %v2871 = vpack.c.b16 %v2693, %v2691
        %v2872 = vpack.c.b16 %v2694, %v2692
        %v2873 = vpack.c.b16 %v2697, %v2695
        %v2874 = vpack.c.b16 %v2698, %v2696
        %v2875 = vpack.c.b16 %v2701, %v2699
        %v2876 = vpack.c.b16 %v2702, %v2700
        %v2877 = vpack.c.b16 %v2705, %v2703
        %v2878 = vpack.c.b16 %v2706, %v2704
        %v2879 = vpack.c.b16 %v2709, %v2707
        %v2880 = vpack.c.b16 %v2710, %v2708
        %v2881 = vpack.c.b16 %v2713, %v2711
        %v2882 = vpack.c.b16 %v2714, %v2712
        %v2883 = vpack.c.b16 %v2717, %v2715
        %v2884 = vpack.c.b16 %v2718, %v2716
        %v2885 = vpack.c.b16 %v2721, %v2719
        %v2886 = vpack.c.b16 %v2722, %v2720
        %v2887 = vpack.c.b16 %v2725, %v2723
        %v2888 = vpack.c.b16 %v2726, %v2724
        %v2889 = vpack.c.b16 %v2729, %v2727
        %v2890 = vpack.c.b16 %v2730, %v2728
        %v2891 = vpack.c.b16 %v2733, %v2731
        %v2892 = vpack.c.b16 %v2734, %v2732
        %v2893 = vpack.c.b16 %v2737, %v2735
        %v2894 = vpack.c.b16 %v2738, %v2736
        %v2895 = vpack.c.b16 %v2741, %v2739
        %v2896 = vpack.c.b16 %v2742, %v2740
        %v2897 = vpack.c.b16 %v2745, %v2743
        %v2898 = vpack.c.b16 %v2746, %v2744
        %v2899 = vpack.c.b16 %v2749, %v2747
        %v2900 = vpack.c.b16 %v2750, %v2748
        %v2901 = vpack.c.b16 %v2753, %v2751
        %v2902 = vpack.c.b16 %v2754, %v2752
        %v2903 = vpack.c.b16 %v2757, %v2755
        %v2904 = vpack.c.b16 %v2758, %v2756
        %v2905 = vpack.c.b16 %v2761, %v2759
        %v2906 = vpack.c.b16 %v2762, %v2760
        %v2907 = vpack.c.b16 %v2765, %v2763
        %v2908 = vpack.c.b16 %v2766, %v2764
        %v2909 = vpack.c.b16 %v2769, %v2767
        %v2910 = vpack.c.b16 %v2770, %v2768
        %v2911 = vpack.c.b16 %v2773, %v2771
        %v2912 = vpack.c.b16 %v2774, %v2772
        %v2913 = vpack.c.b16 %v2777, %v2775
        %v2914 = vpack.c.b16 %v2778, %v2776
        %v2915 = vpack.c.b16 %v2781, %v2779
        %v2916 = vpack.c.b16 %v2782, %v2780
        %v2917 = vpack.c.b16 %v2785, %v2783
        %v2918 = vpack.c.b16 %v2786, %v2784
        %v2919 = vpack.c.b16 %v2789, %v2787
        %v2920 = vpack.c.b16 %v2790, %v2788
        %v2921 = vpack.c.b16 %v2793, %v2791
        %v2922 = vpack.c.b16 %v2794, %v2792
        %v2923 = vpack.c.b16 %v2797, %v2795
        %v2924 = vpack.c.b16 %v2798, %v2796
        %v2925 = vpack.c.b16 %v2801, %v2799
        %v2926 = vpack.c.b16 %v2802, %v2800
        %v2927 = vpack.c.b16 %v2805, %v2803
        %v2928 = vpack.c.b16 %v2806, %v2804
        %v2929 = vpack.c.b16 %v2809, %v2807
        %v2930 = vpack.c.b16 %v2810, %v2808
        %v2931 = vpack.c.b16 %v2813, %v2811
        %v2932 = vpack.c.b16 %v2814, %v2812
        %v2933 = vpack.c.b16 %v2817, %v2815
        %v2934 = vpack.c.b16 %v2818, %v2816
        %v2935 = vpack.c.b16 %v2821, %v2819
        %v2936 = vpack.c.b16 %v2822, %v2820
        %v2937 = vpack.c.b16 %v2825, %v2823
        %v2938 = vpack.c.b16 %v2826, %v2824
        %v2939 = vpack.c.b16 %v2829, %v2827
        %v2940 = vpack.c.b16 %v2830, %v2828
        %v2941 = vpack.c.b16 %v2833, %v2831
        %v2942 = vpack.c.b16 %v2834, %v2832
        %v2943 = vpack.c.b16 %v2837, %v2835
        %v2944 = vpack.c.b16 %v2838, %v2836
        %v2945 = vpack.c.b16 %v2841, %v2839
        %v2946 = vpack.c.b16 %v2842, %v2840
        %v2947 = vpack.c.b16 %v2845, %v2843
        %v2948 = vpack.c.b16 %v2846, %v2844
        %v2949 = vpack.c.b16 %v2849, %v2847
        %v2950 = vpack.c.b16 %v2850, %v2848
        %v2951 = vpack.c.b16 %v2853, %v2851
        %v2952 = vpack.c.b16 %v2854, %v2852
        %vm3051 = vcmask 130048
        %v3053 = vsel %vm3051, %v2151, 0
        %v3056 = vsel %vm3051, %v2158, 0
        %v3059 = vsel %vm3051, %v2165, 0
        %v3062 = vsel %vm3051, %v2172, 0
        %v3065 = vsel %vm3051, %v2179, 0
        %v3068 = vsel %vm3051, %v2186, 0
        %v3071 = vsel %vm3051, %v2193, 0
        %v3074 = vsel %vm3051, %v2200, 0
        %v3077 = vsel %vm3051, %v2207, 0
        %v3080 = vsel %vm3051, %v2214, 0
        %v3083 = vsel %vm3051, %v2221, 0
        %v3086 = vsel %vm3051, %v2228, 0
        %v3089 = vsel %vm3051, %v2235, 0
        %v3092 = vsel %vm3051, %v2242, 0
        %v3095 = vsel %vm3051, %v2249, 0
        %v3098 = vsel %vm3051, %v2256, 0
        %v3101 = vsel %vm3051, %v2263, 0
        %v3104 = vsel %vm3051, %v2270, 0
        %v3107 = vsel %vm3051, %v2277, 0
        %v3110 = vsel %vm3051, %v2284, 0
        %v3113 = vsel %vm3051, %v2291, 0
        %v3116 = vsel %vm3051, %v2298, 0
        %v3119 = vsel %vm3051, %v2305, 0
        %v3122 = vsel %vm3051, %v2312, 0
        %v3125 = vsel %vm3051, %v2319, 0
        %v3128 = vsel %vm3051, %v2326, 0
        %v3131 = vsel %vm3051, %v2333, 0
        %v3134 = vsel %vm3051, %v2340, 0
        %v3137 = vsel %vm3051, %v2347, 0
        %v3140 = vsel %vm3051, %v2354, 0
        %v3143 = vsel %vm3051, %v2361, 0
        %v3146 = vsel %vm3051, %v2368, 0
        %3148 = vmatprep.subr.bf16.mxu0 %v2856
        %3149 = vmatpush1.bf16.msra.mxu0 %v2855
        %3150 = vmatprep.subr.bf16.mxu0 %v2858
        %3151 = vmatpush1.bf16.msra.mxu0 %v2857
        %3152 = vmatprep.subr.bf16.mxu0 %v2860
        %3153 = vmatpush1.bf16.msra.mxu0 %v2859
        %3154 = vmatprep.subr.bf16.mxu0 %v2862
        %3155 = vmatpush1.bf16.msra.mxu0 %v2861
        %3156 = vmatprep.subr.bf16.mxu0 %v2864
        %3157 = vmatpush1.bf16.msra.mxu0 %v2863
        %3158 = vmatprep.subr.bf16.mxu0 %v2866
        %3159 = vmatpush1.bf16.msra.mxu0 %v2865
        %3160 = vmatprep.subr.bf16.mxu0 %v2868
        %3161 = vmatpush1.bf16.msra.mxu0 %v2867
        %3162 = vmatprep.subr.bf16.mxu0 %v2870
        %3163 = vmatpush1.bf16.msra.mxu0 %v2869
        %3164 = vmatprep.subr.bf16.mxu0 %v2872
        %3165 = vmatpush1.bf16.msra.mxu0 %v2871
        %3166 = vmatprep.subr.bf16.mxu0 %v2874
        %3167 = vmatpush1.bf16.msra.mxu0 %v2873
        %3168 = vmatprep.subr.bf16.mxu0 %v2876
        %3169 = vmatpush1.bf16.msra.mxu0 %v2875
        %3170 = vmatprep.subr.bf16.mxu0 %v2878
        %3171 = vmatpush1.bf16.msra.mxu0 %v2877
        %3172 = vmatprep.subr.bf16.mxu0 %v2880
        %3173 = vmatpush1.bf16.msra.mxu0 %v2879
        %3174 = vmatprep.subr.bf16.mxu0 %v2882
        %3175 = vmatpush1.bf16.msra.mxu0 %v2881
        %3176 = vmatprep.subr.bf16.mxu0 %v2884
        %3177 = vmatpush1.bf16.msra.mxu0 %v2883
        %3178 = vmatprep.subr.bf16.mxu0 %v2886
        %3179 = vmatpush1.bf16.msra.mxu0 %v2885
        %3180 = vmatprep.mubr.bf16.mxu0 %v2146
        %3181 = vmatmul.mubr.bf16.gmra.mrb[0].mxu0 %v2145
        %v3182 = vpop.f32.mrb[0].mxu0
        %v3183 = vadd.f32 %v1124, %v3182
        %v3184 = vpop.f32.mrb[0].mxu0
        %v3185 = vadd.f32 %v1124, %v3184
        %v3186 = vpop.f32.mrb[0].mxu0
        %v3187 = vadd.f32 %v1129, %v3186
        %v3188 = vpop.f32.mrb[0].mxu0
        %v3189 = vadd.f32 %v1129, %v3188
        %3190 = vmatprep.mubr.bf16.mxu0 %v2153
        %3191 = vmatmul.mubr.bf16.gmra.mrb[0].mxu0 %v2152
        %v3192 = vpop.f32.mrb[0].mxu0
        %v3193 = vadd.f32 %v1134, %v3192
        %v3194 = vpop.f32.mrb[0].mxu0
        %v3195 = vadd.f32 %v1134, %v3194
        %v3196 = vpop.f32.mrb[0].mxu0
        %v3197 = vadd.f32 %v1139, %v3196
        %v3198 = vpop.f32.mrb[0].mxu0
        %v3199 = vadd.f32 %v1139, %v3198
        %3200 = vmatprep.mubr.bf16.mxu0 %v2160
        %3201 = vmatmul.mubr.bf16.gmra.mrb[0].mxu0 %v2159
        %v3202 = vpop.f32.mrb[0].mxu0
        %v3203 = vadd.f32 %v1144, %v3202
        %v3204 = vpop.f32.mrb[0].mxu0
        %v3205 = vadd.f32 %v1144, %v3204
        %v3206 = vpop.f32.mrb[0].mxu0
        %v3207 = vadd.f32 %v1149, %v3206
        %v3208 = vpop.f32.mrb[0].mxu0
        %v3209 = vadd.f32 %v1149, %v3208
        %3210 = vmatprep.mubr.bf16.mxu0 %v2167
        %3211 = vmatmul.mubr.bf16.gmra.mrb[0].mxu0 %v2166
        %v3212 = vpop.f32.mrb[0].mxu0
        %v3213 = vadd.f32 %v1154, %v3212
        %v3214 = vpop.f32.mrb[0].mxu0
        %v3215 = vadd.f32 %v1154, %v3214
        %v3216 = vpop.f32.mrb[0].mxu0
        %v3217 = vadd.f32 %v1159, %v3216
        %v3218 = vpop.f32.mrb[0].mxu0
        %v3219 = vadd.f32 %v1159, %v3218
        %3220 = vmatprep.mubr.bf16.mxu0 %v2174
        %3221 = vmatmul.mubr.bf16.gmra.mrb[0].mxu0 %v2173
        %v3222 = vpop.f32.mrb[0].mxu0
        %v3223 = vadd.f32 %v1164, %v3222
        %v3224 = vpop.f32.mrb[0].mxu0
        %v3225 = vadd.f32 %v1164, %v3224
        %v3226 = vpop.f32.mrb[0].mxu0
        %v3227 = vadd.f32 %v1169, %v3226
        %v3228 = vpop.f32.mrb[0].mxu0
        %v3229 = vadd.f32 %v1169, %v3228
        %3230 = vmatprep.mubr.bf16.mxu0 %v2181
        %3231 = vmatmul.mubr.bf16.gmra.mrb[0].mxu0 %v2180
        %v3232 = vpop.f32.mrb[0].mxu0
        %v3233 = vadd.f32 %v1174, %v3232
        %v3234 = vpop.f32.mrb[0].mxu0
        %v3235 = vadd.f32 %v1174, %v3234
        %v3236 = vpop.f32.mrb[0].mxu0
        %v3237 = vadd.f32 %v1179, %v3236
        %v3238 = vpop.f32.mrb[0].mxu0
        %v3239 = vadd.f32 %v1179, %v3238
        %3240 = vmatprep.mubr.bf16.mxu0 %v2188
        %3241 = vmatmul.mubr.bf16.gmra.mrb[0].mxu0 %v2187
        %v3242 = vpop.f32.mrb[0].mxu0
        %v3243 = vadd.f32 %v1184, %v3242
        %v3244 = vpop.f32.mrb[0].mxu0
        %v3245 = vadd.f32 %v1184, %v3244
        %v3246 = vpop.f32.mrb[0].mxu0
        %v3247 = vadd.f32 %v1189, %v3246
        %v3248 = vpop.f32.mrb[0].mxu0
        %v3249 = vadd.f32 %v1189, %v3248
        %3250 = vmatprep.mubr.bf16.mxu0 %v2195
        %3251 = vmatmul.mubr.bf16.gmra.mrb[0].mxu0 %v2194
        %v3252 = vpop.f32.mrb[0].mxu0
        %v3253 = vadd.f32 %v1194, %v3252
        %v3254 = vpop.f32.mrb[0].mxu0
        %v3255 = vadd.f32 %v1194, %v3254
        %v3256 = vpop.f32.mrb[0].mxu0
        %v3257 = vadd.f32 %v1199, %v3256
        %v3258 = vpop.f32.mrb[0].mxu0
        %v3259 = vadd.f32 %v1199, %v3258
        %3260 = vmatprep.mubr.bf16.mxu0 %v2202
        %3261 = vmatmul.mubr.bf16.gmra.mrb[0].mxu0 %v2201
        %v3262 = vpop.f32.mrb[0].mxu0
        %v3263 = vadd.f32 %v1204, %v3262
        %v3264 = vpop.f32.mrb[0].mxu0
        %v3265 = vadd.f32 %v1204, %v3264
        %v3266 = vpop.f32.mrb[0].mxu0
        %v3267 = vadd.f32 %v1209, %v3266
        %v3268 = vpop.f32.mrb[0].mxu0
        %v3269 = vadd.f32 %v1209, %v3268
        %3270 = vmatprep.mubr.bf16.mxu0 %v2209
        %3271 = vmatmul.mubr.bf16.gmra.mrb[0].mxu0 %v2208
        %v3272 = vpop.f32.mrb[0].mxu0
        %v3273 = vadd.f32 %v1214, %v3272
        %v3274 = vpop.f32.mrb[0].mxu0
        %v3275 = vadd.f32 %v1214, %v3274
        %v3276 = vpop.f32.mrb[0].mxu0
        %v3277 = vadd.f32 %v1219, %v3276
        %v3278 = vpop.f32.mrb[0].mxu0
        %v3279 = vadd.f32 %v1219, %v3278
        %3280 = vmatprep.mubr.bf16.mxu0 %v2216
        %3281 = vmatmul.mubr.bf16.gmra.mrb[0].mxu0 %v2215
        %v3282 = vpop.f32.mrb[0].mxu0
        %v3283 = vadd.f32 %v1224, %v3282
        %v3284 = vpop.f32.mrb[0].mxu0
        %v3285 = vadd.f32 %v1224, %v3284
        %v3286 = vpop.f32.mrb[0].mxu0
        %v3287 = vadd.f32 %v1229, %v3286
        %v3288 = vpop.f32.mrb[0].mxu0
        %v3289 = vadd.f32 %v1229, %v3288
        %3290 = vmatprep.mubr.bf16.mxu0 %v2223
        %3291 = vmatmul.mubr.bf16.gmra.mrb[0].mxu0 %v2222
        %v3292 = vpop.f32.mrb[0].mxu0
        %v3293 = vadd.f32 %v1234, %v3292
        %v3294 = vpop.f32.mrb[0].mxu0
        %v3295 = vadd.f32 %v1234, %v3294
        %v3296 = vpop.f32.mrb[0].mxu0
        %v3297 = vadd.f32 %v1239, %v3296
        %v3298 = vpop.f32.mrb[0].mxu0
        %v3299 = vadd.f32 %v1239, %v3298
        %3300 = vmatprep.mubr.bf16.mxu0 %v2230
        %3301 = vmatmul.mubr.bf16.gmra.mrb[0].mxu0 %v2229
        %v3302 = vpop.f32.mrb[0].mxu0
        %v3303 = vadd.f32 %v1244, %v3302
        %v3304 = vpop.f32.mrb[0].mxu0
        %v3305 = vadd.f32 %v1244, %v3304
        %v3306 = vpop.f32.mrb[0].mxu0
        %v3307 = vadd.f32 %v1249, %v3306
        %v3308 = vpop.f32.mrb[0].mxu0
        %v3309 = vadd.f32 %v1249, %v3308
        %3310 = vmatprep.mubr.bf16.mxu0 %v2237
        %3311 = vmatmul.mubr.bf16.gmra.mrb[0].mxu0 %v2236
        %v3312 = vpop.f32.mrb[0].mxu0
        %v3313 = vadd.f32 %v1254, %v3312
        %v3314 = vpop.f32.mrb[0].mxu0
        %v3315 = vadd.f32 %v1254, %v3314
        %v3316 = vpop.f32.mrb[0].mxu0
        %v3317 = vadd.f32 %v1259, %v3316
        %v3318 = vpop.f32.mrb[0].mxu0
        %v3319 = vadd.f32 %v1259, %v3318
        %3320 = vmatprep.mubr.bf16.mxu0 %v2244
        %3321 = vmatmul.mubr.bf16.gmra.mrb[0].mxu0 %v2243
        %v3322 = vpop.f32.mrb[0].mxu0
        %v3323 = vadd.f32 %v1264, %v3322
        %v3324 = vpop.f32.mrb[0].mxu0
        %v3325 = vadd.f32 %v1264, %v3324
        %v3326 = vpop.f32.mrb[0].mxu0
        %v3327 = vadd.f32 %v1269, %v3326
        %v3328 = vpop.f32.mrb[0].mxu0
        %v3329 = vadd.f32 %v1269, %v3328
        %3330 = vmatprep.mubr.bf16.mxu0 %v2251
        %3331 = vmatmul.mubr.bf16.gmra.mrb[0].mxu0 %v2250
        %v3332 = vpop.f32.mrb[0].mxu0
        %v3333 = vadd.f32 %v1274, %v3332
        %v3334 = vpop.f32.mrb[0].mxu0
        %v3335 = vadd.f32 %v1274, %v3334
        %v3336 = vpop.f32.mrb[0].mxu0
        %v3337 = vadd.f32 %v1279, %v3336
        %v3338 = vpop.f32.mrb[0].mxu0
        %v3339 = vadd.f32 %v1279, %v3338
        %3340 = vmatprep.mubr.bf16.mxu0 %v2258
        %3341 = vmatmul.mubr.bf16.gmra.mrb[0].mxu0 %v2257
        %v3342 = vpop.f32.mrb[0].mxu0
        %v3343 = vadd.f32 %v1284, %v3342
        %v3344 = vpop.f32.mrb[0].mxu0
        %v3345 = vadd.f32 %v1284, %v3344
        %v3346 = vpop.f32.mrb[0].mxu0
        %v3347 = vadd.f32 %v1289, %v3346
        %v3348 = vpop.f32.mrb[0].mxu0
        %v3349 = vadd.f32 %v1289, %v3348
        %3350 = vmatprep.mubr.bf16.mxu0 %v2265
        %3351 = vmatmul.mubr.bf16.gmra.mrb[0].mxu0 %v2264
        %v3352 = vpop.f32.mrb[0].mxu0
        %v3353 = vadd.f32 %v1294, %v3352
        %v3354 = vpop.f32.mrb[0].mxu0
        %v3355 = vadd.f32 %v1294, %v3354
        %v3356 = vpop.f32.mrb[0].mxu0
        %v3357 = vadd.f32 %v1299, %v3356
        %v3358 = vpop.f32.mrb[0].mxu0
        %v3359 = vadd.f32 %v1299, %v3358
        %3360 = vmatprep.mubr.bf16.mxu0 %v2272
        %3361 = vmatmul.mubr.bf16.gmra.mrb[0].mxu0 %v2271
        %v3362 = vpop.f32.mrb[0].mxu0
        %v3363 = vadd.f32 %v1304, %v3362
        %v3364 = vpop.f32.mrb[0].mxu0
        %v3365 = vadd.f32 %v1304, %v3364
        %v3366 = vpop.f32.mrb[0].mxu0
        %v3367 = vadd.f32 %v1309, %v3366
        %v3368 = vpop.f32.mrb[0].mxu0
        %v3369 = vadd.f32 %v1309, %v3368
        %3370 = vmatprep.mubr.bf16.mxu0 %v2279
        %3371 = vmatmul.mubr.bf16.gmra.mrb[0].mxu0 %v2278
        %v3372 = vpop.f32.mrb[0].mxu0
        %v3373 = vadd.f32 %v1314, %v3372
        %v3374 = vpop.f32.mrb[0].mxu0
        %v3375 = vadd.f32 %v1314, %v3374
        %v3376 = vpop.f32.mrb[0].mxu0
        %v3377 = vadd.f32 %v1319, %v3376
        %v3378 = vpop.f32.mrb[0].mxu0
        %v3379 = vadd.f32 %v1319, %v3378
        %3380 = vmatprep.mubr.bf16.mxu0 %v2286
        %3381 = vmatmul.mubr.bf16.gmra.mrb[0].mxu0 %v2285
        %v3382 = vpop.f32.mrb[0].mxu0
        %v3383 = vadd.f32 %v1324, %v3382
        %v3384 = vpop.f32.mrb[0].mxu0
        %v3385 = vadd.f32 %v1324, %v3384
        %v3386 = vpop.f32.mrb[0].mxu0
        %v3387 = vadd.f32 %v1329, %v3386
        %v3388 = vpop.f32.mrb[0].mxu0
        %v3389 = vadd.f32 %v1329, %v3388
        %3390 = vmatprep.mubr.bf16.mxu0 %v2293
        %3391 = vmatmul.mubr.bf16.gmra.mrb[0].mxu0 %v2292
        %v3392 = vpop.f32.mrb[0].mxu0
        %v3393 = vadd.f32 %v1334, %v3392
        %v3394 = vpop.f32.mrb[0].mxu0
        %v3395 = vadd.f32 %v1334, %v3394
        %v3396 = vpop.f32.mrb[0].mxu0
        %v3397 = vadd.f32 %v1339, %v3396
        %v3398 = vpop.f32.mrb[0].mxu0
        %v3399 = vadd.f32 %v1339, %v3398
        %3400 = vmatprep.mubr.bf16.mxu0 %v2300
        %3401 = vmatmul.mubr.bf16.gmra.mrb[0].mxu0 %v2299
        %v3402 = vpop.f32.mrb[0].mxu0
        %v3403 = vadd.f32 %v1344, %v3402
        %v3404 = vpop.f32.mrb[0].mxu0
        %v3405 = vadd.f32 %v1344, %v3404
        %v3406 = vpop.f32.mrb[0].mxu0
        %v3407 = vadd.f32 %v1349, %v3406
        %v3408 = vpop.f32.mrb[0].mxu0
        %v3409 = vadd.f32 %v1349, %v3408
        %3410 = vmatprep.mubr.bf16.mxu0 %v2307
        %3411 = vmatmul.mubr.bf16.gmra.mrb[0].mxu0 %v2306
        %v3412 = vpop.f32.mrb[0].mxu0
        %v3413 = vadd.f32 %v1354, %v3412
        %v3414 = vpop.f32.mrb[0].mxu0
        %v3415 = vadd.f32 %v1354, %v3414
        %v3416 = vpop.f32.mrb[0].mxu0
        %v3417 = vadd.f32 %v1359, %v3416
        %v3418 = vpop.f32.mrb[0].mxu0
        %v3419 = vadd.f32 %v1359, %v3418
        %3420 = vmatprep.mubr.bf16.mxu0 %v2314
        %3421 = vmatmul.mubr.bf16.gmra.mrb[0].mxu0 %v2313
        %v3422 = vpop.f32.mrb[0].mxu0
        %v3423 = vadd.f32 %v1364, %v3422
        %v3424 = vpop.f32.mrb[0].mxu0
        %v3425 = vadd.f32 %v1364, %v3424
        %v3426 = vpop.f32.mrb[0].mxu0
        %v3427 = vadd.f32 %v1369, %v3426
        %v3428 = vpop.f32.mrb[0].mxu0
        %v3429 = vadd.f32 %v1369, %v3428
        %3430 = vmatprep.mubr.bf16.mxu0 %v2321
        %3431 = vmatmul.mubr.bf16.gmra.mrb[0].mxu0 %v2320
        %v3432 = vpop.f32.mrb[0].mxu0
        %v3433 = vadd.f32 %v1374, %v3432
        %v3434 = vpop.f32.mrb[0].mxu0
        %v3435 = vadd.f32 %v1374, %v3434
        %v3436 = vpop.f32.mrb[0].mxu0
        %v3437 = vadd.f32 %v1379, %v3436
        %v3438 = vpop.f32.mrb[0].mxu0
        %v3439 = vadd.f32 %v1379, %v3438
        %3440 = vmatprep.mubr.bf16.mxu0 %v2328
        %3441 = vmatmul.mubr.bf16.gmra.mrb[0].mxu0 %v2327
        %v3442 = vpop.f32.mrb[0].mxu0
        %v3443 = vadd.f32 %v1384, %v3442
        %v3444 = vpop.f32.mrb[0].mxu0
        %v3445 = vadd.f32 %v1384, %v3444
        %v3446 = vpop.f32.mrb[0].mxu0
        %v3447 = vadd.f32 %v1389, %v3446
        %v3448 = vpop.f32.mrb[0].mxu0
        %v3449 = vadd.f32 %v1389, %v3448
        %3450 = vmatprep.mubr.bf16.mxu0 %v2335
        %3451 = vmatmul.mubr.bf16.gmra.mrb[0].mxu0 %v2334
        %v3452 = vpop.f32.mrb[0].mxu0
        %v3453 = vadd.f32 %v1394, %v3452
        %v3454 = vpop.f32.mrb[0].mxu0
        %v3455 = vadd.f32 %v1394, %v3454
        %v3456 = vpop.f32.mrb[0].mxu0
        %v3457 = vadd.f32 %v1399, %v3456
        %v3458 = vpop.f32.mrb[0].mxu0
        %v3459 = vadd.f32 %v1399, %v3458
        %3460 = vmatprep.mubr.bf16.mxu0 %v2342
        %3461 = vmatmul.mubr.bf16.gmra.mrb[0].mxu0 %v2341
        %v3462 = vpop.f32.mrb[0].mxu0
        %v3463 = vadd.f32 %v1404, %v3462
        %v3464 = vpop.f32.mrb[0].mxu0
        %v3465 = vadd.f32 %v1404, %v3464
        %v3466 = vpop.f32.mrb[0].mxu0
        %v3467 = vadd.f32 %v1409, %v3466
        %v3468 = vpop.f32.mrb[0].mxu0
        %v3469 = vadd.f32 %v1409, %v3468
        %3470 = vmatprep.mubr.bf16.mxu0 %v2349
        %3471 = vmatmul.mubr.bf16.gmra.mrb[0].mxu0 %v2348
        %v3472 = vpop.f32.mrb[0].mxu0
        %v3473 = vadd.f32 %v1414, %v3472
        %v3474 = vpop.f32.mrb[0].mxu0
        %v3475 = vadd.f32 %v1414, %v3474
        %v3476 = vpop.f32.mrb[0].mxu0
        %v3477 = vadd.f32 %v1419, %v3476
        %v3478 = vpop.f32.mrb[0].mxu0
        %v3479 = vadd.f32 %v1419, %v3478
        %3480 = vmatprep.mubr.bf16.mxu0 %v2356
        %3481 = vmatmul.mubr.bf16.gmra.mrb[0].mxu0 %v2355
        %v3482 = vpop.f32.mrb[0].mxu0
        %v3483 = vadd.f32 %v1424, %v3482
        %v3484 = vpop.f32.mrb[0].mxu0
        %v3485 = vadd.f32 %v1424, %v3484
        %v3486 = vpop.f32.mrb[0].mxu0
        %v3487 = vadd.f32 %v1429, %v3486
        %v3488 = vpop.f32.mrb[0].mxu0
        %v3489 = vadd.f32 %v1429, %v3488
        %3490 = vmatprep.mubr.bf16.mxu0 %v2363
        %3491 = vmatmul.mubr.bf16.gmra.mrb[0].mxu0 %v2362
        %v3492 = vpop.f32.mrb[0].mxu0
        %v3493 = vadd.f32 %v1434, %v3492
        %v3494 = vpop.f32.mrb[0].mxu0
        %v3495 = vadd.f32 %v1434, %v3494
        %v3496 = vpop.f32.mrb[0].mxu0
        %v3497 = vadd.f32 %v1439, %v3496
        %v3498 = vpop.f32.mrb[0].mxu0
        %v3499 = vadd.f32 %v1439, %v3498
        %3500 = vdwg.mxu0
        %3501 = vmatprep.subr.bf16.mxu0 %v2888
        %3502 = vmatpush1.bf16.msra.mxu0 %v2887
        %3503 = vmatprep.subr.bf16.mxu0 %v2890
        %3504 = vmatpush1.bf16.msra.mxu0 %v2889
        %3505 = vmatprep.subr.bf16.mxu0 %v2892
        %3506 = vmatpush1.bf16.msra.mxu0 %v2891
        %3507 = vmatprep.subr.bf16.mxu0 %v2894
        %3508 = vmatpush1.bf16.msra.mxu0 %v2893
        %3509 = vmatprep.subr.bf16.mxu0 %v2896
        %3510 = vmatpush1.bf16.msra.mxu0 %v2895
        %3511 = vmatprep.subr.bf16.mxu0 %v2898
        %3512 = vmatpush1.bf16.msra.mxu0 %v2897
        %3513 = vmatprep.subr.bf16.mxu0 %v2900
        %3514 = vmatpush1.bf16.msra.mxu0 %v2899
        %3515 = vmatprep.subr.bf16.mxu0 %v2902
        %3516 = vmatpush1.bf16.msra.mxu0 %v2901
        %3517 = vmatprep.subr.bf16.mxu0 %v2904
        %3518 = vmatpush1.bf16.msra.mxu0 %v2903
        %3519 = vmatprep.subr.bf16.mxu0 %v2906
        %3520 = vmatpush1.bf16.msra.mxu0 %v2905
        %3521 = vmatprep.subr.bf16.mxu0 %v2908
        %3522 = vmatpush1.bf16.msra.mxu0 %v2907
        %3523 = vmatprep.subr.bf16.mxu0 %v2910
        %3524 = vmatpush1.bf16.msra.mxu0 %v2909
        %3525 = vmatprep.subr.bf16.mxu0 %v2912
        %3526 = vmatpush1.bf16.msra.mxu0 %v2911
        %3527 = vmatprep.subr.bf16.mxu0 %v2914
        %3528 = vmatpush1.bf16.msra.mxu0 %v2913
        %3529 = vmatprep.subr.bf16.mxu0 %v2916
        %3530 = vmatpush1.bf16.msra.mxu0 %v2915
        %3531 = vmatprep.subr.bf16.mxu0 %v2918
        %3532 = vmatpush1.bf16.msra.mxu0 %v2917
        %3533 = vmatprep.mubr.bf16.mxu0 %v2148
        %3534 = vmatmul.mubr.bf16.gmra.mrb[0].mxu0 %v2147
        %v3535 = vpop.f32.mrb[0].mxu0
        %v3536 = vadd.f32 %v3183, %v3535
        %v3537 = vpop.f32.mrb[0].mxu0
        %v3538 = vadd.f32 %v3185, %v3537
        %v3539 = vpop.f32.mrb[0].mxu0
        %v3540 = vadd.f32 %v3187, %v3539
        %v3541 = vpop.f32.mrb[0].mxu0
        %v3542 = vadd.f32 %v3189, %v3541
        %3543 = vmatprep.mubr.bf16.mxu0 %v2155
        %3544 = vmatmul.mubr.bf16.gmra.mrb[0].mxu0 %v2154
        %v3545 = vpop.f32.mrb[0].mxu0
        %v3546 = vadd.f32 %v3193, %v3545
        %v3547 = vpop.f32.mrb[0].mxu0
        %v3548 = vadd.f32 %v3195, %v3547
        %v3549 = vpop.f32.mrb[0].mxu0
        %v3550 = vadd.f32 %v3197, %v3549
        %v3551 = vpop.f32.mrb[0].mxu0
        %v3552 = vadd.f32 %v3199, %v3551
        %3553 = vmatprep.mubr.bf16.mxu0 %v2162
        %3554 = vmatmul.mubr.bf16.gmra.mrb[0].mxu0 %v2161
        %v3555 = vpop.f32.mrb[0].mxu0
        %v3556 = vadd.f32 %v3203, %v3555
        %v3557 = vpop.f32.mrb[0].mxu0
        %v3558 = vadd.f32 %v3205, %v3557
        %v3559 = vpop.f32.mrb[0].mxu0
        %v3560 = vadd.f32 %v3207, %v3559
        %v3561 = vpop.f32.mrb[0].mxu0
        %v3562 = vadd.f32 %v3209, %v3561
        %3563 = vmatprep.mubr.bf16.mxu0 %v2169
        %3564 = vmatmul.mubr.bf16.gmra.mrb[0].mxu0 %v2168
        %v3565 = vpop.f32.mrb[0].mxu0
        %v3566 = vadd.f32 %v3213, %v3565
        %v3567 = vpop.f32.mrb[0].mxu0
        %v3568 = vadd.f32 %v3215, %v3567
        %v3569 = vpop.f32.mrb[0].mxu0
        %v3570 = vadd.f32 %v3217, %v3569
        %v3571 = vpop.f32.mrb[0].mxu0
        %v3572 = vadd.f32 %v3219, %v3571
        %3573 = vmatprep.mubr.bf16.mxu0 %v2176
        %3574 = vmatmul.mubr.bf16.gmra.mrb[0].mxu0 %v2175
        %v3575 = vpop.f32.mrb[0].mxu0
        %v3576 = vadd.f32 %v3223, %v3575
        %v3577 = vpop.f32.mrb[0].mxu0
        %v3578 = vadd.f32 %v3225, %v3577
        %v3579 = vpop.f32.mrb[0].mxu0
        %v3580 = vadd.f32 %v3227, %v3579
        %v3581 = vpop.f32.mrb[0].mxu0
        %v3582 = vadd.f32 %v3229, %v3581
        %3583 = vmatprep.mubr.bf16.mxu0 %v2183
        %3584 = vmatmul.mubr.bf16.gmra.mrb[0].mxu0 %v2182
        %v3585 = vpop.f32.mrb[0].mxu0
        %v3586 = vadd.f32 %v3233, %v3585
        %v3587 = vpop.f32.mrb[0].mxu0
        %v3588 = vadd.f32 %v3235, %v3587
        %v3589 = vpop.f32.mrb[0].mxu0
        %v3590 = vadd.f32 %v3237, %v3589
        %v3591 = vpop.f32.mrb[0].mxu0
        %v3592 = vadd.f32 %v3239, %v3591
        %3593 = vmatprep.mubr.bf16.mxu0 %v2190
        %3594 = vmatmul.mubr.bf16.gmra.mrb[0].mxu0 %v2189
        %v3595 = vpop.f32.mrb[0].mxu0
        %v3596 = vadd.f32 %v3243, %v3595
        %v3597 = vpop.f32.mrb[0].mxu0
        %v3598 = vadd.f32 %v3245, %v3597
        %v3599 = vpop.f32.mrb[0].mxu0
        %v3600 = vadd.f32 %v3247, %v3599
        %v3601 = vpop.f32.mrb[0].mxu0
        %v3602 = vadd.f32 %v3249, %v3601
        %3603 = vmatprep.mubr.bf16.mxu0 %v2197
        %3604 = vmatmul.mubr.bf16.gmra.mrb[0].mxu0 %v2196
        %v3605 = vpop.f32.mrb[0].mxu0
        %v3606 = vadd.f32 %v3253, %v3605
        %v3607 = vpop.f32.mrb[0].mxu0
        %v3608 = vadd.f32 %v3255, %v3607
        %v3609 = vpop.f32.mrb[0].mxu0
        %v3610 = vadd.f32 %v3257, %v3609
        %v3611 = vpop.f32.mrb[0].mxu0
        %v3612 = vadd.f32 %v3259, %v3611
        %3613 = vmatprep.mubr.bf16.mxu0 %v2204
        %3614 = vmatmul.mubr.bf16.gmra.mrb[0].mxu0 %v2203
        %v3615 = vpop.f32.mrb[0].mxu0
        %v3616 = vadd.f32 %v3263, %v3615
        %v3617 = vpop.f32.mrb[0].mxu0
        %v3618 = vadd.f32 %v3265, %v3617
        %v3619 = vpop.f32.mrb[0].mxu0
        %v3620 = vadd.f32 %v3267, %v3619
        %v3621 = vpop.f32.mrb[0].mxu0
        %v3622 = vadd.f32 %v3269, %v3621
        %3623 = vmatprep.mubr.bf16.mxu0 %v2211
        %3624 = vmatmul.mubr.bf16.gmra.mrb[0].mxu0 %v2210
        %v3625 = vpop.f32.mrb[0].mxu0
        %v3626 = vadd.f32 %v3273, %v3625
        %v3627 = vpop.f32.mrb[0].mxu0
        %v3628 = vadd.f32 %v3275, %v3627
        %v3629 = vpop.f32.mrb[0].mxu0
        %v3630 = vadd.f32 %v3277, %v3629
        %v3631 = vpop.f32.mrb[0].mxu0
        %v3632 = vadd.f32 %v3279, %v3631
        %3633 = vmatprep.mubr.bf16.mxu0 %v2218
        %3634 = vmatmul.mubr.bf16.gmra.mrb[0].mxu0 %v2217
        %v3635 = vpop.f32.mrb[0].mxu0
        %v3636 = vadd.f32 %v3283, %v3635
        %v3637 = vpop.f32.mrb[0].mxu0
        %v3638 = vadd.f32 %v3285, %v3637
        %v3639 = vpop.f32.mrb[0].mxu0
        %v3640 = vadd.f32 %v3287, %v3639
        %v3641 = vpop.f32.mrb[0].mxu0
        %v3642 = vadd.f32 %v3289, %v3641
        %3643 = vmatprep.mubr.bf16.mxu0 %v2225
        %3644 = vmatmul.mubr.bf16.gmra.mrb[0].mxu0 %v2224
        %v3645 = vpop.f32.mrb[0].mxu0
        %v3646 = vadd.f32 %v3293, %v3645
        %v3647 = vpop.f32.mrb[0].mxu0
        %v3648 = vadd.f32 %v3295, %v3647
        %v3649 = vpop.f32.mrb[0].mxu0
        %v3650 = vadd.f32 %v3297, %v3649
        %v3651 = vpop.f32.mrb[0].mxu0
        %v3652 = vadd.f32 %v3299, %v3651
        %3653 = vmatprep.mubr.bf16.mxu0 %v2232
        %3654 = vmatmul.mubr.bf16.gmra.mrb[0].mxu0 %v2231
        %v3655 = vpop.f32.mrb[0].mxu0
        %v3656 = vadd.f32 %v3303, %v3655
        %v3657 = vpop.f32.mrb[0].mxu0
        %v3658 = vadd.f32 %v3305, %v3657
        %v3659 = vpop.f32.mrb[0].mxu0
        %v3660 = vadd.f32 %v3307, %v3659
        %v3661 = vpop.f32.mrb[0].mxu0
        %v3662 = vadd.f32 %v3309, %v3661
        %3663 = vmatprep.mubr.bf16.mxu0 %v2239
        %3664 = vmatmul.mubr.bf16.gmra.mrb[0].mxu0 %v2238
        %v3665 = vpop.f32.mrb[0].mxu0
        %v3666 = vadd.f32 %v3313, %v3665
        %v3667 = vpop.f32.mrb[0].mxu0
        %v3668 = vadd.f32 %v3315, %v3667
        %v3669 = vpop.f32.mrb[0].mxu0
        %v3670 = vadd.f32 %v3317, %v3669
        %v3671 = vpop.f32.mrb[0].mxu0
        %v3672 = vadd.f32 %v3319, %v3671
        %3673 = vmatprep.mubr.bf16.mxu0 %v2246
        %3674 = vmatmul.mubr.bf16.gmra.mrb[0].mxu0 %v2245
        %v3675 = vpop.f32.mrb[0].mxu0
        %v3676 = vadd.f32 %v3323, %v3675
        %v3677 = vpop.f32.mrb[0].mxu0
        %v3678 = vadd.f32 %v3325, %v3677
        %v3679 = vpop.f32.mrb[0].mxu0
        %v3680 = vadd.f32 %v3327, %v3679
        %v3681 = vpop.f32.mrb[0].mxu0
        %v3682 = vadd.f32 %v3329, %v3681
        %3683 = vmatprep.mubr.bf16.mxu0 %v2253
        %3684 = vmatmul.mubr.bf16.gmra.mrb[0].mxu0 %v2252
        %v3685 = vpop.f32.mrb[0].mxu0
        %v3686 = vadd.f32 %v3333, %v3685
        %v3687 = vpop.f32.mrb[0].mxu0
        %v3688 = vadd.f32 %v3335, %v3687
        %v3689 = vpop.f32.mrb[0].mxu0
        %v3690 = vadd.f32 %v3337, %v3689
        %v3691 = vpop.f32.mrb[0].mxu0
        %v3692 = vadd.f32 %v3339, %v3691
        %3693 = vmatprep.mubr.bf16.mxu0 %v2260
        %3694 = vmatmul.mubr.bf16.gmra.mrb[0].mxu0 %v2259
        %v3695 = vpop.f32.mrb[0].mxu0
        %v3696 = vadd.f32 %v3343, %v3695
        %v3697 = vpop.f32.mrb[0].mxu0
        %v3698 = vadd.f32 %v3345, %v3697
        %v3699 = vpop.f32.mrb[0].mxu0
        %v3700 = vadd.f32 %v3347, %v3699
        %v3701 = vpop.f32.mrb[0].mxu0
        %v3702 = vadd.f32 %v3349, %v3701
        %3703 = vmatprep.mubr.bf16.mxu0 %v2267
        %3704 = vmatmul.mubr.bf16.gmra.mrb[0].mxu0 %v2266
        %v3705 = vpop.f32.mrb[0].mxu0
        %v3706 = vadd.f32 %v3353, %v3705
        %v3707 = vpop.f32.mrb[0].mxu0
        %v3708 = vadd.f32 %v3355, %v3707
        %v3709 = vpop.f32.mrb[0].mxu0
        %v3710 = vadd.f32 %v3357, %v3709
        %v3711 = vpop.f32.mrb[0].mxu0
        %v3712 = vadd.f32 %v3359, %v3711
        %3713 = vmatprep.mubr.bf16.mxu0 %v2274
        %3714 = vmatmul.mubr.bf16.gmra.mrb[0].mxu0 %v2273
        %v3715 = vpop.f32.mrb[0].mxu0
        %v3716 = vadd.f32 %v3363, %v3715
        %v3717 = vpop.f32.mrb[0].mxu0
        %v3718 = vadd.f32 %v3365, %v3717
        %v3719 = vpop.f32.mrb[0].mxu0
        %v3720 = vadd.f32 %v3367, %v3719
        %v3721 = vpop.f32.mrb[0].mxu0
        %v3722 = vadd.f32 %v3369, %v3721
        %3723 = vmatprep.mubr.bf16.mxu0 %v2281
        %3724 = vmatmul.mubr.bf16.gmra.mrb[0].mxu0 %v2280
        %v3725 = vpop.f32.mrb[0].mxu0
        %v3726 = vadd.f32 %v3373, %v3725
        %v3727 = vpop.f32.mrb[0].mxu0
        %v3728 = vadd.f32 %v3375, %v3727
        %v3729 = vpop.f32.mrb[0].mxu0
        %v3730 = vadd.f32 %v3377, %v3729
        %v3731 = vpop.f32.mrb[0].mxu0
        %v3732 = vadd.f32 %v3379, %v3731
        %3733 = vmatprep.mubr.bf16.mxu0 %v2288
        %3734 = vmatmul.mubr.bf16.gmra.mrb[0].mxu0 %v2287
        %v3735 = vpop.f32.mrb[0].mxu0
        %v3736 = vadd.f32 %v3383, %v3735
        %v3737 = vpop.f32.mrb[0].mxu0
        %v3738 = vadd.f32 %v3385, %v3737
        %v3739 = vpop.f32.mrb[0].mxu0
        %v3740 = vadd.f32 %v3387, %v3739
        %v3741 = vpop.f32.mrb[0].mxu0
        %v3742 = vadd.f32 %v3389, %v3741
        %3743 = vmatprep.mubr.bf16.mxu0 %v2295
        %3744 = vmatmul.mubr.bf16.gmra.mrb[0].mxu0 %v2294
        %v3745 = vpop.f32.mrb[0].mxu0
        %v3746 = vadd.f32 %v3393, %v3745
        %v3747 = vpop.f32.mrb[0].mxu0
        %v3748 = vadd.f32 %v3395, %v3747
        %v3749 = vpop.f32.mrb[0].mxu0
        %v3750 = vadd.f32 %v3397, %v3749
        %v3751 = vpop.f32.mrb[0].mxu0
        %v3752 = vadd.f32 %v3399, %v3751
        %3753 = vmatprep.mubr.bf16.mxu0 %v2302
        %3754 = vmatmul.mubr.bf16.gmra.mrb[0].mxu0 %v2301
        %v3755 = vpop.f32.mrb[0].mxu0
        %v3756 = vadd.f32 %v3403, %v3755
        %v3757 = vpop.f32.mrb[0].mxu0
        %v3758 = vadd.f32 %v3405, %v3757
        %v3759 = vpop.f32.mrb[0].mxu0
        %v3760 = vadd.f32 %v3407, %v3759
        %v3761 = vpop.f32.mrb[0].mxu0
        %v3762 = vadd.f32 %v3409, %v3761
        %3763 = vmatprep.mubr.bf16.mxu0 %v2309
        %3764 = vmatmul.mubr.bf16.gmra.mrb[0].mxu0 %v2308
        %v3765 = vpop.f32.mrb[0].mxu0
        %v3766 = vadd.f32 %v3413, %v3765
        %v3767 = vpop.f32.mrb[0].mxu0
        %v3768 = vadd.f32 %v3415, %v3767
        %v3769 = vpop.f32.mrb[0].mxu0
        %v3770 = vadd.f32 %v3417, %v3769
        %v3771 = vpop.f32.mrb[0].mxu0
        %v3772 = vadd.f32 %v3419, %v3771
        %3773 = vmatprep.mubr.bf16.mxu0 %v2316
        %3774 = vmatmul.mubr.bf16.gmra.mrb[0].mxu0 %v2315
        %v3775 = vpop.f32.mrb[0].mxu0
        %v3776 = vadd.f32 %v3423, %v3775
        %v3777 = vpop.f32.mrb[0].mxu0
        %v3778 = vadd.f32 %v3425, %v3777
        %v3779 = vpop.f32.mrb[0].mxu0
        %v3780 = vadd.f32 %v3427, %v3779
        %v3781 = vpop.f32.mrb[0].mxu0
        %v3782 = vadd.f32 %v3429, %v3781
        %3783 = vmatprep.mubr.bf16.mxu0 %v2323
        %3784 = vmatmul.mubr.bf16.gmra.mrb[0].mxu0 %v2322
        %v3785 = vpop.f32.mrb[0].mxu0
        %v3786 = vadd.f32 %v3433, %v3785
        %v3787 = vpop.f32.mrb[0].mxu0
        %v3788 = vadd.f32 %v3435, %v3787
        %v3789 = vpop.f32.mrb[0].mxu0
        %v3790 = vadd.f32 %v3437, %v3789
        %v3791 = vpop.f32.mrb[0].mxu0
        %v3792 = vadd.f32 %v3439, %v3791
        %3793 = vmatprep.mubr.bf16.mxu0 %v2330
        %3794 = vmatmul.mubr.bf16.gmra.mrb[0].mxu0 %v2329
        %v3795 = vpop.f32.mrb[0].mxu0
        %v3796 = vadd.f32 %v3443, %v3795
        %v3797 = vpop.f32.mrb[0].mxu0
        %v3798 = vadd.f32 %v3445, %v3797
        %v3799 = vpop.f32.mrb[0].mxu0
        %v3800 = vadd.f32 %v3447, %v3799
        %v3801 = vpop.f32.mrb[0].mxu0
        %v3802 = vadd.f32 %v3449, %v3801
        %3803 = vmatprep.mubr.bf16.mxu0 %v2337
        %3804 = vmatmul.mubr.bf16.gmra.mrb[0].mxu0 %v2336
        %v3805 = vpop.f32.mrb[0].mxu0
        %v3806 = vadd.f32 %v3453, %v3805
        %v3807 = vpop.f32.mrb[0].mxu0
        %v3808 = vadd.f32 %v3455, %v3807
        %v3809 = vpop.f32.mrb[0].mxu0
        %v3810 = vadd.f32 %v3457, %v3809
        %v3811 = vpop.f32.mrb[0].mxu0
        %v3812 = vadd.f32 %v3459, %v3811
        %3813 = vmatprep.mubr.bf16.mxu0 %v2344
        %3814 = vmatmul.mubr.bf16.gmra.mrb[0].mxu0 %v2343
        %v3815 = vpop.f32.mrb[0].mxu0
        %v3816 = vadd.f32 %v3463, %v3815
        %v3817 = vpop.f32.mrb[0].mxu0
        %v3818 = vadd.f32 %v3465, %v3817
        %v3819 = vpop.f32.mrb[0].mxu0
        %v3820 = vadd.f32 %v3467, %v3819
        %v3821 = vpop.f32.mrb[0].mxu0
        %v3822 = vadd.f32 %v3469, %v3821
        %3823 = vmatprep.mubr.bf16.mxu0 %v2351
        %3824 = vmatmul.mubr.bf16.gmra.mrb[0].mxu0 %v2350
        %v3825 = vpop.f32.mrb[0].mxu0
        %v3826 = vadd.f32 %v3473, %v3825
        %v3827 = vpop.f32.mrb[0].mxu0
        %v3828 = vadd.f32 %v3475, %v3827
        %v3829 = vpop.f32.mrb[0].mxu0
        %v3830 = vadd.f32 %v3477, %v3829
        %v3831 = vpop.f32.mrb[0].mxu0
        %v3832 = vadd.f32 %v3479, %v3831
        %3833 = vmatprep.mubr.bf16.mxu0 %v2358
        %3834 = vmatmul.mubr.bf16.gmra.mrb[0].mxu0 %v2357
        %v3835 = vpop.f32.mrb[0].mxu0
        %v3836 = vadd.f32 %v3483, %v3835
        %v3837 = vpop.f32.mrb[0].mxu0
        %v3838 = vadd.f32 %v3485, %v3837
        %v3839 = vpop.f32.mrb[0].mxu0
        %v3840 = vadd.f32 %v3487, %v3839
        %v3841 = vpop.f32.mrb[0].mxu0
        %v3842 = vadd.f32 %v3489, %v3841
        %3843 = vmatprep.mubr.bf16.mxu0 %v2365
        %3844 = vmatmul.mubr.bf16.gmra.mrb[0].mxu0 %v2364
        %v3845 = vpop.f32.mrb[0].mxu0
        %v3846 = vadd.f32 %v3493, %v3845
        %v3847 = vpop.f32.mrb[0].mxu0
        %v3848 = vadd.f32 %v3495, %v3847
        %v3849 = vpop.f32.mrb[0].mxu0
        %v3850 = vadd.f32 %v3497, %v3849
        %v3851 = vpop.f32.mrb[0].mxu0
        %v3852 = vadd.f32 %v3499, %v3851
        %3853 = vdwg.mxu0
        %3854 = vmatprep.subr.bf16.mxu0 %v2920
        %3855 = vmatpush1.bf16.msra.mxu0 %v2919
        %3856 = vmatprep.subr.bf16.mxu0 %v2922
        %3857 = vmatpush1.bf16.msra.mxu0 %v2921
        %3858 = vmatprep.subr.bf16.mxu0 %v2924
        %3859 = vmatpush1.bf16.msra.mxu0 %v2923
        %3860 = vmatprep.subr.bf16.mxu0 %v2926
        %3861 = vmatpush1.bf16.msra.mxu0 %v2925
        %3862 = vmatprep.subr.bf16.mxu0 %v2928
        %3863 = vmatpush1.bf16.msra.mxu0 %v2927
        %3864 = vmatprep.subr.bf16.mxu0 %v2930
        %3865 = vmatpush1.bf16.msra.mxu0 %v2929
        %3866 = vmatprep.subr.bf16.mxu0 %v2932
        %3867 = vmatpush1.bf16.msra.mxu0 %v2931
        %3868 = vmatprep.subr.bf16.mxu0 %v2934
        %3869 = vmatpush1.bf16.msra.mxu0 %v2933
        %3870 = vmatprep.subr.bf16.mxu0 %v2936
        %3871 = vmatpush1.bf16.msra.mxu0 %v2935
        %3872 = vmatprep.subr.bf16.mxu0 %v2938
        %3873 = vmatpush1.bf16.msra.mxu0 %v2937
        %3874 = vmatprep.subr.bf16.mxu0 %v2940
        %3875 = vmatpush1.bf16.msra.mxu0 %v2939
        %3876 = vmatprep.subr.bf16.mxu0 %v2942
        %3877 = vmatpush1.bf16.msra.mxu0 %v2941
        %3878 = vmatprep.subr.bf16.mxu0 %v2944
        %3879 = vmatpush1.bf16.msra.mxu0 %v2943
        %3880 = vmatprep.subr.bf16.mxu0 %v2946
        %3881 = vmatpush1.bf16.msra.mxu0 %v2945
        %3882 = vmatprep.subr.bf16.mxu0 %v2948
        %3883 = vmatpush1.bf16.msra.mxu0 %v2947
        %3884 = vmatprep.subr.bf16.mxu0 %v2950
        %3885 = vmatpush1.bf16.msra.mxu0 %v2949
        %3886 = vmatprep.mubr.bf16.mxu0 %v2150
        %3887 = vmatmul.mubr.bf16.gmra.mrb[0].mxu0 %v2149
        %v3888 = vpop.f32.mrb[0].mxu0
        %v3889 = vadd.f32 %v3536, %v3888
        %v3890 = vpop.f32.mrb[0].mxu0
        %v3891 = vadd.f32 %v3538, %v3890
        %v3892 = vpop.f32.mrb[0].mxu0
        %v3893 = vadd.f32 %v3540, %v3892
        %v3894 = vpop.f32.mrb[0].mxu0
        %v3895 = vadd.f32 %v3542, %v3894
        %3896 = vmatprep.mubr.bf16.mxu0 %v2157
        %3897 = vmatmul.mubr.bf16.gmra.mrb[0].mxu0 %v2156
        %v3898 = vpop.f32.mrb[0].mxu0
        %v3899 = vadd.f32 %v3546, %v3898
        %v3900 = vpop.f32.mrb[0].mxu0
        %v3901 = vadd.f32 %v3548, %v3900
        %v3902 = vpop.f32.mrb[0].mxu0
        %v3903 = vadd.f32 %v3550, %v3902
        %v3904 = vpop.f32.mrb[0].mxu0
        %v3905 = vadd.f32 %v3552, %v3904
        %3906 = vmatprep.mubr.bf16.mxu0 %v2164
        %3907 = vmatmul.mubr.bf16.gmra.mrb[0].mxu0 %v2163
        %v3908 = vpop.f32.mrb[0].mxu0
        %v3909 = vadd.f32 %v3556, %v3908
        %v3910 = vpop.f32.mrb[0].mxu0
        %v3911 = vadd.f32 %v3558, %v3910
        %v3912 = vpop.f32.mrb[0].mxu0
        %v3913 = vadd.f32 %v3560, %v3912
        %v3914 = vpop.f32.mrb[0].mxu0
        %v3915 = vadd.f32 %v3562, %v3914
        %3916 = vmatprep.mubr.bf16.mxu0 %v2171
        %3917 = vmatmul.mubr.bf16.gmra.mrb[0].mxu0 %v2170
        %v3918 = vpop.f32.mrb[0].mxu0
        %v3919 = vadd.f32 %v3566, %v3918
        %v3920 = vpop.f32.mrb[0].mxu0
        %v3921 = vadd.f32 %v3568, %v3920
        %v3922 = vpop.f32.mrb[0].mxu0
        %v3923 = vadd.f32 %v3570, %v3922
        %v3924 = vpop.f32.mrb[0].mxu0
        %v3925 = vadd.f32 %v3572, %v3924
        %3926 = vmatprep.mubr.bf16.mxu0 %v2178
        %3927 = vmatmul.mubr.bf16.gmra.mrb[0].mxu0 %v2177
        %v3928 = vpop.f32.mrb[0].mxu0
        %v3929 = vadd.f32 %v3576, %v3928
        %v3930 = vpop.f32.mrb[0].mxu0
        %v3931 = vadd.f32 %v3578, %v3930
        %v3932 = vpop.f32.mrb[0].mxu0
        %v3933 = vadd.f32 %v3580, %v3932
        %v3934 = vpop.f32.mrb[0].mxu0
        %v3935 = vadd.f32 %v3582, %v3934
        %3936 = vmatprep.mubr.bf16.mxu0 %v2185
        %3937 = vmatmul.mubr.bf16.gmra.mrb[0].mxu0 %v2184
        %v3938 = vpop.f32.mrb[0].mxu0
        %v3939 = vadd.f32 %v3586, %v3938
        %v3940 = vpop.f32.mrb[0].mxu0
        %v3941 = vadd.f32 %v3588, %v3940
        %v3942 = vpop.f32.mrb[0].mxu0
        %v3943 = vadd.f32 %v3590, %v3942
        %v3944 = vpop.f32.mrb[0].mxu0
        %v3945 = vadd.f32 %v3592, %v3944
        %3946 = vmatprep.mubr.bf16.mxu0 %v2192
        %3947 = vmatmul.mubr.bf16.gmra.mrb[0].mxu0 %v2191
        %v3948 = vpop.f32.mrb[0].mxu0
        %v3949 = vadd.f32 %v3596, %v3948
        %v3950 = vpop.f32.mrb[0].mxu0
        %v3951 = vadd.f32 %v3598, %v3950
        %v3952 = vpop.f32.mrb[0].mxu0
        %v3953 = vadd.f32 %v3600, %v3952
        %v3954 = vpop.f32.mrb[0].mxu0
        %v3955 = vadd.f32 %v3602, %v3954
        %3956 = vmatprep.mubr.bf16.mxu0 %v2199
        %3957 = vmatmul.mubr.bf16.gmra.mrb[0].mxu0 %v2198
        %v3958 = vpop.f32.mrb[0].mxu0
        %v3959 = vadd.f32 %v3606, %v3958
        %v3960 = vpop.f32.mrb[0].mxu0
        %v3961 = vadd.f32 %v3608, %v3960
        %v3962 = vpop.f32.mrb[0].mxu0
        %v3963 = vadd.f32 %v3610, %v3962
        %v3964 = vpop.f32.mrb[0].mxu0
        %v3965 = vadd.f32 %v3612, %v3964
        %3966 = vmatprep.mubr.bf16.mxu0 %v2206
        %3967 = vmatmul.mubr.bf16.gmra.mrb[0].mxu0 %v2205
        %v3968 = vpop.f32.mrb[0].mxu0
        %v3969 = vadd.f32 %v3616, %v3968
        %v3970 = vpop.f32.mrb[0].mxu0
        %v3971 = vadd.f32 %v3618, %v3970
        %v3972 = vpop.f32.mrb[0].mxu0
        %v3973 = vadd.f32 %v3620, %v3972
        %v3974 = vpop.f32.mrb[0].mxu0
        %v3975 = vadd.f32 %v3622, %v3974
        %3976 = vmatprep.mubr.bf16.mxu0 %v2213
        %3977 = vmatmul.mubr.bf16.gmra.mrb[0].mxu0 %v2212
        %v3978 = vpop.f32.mrb[0].mxu0
        %v3979 = vadd.f32 %v3626, %v3978
        %v3980 = vpop.f32.mrb[0].mxu0
        %v3981 = vadd.f32 %v3628, %v3980
        %v3982 = vpop.f32.mrb[0].mxu0
        %v3983 = vadd.f32 %v3630, %v3982
        %v3984 = vpop.f32.mrb[0].mxu0
        %v3985 = vadd.f32 %v3632, %v3984
        %3986 = vmatprep.mubr.bf16.mxu0 %v2220
        %3987 = vmatmul.mubr.bf16.gmra.mrb[0].mxu0 %v2219
        %v3988 = vpop.f32.mrb[0].mxu0
        %v3989 = vadd.f32 %v3636, %v3988
        %v3990 = vpop.f32.mrb[0].mxu0
        %v3991 = vadd.f32 %v3638, %v3990
        %v3992 = vpop.f32.mrb[0].mxu0
        %v3993 = vadd.f32 %v3640, %v3992
        %v3994 = vpop.f32.mrb[0].mxu0
        %v3995 = vadd.f32 %v3642, %v3994
        %3996 = vmatprep.mubr.bf16.mxu0 %v2227
        %3997 = vmatmul.mubr.bf16.gmra.mrb[0].mxu0 %v2226
        %v3998 = vpop.f32.mrb[0].mxu0
        %v3999 = vadd.f32 %v3646, %v3998
        %v4000 = vpop.f32.mrb[0].mxu0
        %v4001 = vadd.f32 %v3648, %v4000
        %v4002 = vpop.f32.mrb[0].mxu0
        %v4003 = vadd.f32 %v3650, %v4002
        %v4004 = vpop.f32.mrb[0].mxu0
        %v4005 = vadd.f32 %v3652, %v4004
        %4006 = vmatprep.mubr.bf16.mxu0 %v2234
        %4007 = vmatmul.mubr.bf16.gmra.mrb[0].mxu0 %v2233
        %v4008 = vpop.f32.mrb[0].mxu0
        %v4009 = vadd.f32 %v3656, %v4008
        %v4010 = vpop.f32.mrb[0].mxu0
        %v4011 = vadd.f32 %v3658, %v4010
        %v4012 = vpop.f32.mrb[0].mxu0
        %v4013 = vadd.f32 %v3660, %v4012
        %v4014 = vpop.f32.mrb[0].mxu0
        %v4015 = vadd.f32 %v3662, %v4014
        %4016 = vmatprep.mubr.bf16.mxu0 %v2241
        %4017 = vmatmul.mubr.bf16.gmra.mrb[0].mxu0 %v2240
        %v4018 = vpop.f32.mrb[0].mxu0
        %v4019 = vadd.f32 %v3666, %v4018
        %v4020 = vpop.f32.mrb[0].mxu0
        %v4021 = vadd.f32 %v3668, %v4020
        %v4022 = vpop.f32.mrb[0].mxu0
        %v4023 = vadd.f32 %v3670, %v4022
        %v4024 = vpop.f32.mrb[0].mxu0
        %v4025 = vadd.f32 %v3672, %v4024
        %4026 = vmatprep.mubr.bf16.mxu0 %v2248
        %4027 = vmatmul.mubr.bf16.gmra.mrb[0].mxu0 %v2247
        %v4028 = vpop.f32.mrb[0].mxu0
        %v4029 = vadd.f32 %v3676, %v4028
        %v4030 = vpop.f32.mrb[0].mxu0
        %v4031 = vadd.f32 %v3678, %v4030
        %v4032 = vpop.f32.mrb[0].mxu0
        %v4033 = vadd.f32 %v3680, %v4032
        %v4034 = vpop.f32.mrb[0].mxu0
        %v4035 = vadd.f32 %v3682, %v4034
        %4036 = vmatprep.mubr.bf16.mxu0 %v2255
        %4037 = vmatmul.mubr.bf16.gmra.mrb[0].mxu0 %v2254
        %v4038 = vpop.f32.mrb[0].mxu0
        %v4039 = vadd.f32 %v3686, %v4038
        %v4040 = vpop.f32.mrb[0].mxu0
        %v4041 = vadd.f32 %v3688, %v4040
        %v4042 = vpop.f32.mrb[0].mxu0
        %v4043 = vadd.f32 %v3690, %v4042
        %v4044 = vpop.f32.mrb[0].mxu0
        %v4045 = vadd.f32 %v3692, %v4044
        %4046 = vmatprep.mubr.bf16.mxu0 %v2262
        %4047 = vmatmul.mubr.bf16.gmra.mrb[0].mxu0 %v2261
        %v4048 = vpop.f32.mrb[0].mxu0
        %v4049 = vadd.f32 %v3696, %v4048
        %v4050 = vpop.f32.mrb[0].mxu0
        %v4051 = vadd.f32 %v3698, %v4050
        %v4052 = vpop.f32.mrb[0].mxu0
        %v4053 = vadd.f32 %v3700, %v4052
        %v4054 = vpop.f32.mrb[0].mxu0
        %v4055 = vadd.f32 %v3702, %v4054
        %4056 = vmatprep.mubr.bf16.mxu0 %v2269
        %4057 = vmatmul.mubr.bf16.gmra.mrb[0].mxu0 %v2268
        %v4058 = vpop.f32.mrb[0].mxu0
        %v4059 = vadd.f32 %v3706, %v4058
        %v4060 = vpop.f32.mrb[0].mxu0
        %v4061 = vadd.f32 %v3708, %v4060
        %v4062 = vpop.f32.mrb[0].mxu0
        %v4063 = vadd.f32 %v3710, %v4062
        %v4064 = vpop.f32.mrb[0].mxu0
        %v4065 = vadd.f32 %v3712, %v4064
        %4066 = vmatprep.mubr.bf16.mxu0 %v2276
        %4067 = vmatmul.mubr.bf16.gmra.mrb[0].mxu0 %v2275
        %v4068 = vpop.f32.mrb[0].mxu0
        %v4069 = vadd.f32 %v3716, %v4068
        %v4070 = vpop.f32.mrb[0].mxu0
        %v4071 = vadd.f32 %v3718, %v4070
        %v4072 = vpop.f32.mrb[0].mxu0
        %v4073 = vadd.f32 %v3720, %v4072
        %v4074 = vpop.f32.mrb[0].mxu0
        %v4075 = vadd.f32 %v3722, %v4074
        %4076 = vmatprep.mubr.bf16.mxu0 %v2283
        %4077 = vmatmul.mubr.bf16.gmra.mrb[0].mxu0 %v2282
        %v4078 = vpop.f32.mrb[0].mxu0
        %v4079 = vadd.f32 %v3726, %v4078
        %v4080 = vpop.f32.mrb[0].mxu0
        %v4081 = vadd.f32 %v3728, %v4080
        %v4082 = vpop.f32.mrb[0].mxu0
        %v4083 = vadd.f32 %v3730, %v4082
        %v4084 = vpop.f32.mrb[0].mxu0
        %v4085 = vadd.f32 %v3732, %v4084
        %4086 = vmatprep.mubr.bf16.mxu0 %v2290
        %4087 = vmatmul.mubr.bf16.gmra.mrb[0].mxu0 %v2289
        %v4088 = vpop.f32.mrb[0].mxu0
        %v4089 = vadd.f32 %v3736, %v4088
        %v4090 = vpop.f32.mrb[0].mxu0
        %v4091 = vadd.f32 %v3738, %v4090
        %v4092 = vpop.f32.mrb[0].mxu0
        %v4093 = vadd.f32 %v3740, %v4092
        %v4094 = vpop.f32.mrb[0].mxu0
        %v4095 = vadd.f32 %v3742, %v4094
        %4096 = vmatprep.mubr.bf16.mxu0 %v2297
        %4097 = vmatmul.mubr.bf16.gmra.mrb[0].mxu0 %v2296
        %v4098 = vpop.f32.mrb[0].mxu0
        %v4099 = vadd.f32 %v3746, %v4098
        %v4100 = vpop.f32.mrb[0].mxu0
        %v4101 = vadd.f32 %v3748, %v4100
        %v4102 = vpop.f32.mrb[0].mxu0
        %v4103 = vadd.f32 %v3750, %v4102
        %v4104 = vpop.f32.mrb[0].mxu0
        %v4105 = vadd.f32 %v3752, %v4104
        %4106 = vmatprep.mubr.bf16.mxu0 %v2304
        %4107 = vmatmul.mubr.bf16.gmra.mrb[0].mxu0 %v2303
        %v4108 = vpop.f32.mrb[0].mxu0
        %v4109 = vadd.f32 %v3756, %v4108
        %v4110 = vpop.f32.mrb[0].mxu0
        %v4111 = vadd.f32 %v3758, %v4110
        %v4112 = vpop.f32.mrb[0].mxu0
        %v4113 = vadd.f32 %v3760, %v4112
        %v4114 = vpop.f32.mrb[0].mxu0
        %v4115 = vadd.f32 %v3762, %v4114
        %4116 = vmatprep.mubr.bf16.mxu0 %v2311
        %4117 = vmatmul.mubr.bf16.gmra.mrb[0].mxu0 %v2310
        %v4118 = vpop.f32.mrb[0].mxu0
        %v4119 = vadd.f32 %v3766, %v4118
        %v4120 = vpop.f32.mrb[0].mxu0
        %v4121 = vadd.f32 %v3768, %v4120
        %v4122 = vpop.f32.mrb[0].mxu0
        %v4123 = vadd.f32 %v3770, %v4122
        %v4124 = vpop.f32.mrb[0].mxu0
        %v4125 = vadd.f32 %v3772, %v4124
        %4126 = vmatprep.mubr.bf16.mxu0 %v2318
        %4127 = vmatmul.mubr.bf16.gmra.mrb[0].mxu0 %v2317
        %v4128 = vpop.f32.mrb[0].mxu0
        %v4129 = vadd.f32 %v3776, %v4128
        %v4130 = vpop.f32.mrb[0].mxu0
        %v4131 = vadd.f32 %v3778, %v4130
        %v4132 = vpop.f32.mrb[0].mxu0
        %v4133 = vadd.f32 %v3780, %v4132
        %v4134 = vpop.f32.mrb[0].mxu0
        %v4135 = vadd.f32 %v3782, %v4134
        %4136 = vmatprep.mubr.bf16.mxu0 %v2325
        %4137 = vmatmul.mubr.bf16.gmra.mrb[0].mxu0 %v2324
        %v4138 = vpop.f32.mrb[0].mxu0
        %v4139 = vadd.f32 %v3786, %v4138
        %v4140 = vpop.f32.mrb[0].mxu0
        %v4141 = vadd.f32 %v3788, %v4140
        %v4142 = vpop.f32.mrb[0].mxu0
        %v4143 = vadd.f32 %v3790, %v4142
        %v4144 = vpop.f32.mrb[0].mxu0
        %v4145 = vadd.f32 %v3792, %v4144
        %4146 = vmatprep.mubr.bf16.mxu0 %v2332
        %4147 = vmatmul.mubr.bf16.gmra.mrb[0].mxu0 %v2331
        %v4148 = vpop.f32.mrb[0].mxu0
        %v4149 = vadd.f32 %v3796, %v4148
        %v4150 = vpop.f32.mrb[0].mxu0
        %v4151 = vadd.f32 %v3798, %v4150
        %v4152 = vpop.f32.mrb[0].mxu0
        %v4153 = vadd.f32 %v3800, %v4152
        %v4154 = vpop.f32.mrb[0].mxu0
        %v4155 = vadd.f32 %v3802, %v4154
        %4156 = vmatprep.mubr.bf16.mxu0 %v2339
        %4157 = vmatmul.mubr.bf16.gmra.mrb[0].mxu0 %v2338
        %v4158 = vpop.f32.mrb[0].mxu0
        %v4159 = vadd.f32 %v3806, %v4158
        %v4160 = vpop.f32.mrb[0].mxu0
        %v4161 = vadd.f32 %v3808, %v4160
        %v4162 = vpop.f32.mrb[0].mxu0
        %v4163 = vadd.f32 %v3810, %v4162
        %v4164 = vpop.f32.mrb[0].mxu0
        %v4165 = vadd.f32 %v3812, %v4164
        %4166 = vmatprep.mubr.bf16.mxu0 %v2346
        %4167 = vmatmul.mubr.bf16.gmra.mrb[0].mxu0 %v2345
        %v4168 = vpop.f32.mrb[0].mxu0
        %v4169 = vadd.f32 %v3816, %v4168
        %v4170 = vpop.f32.mrb[0].mxu0
        %v4171 = vadd.f32 %v3818, %v4170
        %v4172 = vpop.f32.mrb[0].mxu0
        %v4173 = vadd.f32 %v3820, %v4172
        %v4174 = vpop.f32.mrb[0].mxu0
        %v4175 = vadd.f32 %v3822, %v4174
        %4176 = vmatprep.mubr.bf16.mxu0 %v2353
        %4177 = vmatmul.mubr.bf16.gmra.mrb[0].mxu0 %v2352
        %v4178 = vpop.f32.mrb[0].mxu0
        %v4179 = vadd.f32 %v3826, %v4178
        %v4180 = vpop.f32.mrb[0].mxu0
        %v4181 = vadd.f32 %v3828, %v4180
        %v4182 = vpop.f32.mrb[0].mxu0
        %v4183 = vadd.f32 %v3830, %v4182
        %v4184 = vpop.f32.mrb[0].mxu0
        %v4185 = vadd.f32 %v3832, %v4184
        %4186 = vmatprep.mubr.bf16.mxu0 %v2360
        %4187 = vmatmul.mubr.bf16.gmra.mrb[0].mxu0 %v2359
        %v4188 = vpop.f32.mrb[0].mxu0
        %v4189 = vadd.f32 %v3836, %v4188
        %v4190 = vpop.f32.mrb[0].mxu0
        %v4191 = vadd.f32 %v3838, %v4190
        %v4192 = vpop.f32.mrb[0].mxu0
        %v4193 = vadd.f32 %v3840, %v4192
        %v4194 = vpop.f32.mrb[0].mxu0
        %v4195 = vadd.f32 %v3842, %v4194
        %4196 = vmatprep.mubr.bf16.mxu0 %v2367
        %4197 = vmatmul.mubr.bf16.gmra.mrb[0].mxu0 %v2366
        %v4198 = vpop.f32.mrb[0].mxu0
        %v4199 = vadd.f32 %v3846, %v4198
        %v4200 = vpop.f32.mrb[0].mxu0
        %v4201 = vadd.f32 %v3848, %v4200
        %v4202 = vpop.f32.mrb[0].mxu0
        %v4203 = vadd.f32 %v3850, %v4202
        %v4204 = vpop.f32.mrb[0].mxu0
        %v4205 = vadd.f32 %v3852, %v4204
        %4206 = vdwg.mxu0
        %4207 = vmatprep.subr.bf16.mxu0 %v2952
        %4208 = vmatpush1.bf16.msra.mxu0 %v2951
        %4209 = vmatprep.subr.bf16.mxu0 0
        %4210 = vmatpush1.bf16.msra.mxu0 0
        %4211 = vmatprep.subr.bf16.mxu0 0
        %4212 = vmatpush1.bf16.msra.mxu0 0
        %4213 = vmatprep.subr.bf16.mxu0 0
        %4214 = vmatpush1.bf16.msra.mxu0 0
        %4215 = vmatprep.subr.bf16.mxu0 0
        %4216 = vmatpush1.bf16.msra.mxu0 0
        %4217 = vmatprep.subr.bf16.mxu0 0
        %4218 = vmatpush1.bf16.msra.mxu0 0
        %4219 = vmatprep.subr.bf16.mxu0 0
        %4220 = vmatpush1.bf16.msra.mxu0 0
        %4221 = vmatprep.subr.bf16.mxu0 0
        %4222 = vmatpush1.bf16.msra.mxu0 0
        %4223 = vmatprep.subr.bf16.mxu0 0
        %4224 = vmatpush1.bf16.msra.mxu0 0
        %4225 = vmatprep.subr.bf16.mxu0 0
        %4226 = vmatpush1.bf16.msra.mxu0 0
        %4227 = vmatprep.subr.bf16.mxu0 0
        %4228 = vmatpush1.bf16.msra.mxu0 0
        %4229 = vmatprep.subr.bf16.mxu0 0
        %4230 = vmatpush1.bf16.msra.mxu0 0
        %4231 = vmatprep.subr.bf16.mxu0 0
        %4232 = vmatpush1.bf16.msra.mxu0 0
        %4233 = vmatprep.subr.bf16.mxu0 0
        %4234 = vmatpush1.bf16.msra.mxu0 0
        %4235 = vmatprep.subr.bf16.mxu0 0
        %4236 = vmatpush1.bf16.msra.mxu0 0
        %4237 = vmatprep.subr.bf16.mxu0 0
        %4238 = vmatpush1.bf16.msra.mxu0 0
        %4239 = vmatprep.mubr.bf16.mxu0 0
        %4240 = vmatmul.mubr.bf16.gmra.mrb[0].mxu0 %v3053
        %v4241 = vpop.f32.mrb[0].mxu0
        %v4242 = vadd.f32 %v3889, %v4241
        %v4243 = vpop.f32.mrb[0].mxu0
        %v4244 = vadd.f32 %v3891, %v4243
        %v4245 = vpop.f32.mrb[0].mxu0
        %v4246 = vadd.f32 %v3893, %v4245
        %v4247 = vpop.f32.mrb[0].mxu0
        %v4248 = vadd.f32 %v3895, %v4247
        %4249 = vmatprep.mubr.bf16.mxu0 0
        %4250 = vmatmul.mubr.bf16.gmra.mrb[0].mxu0 %v3056
        %v4251 = vpop.f32.mrb[0].mxu0
        %v4252 = vadd.f32 %v3899, %v4251
        %v4253 = vpop.f32.mrb[0].mxu0
        %v4254 = vadd.f32 %v3901, %v4253
        %v4255 = vpop.f32.mrb[0].mxu0
        %v4256 = vadd.f32 %v3903, %v4255
        %v4257 = vpop.f32.mrb[0].mxu0
        %v4258 = vadd.f32 %v3905, %v4257
        %4259 = vmatprep.mubr.bf16.mxu0 0
        %4260 = vmatmul.mubr.bf16.gmra.mrb[0].mxu0 %v3059
        %v4261 = vpop.f32.mrb[0].mxu0
        %v4262 = vadd.f32 %v3909, %v4261
        %v4263 = vpop.f32.mrb[0].mxu0
        %v4264 = vadd.f32 %v3911, %v4263
        %v4265 = vpop.f32.mrb[0].mxu0
        %v4266 = vadd.f32 %v3913, %v4265
        %v4267 = vpop.f32.mrb[0].mxu0
        %v4268 = vadd.f32 %v3915, %v4267
        %4269 = vmatprep.mubr.bf16.mxu0 0
        %4270 = vmatmul.mubr.bf16.gmra.mrb[0].mxu0 %v3062
        %v4271 = vpop.f32.mrb[0].mxu0
        %v4272 = vadd.f32 %v3919, %v4271
        %v4273 = vpop.f32.mrb[0].mxu0
        %v4274 = vadd.f32 %v3921, %v4273
        %v4275 = vpop.f32.mrb[0].mxu0
        %v4276 = vadd.f32 %v3923, %v4275
        %v4277 = vpop.f32.mrb[0].mxu0
        %v4278 = vadd.f32 %v3925, %v4277
        %4279 = vmatprep.mubr.bf16.mxu0 0
        %4280 = vmatmul.mubr.bf16.gmra.mrb[0].mxu0 %v3065
        %v4281 = vpop.f32.mrb[0].mxu0
        %v4282 = vadd.f32 %v3929, %v4281
        %v4283 = vpop.f32.mrb[0].mxu0
        %v4284 = vadd.f32 %v3931, %v4283
        %v4285 = vpop.f32.mrb[0].mxu0
        %v4286 = vadd.f32 %v3933, %v4285
        %v4287 = vpop.f32.mrb[0].mxu0
        %v4288 = vadd.f32 %v3935, %v4287
        %4289 = vmatprep.mubr.bf16.mxu0 0
        %4290 = vmatmul.mubr.bf16.gmra.mrb[0].mxu0 %v3068
        %v4291 = vpop.f32.mrb[0].mxu0
        %v4292 = vadd.f32 %v3939, %v4291
        %v4293 = vpop.f32.mrb[0].mxu0
        %v4294 = vadd.f32 %v3941, %v4293
        %v4295 = vpop.f32.mrb[0].mxu0
        %v4296 = vadd.f32 %v3943, %v4295
        %v4297 = vpop.f32.mrb[0].mxu0
        %v4298 = vadd.f32 %v3945, %v4297
        %4299 = vmatprep.mubr.bf16.mxu0 0
        %4300 = vmatmul.mubr.bf16.gmra.mrb[0].mxu0 %v3071
        %v4301 = vpop.f32.mrb[0].mxu0
        %v4302 = vadd.f32 %v3949, %v4301
        %v4303 = vpop.f32.mrb[0].mxu0
        %v4304 = vadd.f32 %v3951, %v4303
        %v4305 = vpop.f32.mrb[0].mxu0
        %v4306 = vadd.f32 %v3953, %v4305
        %v4307 = vpop.f32.mrb[0].mxu0
        %v4308 = vadd.f32 %v3955, %v4307
        %4309 = vmatprep.mubr.bf16.mxu0 0
        %4310 = vmatmul.mubr.bf16.gmra.mrb[0].mxu0 %v3074
        %v4311 = vpop.f32.mrb[0].mxu0
        %v4312 = vadd.f32 %v3959, %v4311
        %v4313 = vpop.f32.mrb[0].mxu0
        %v4314 = vadd.f32 %v3961, %v4313
        %v4315 = vpop.f32.mrb[0].mxu0
        %v4316 = vadd.f32 %v3963, %v4315
        %v4317 = vpop.f32.mrb[0].mxu0
        %v4318 = vadd.f32 %v3965, %v4317
        %4319 = vmatprep.mubr.bf16.mxu0 0
        %4320 = vmatmul.mubr.bf16.gmra.mrb[0].mxu0 %v3077
        %v4321 = vpop.f32.mrb[0].mxu0
        %v4322 = vadd.f32 %v3969, %v4321
        %v4323 = vpop.f32.mrb[0].mxu0
        %v4324 = vadd.f32 %v3971, %v4323
        %v4325 = vpop.f32.mrb[0].mxu0
        %v4326 = vadd.f32 %v3973, %v4325
        %v4327 = vpop.f32.mrb[0].mxu0
        %v4328 = vadd.f32 %v3975, %v4327
        %4329 = vmatprep.mubr.bf16.mxu0 0
        %4330 = vmatmul.mubr.bf16.gmra.mrb[0].mxu0 %v3080
        %v4331 = vpop.f32.mrb[0].mxu0
        %v4332 = vadd.f32 %v3979, %v4331
        %v4333 = vpop.f32.mrb[0].mxu0
        %v4334 = vadd.f32 %v3981, %v4333
        %v4335 = vpop.f32.mrb[0].mxu0
        %v4336 = vadd.f32 %v3983, %v4335
        %v4337 = vpop.f32.mrb[0].mxu0
        %v4338 = vadd.f32 %v3985, %v4337
        %4339 = vmatprep.mubr.bf16.mxu0 0
        %4340 = vmatmul.mubr.bf16.gmra.mrb[0].mxu0 %v3083
        %v4341 = vpop.f32.mrb[0].mxu0
        %v4342 = vadd.f32 %v3989, %v4341
        %v4343 = vpop.f32.mrb[0].mxu0
        %v4344 = vadd.f32 %v3991, %v4343
        %v4345 = vpop.f32.mrb[0].mxu0
        %v4346 = vadd.f32 %v3993, %v4345
        %v4347 = vpop.f32.mrb[0].mxu0
        %v4348 = vadd.f32 %v3995, %v4347
        %4349 = vmatprep.mubr.bf16.mxu0 0
        %4350 = vmatmul.mubr.bf16.gmra.mrb[0].mxu0 %v3086
        %v4351 = vpop.f32.mrb[0].mxu0
        %v4352 = vadd.f32 %v3999, %v4351
        %v4353 = vpop.f32.mrb[0].mxu0
        %v4354 = vadd.f32 %v4001, %v4353
        %v4355 = vpop.f32.mrb[0].mxu0
        %v4356 = vadd.f32 %v4003, %v4355
        %v4357 = vpop.f32.mrb[0].mxu0
        %v4358 = vadd.f32 %v4005, %v4357
        %4359 = vmatprep.mubr.bf16.mxu0 0
        %4360 = vmatmul.mubr.bf16.gmra.mrb[0].mxu0 %v3089
        %v4361 = vpop.f32.mrb[0].mxu0
        %v4362 = vadd.f32 %v4009, %v4361
        %v4363 = vpop.f32.mrb[0].mxu0
        %v4364 = vadd.f32 %v4011, %v4363
        %v4365 = vpop.f32.mrb[0].mxu0
        %v4366 = vadd.f32 %v4013, %v4365
        %v4367 = vpop.f32.mrb[0].mxu0
        %v4368 = vadd.f32 %v4015, %v4367
        %4369 = vmatprep.mubr.bf16.mxu0 0
        %4370 = vmatmul.mubr.bf16.gmra.mrb[0].mxu0 %v3092
        %v4371 = vpop.f32.mrb[0].mxu0
        %v4372 = vadd.f32 %v4019, %v4371
        %v4373 = vpop.f32.mrb[0].mxu0
        %v4374 = vadd.f32 %v4021, %v4373
        %v4375 = vpop.f32.mrb[0].mxu0
        %v4376 = vadd.f32 %v4023, %v4375
        %v4377 = vpop.f32.mrb[0].mxu0
        %v4378 = vadd.f32 %v4025, %v4377
        %4379 = vmatprep.mubr.bf16.mxu0 0
        %4380 = vmatmul.mubr.bf16.gmra.mrb[0].mxu0 %v3095
        %v4381 = vpop.f32.mrb[0].mxu0
        %v4382 = vadd.f32 %v4029, %v4381
        %v4383 = vpop.f32.mrb[0].mxu0
        %v4384 = vadd.f32 %v4031, %v4383
        %v4385 = vpop.f32.mrb[0].mxu0
        %v4386 = vadd.f32 %v4033, %v4385
        %v4387 = vpop.f32.mrb[0].mxu0
        %v4388 = vadd.f32 %v4035, %v4387
        %4389 = vmatprep.mubr.bf16.mxu0 0
        %4390 = vmatmul.mubr.bf16.gmra.mrb[0].mxu0 %v3098
        %v4391 = vpop.f32.mrb[0].mxu0
        %v4392 = vadd.f32 %v4039, %v4391
        %v4393 = vpop.f32.mrb[0].mxu0
        %v4394 = vadd.f32 %v4041, %v4393
        %v4395 = vpop.f32.mrb[0].mxu0
        %v4396 = vadd.f32 %v4043, %v4395
        %v4397 = vpop.f32.mrb[0].mxu0
        %v4398 = vadd.f32 %v4045, %v4397
        %4399 = vmatprep.mubr.bf16.mxu0 0
        %4400 = vmatmul.mubr.bf16.gmra.mrb[0].mxu0 %v3101
        %v4401 = vpop.f32.mrb[0].mxu0
        %v4402 = vadd.f32 %v4049, %v4401
        %v4403 = vpop.f32.mrb[0].mxu0
        %v4404 = vadd.f32 %v4051, %v4403
        %v4405 = vpop.f32.mrb[0].mxu0
        %v4406 = vadd.f32 %v4053, %v4405
        %v4407 = vpop.f32.mrb[0].mxu0
        %v4408 = vadd.f32 %v4055, %v4407
        %4409 = vmatprep.mubr.bf16.mxu0 0
        %4410 = vmatmul.mubr.bf16.gmra.mrb[0].mxu0 %v3104
        %v4411 = vpop.f32.mrb[0].mxu0
        %v4412 = vadd.f32 %v4059, %v4411
        %v4413 = vpop.f32.mrb[0].mxu0
        %v4414 = vadd.f32 %v4061, %v4413
        %v4415 = vpop.f32.mrb[0].mxu0
        %v4416 = vadd.f32 %v4063, %v4415
        %v4417 = vpop.f32.mrb[0].mxu0
        %v4418 = vadd.f32 %v4065, %v4417
        %4419 = vmatprep.mubr.bf16.mxu0 0
        %4420 = vmatmul.mubr.bf16.gmra.mrb[0].mxu0 %v3107
        %v4421 = vpop.f32.mrb[0].mxu0
        %v4422 = vadd.f32 %v4069, %v4421
        %v4423 = vpop.f32.mrb[0].mxu0
        %v4424 = vadd.f32 %v4071, %v4423
        %v4425 = vpop.f32.mrb[0].mxu0
        %v4426 = vadd.f32 %v4073, %v4425
        %v4427 = vpop.f32.mrb[0].mxu0
        %v4428 = vadd.f32 %v4075, %v4427
        %4429 = vmatprep.mubr.bf16.mxu0 0
        %4430 = vmatmul.mubr.bf16.gmra.mrb[0].mxu0 %v3110
        %v4431 = vpop.f32.mrb[0].mxu0
        %v4432 = vadd.f32 %v4079, %v4431
        %v4433 = vpop.f32.mrb[0].mxu0
        %v4434 = vadd.f32 %v4081, %v4433
        %v4435 = vpop.f32.mrb[0].mxu0
        %v4436 = vadd.f32 %v4083, %v4435
        %v4437 = vpop.f32.mrb[0].mxu0
        %v4438 = vadd.f32 %v4085, %v4437
        %4439 = vmatprep.mubr.bf16.mxu0 0
        %4440 = vmatmul.mubr.bf16.gmra.mrb[0].mxu0 %v3113
        %v4441 = vpop.f32.mrb[0].mxu0
        %v4442 = vadd.f32 %v4089, %v4441
        %v4443 = vpop.f32.mrb[0].mxu0
        %v4444 = vadd.f32 %v4091, %v4443
        %v4445 = vpop.f32.mrb[0].mxu0
        %v4446 = vadd.f32 %v4093, %v4445
        %v4447 = vpop.f32.mrb[0].mxu0
        %v4448 = vadd.f32 %v4095, %v4447
        %4449 = vmatprep.mubr.bf16.mxu0 0
        %4450 = vmatmul.mubr.bf16.gmra.mrb[0].mxu0 %v3116
        %v4451 = vpop.f32.mrb[0].mxu0
        %v4452 = vadd.f32 %v4099, %v4451
        %v4453 = vpop.f32.mrb[0].mxu0
        %v4454 = vadd.f32 %v4101, %v4453
        %v4455 = vpop.f32.mrb[0].mxu0
        %v4456 = vadd.f32 %v4103, %v4455
        %v4457 = vpop.f32.mrb[0].mxu0
        %v4458 = vadd.f32 %v4105, %v4457
        %4459 = vmatprep.mubr.bf16.mxu0 0
        %4460 = vmatmul.mubr.bf16.gmra.mrb[0].mxu0 %v3119
        %v4461 = vpop.f32.mrb[0].mxu0
        %v4462 = vadd.f32 %v4109, %v4461
        %v4463 = vpop.f32.mrb[0].mxu0
        %v4464 = vadd.f32 %v4111, %v4463
        %v4465 = vpop.f32.mrb[0].mxu0
        %v4466 = vadd.f32 %v4113, %v4465
        %v4467 = vpop.f32.mrb[0].mxu0
        %v4468 = vadd.f32 %v4115, %v4467
        %4469 = vmatprep.mubr.bf16.mxu0 0
        %4470 = vmatmul.mubr.bf16.gmra.mrb[0].mxu0 %v3122
        %v4471 = vpop.f32.mrb[0].mxu0
        %v4472 = vadd.f32 %v4119, %v4471
        %v4473 = vpop.f32.mrb[0].mxu0
        %v4474 = vadd.f32 %v4121, %v4473
        %v4475 = vpop.f32.mrb[0].mxu0
        %v4476 = vadd.f32 %v4123, %v4475
        %v4477 = vpop.f32.mrb[0].mxu0
        %v4478 = vadd.f32 %v4125, %v4477
        %4479 = vmatprep.mubr.bf16.mxu0 0
        %4480 = vmatmul.mubr.bf16.gmra.mrb[0].mxu0 %v3125
        %v4481 = vpop.f32.mrb[0].mxu0
        %v4482 = vadd.f32 %v4129, %v4481
        %v4483 = vpop.f32.mrb[0].mxu0
        %v4484 = vadd.f32 %v4131, %v4483
        %v4485 = vpop.f32.mrb[0].mxu0
        %v4486 = vadd.f32 %v4133, %v4485
        %v4487 = vpop.f32.mrb[0].mxu0
        %v4488 = vadd.f32 %v4135, %v4487
        %4489 = vmatprep.mubr.bf16.mxu0 0
        %4490 = vmatmul.mubr.bf16.gmra.mrb[0].mxu0 %v3128
        %v4491 = vpop.f32.mrb[0].mxu0
        %v4492 = vadd.f32 %v4139, %v4491
        %v4493 = vpop.f32.mrb[0].mxu0
        %v4494 = vadd.f32 %v4141, %v4493
        %v4495 = vpop.f32.mrb[0].mxu0
        %v4496 = vadd.f32 %v4143, %v4495
        %v4497 = vpop.f32.mrb[0].mxu0
        %v4498 = vadd.f32 %v4145, %v4497
        %4499 = vmatprep.mubr.bf16.mxu0 0
        %4500 = vmatmul.mubr.bf16.gmra.mrb[0].mxu0 %v3131
        %v4501 = vpop.f32.mrb[0].mxu0
        %v4502 = vadd.f32 %v4149, %v4501
        %v4503 = vpop.f32.mrb[0].mxu0
        %v4504 = vadd.f32 %v4151, %v4503
        %v4505 = vpop.f32.mrb[0].mxu0
        %v4506 = vadd.f32 %v4153, %v4505
        %v4507 = vpop.f32.mrb[0].mxu0
        %v4508 = vadd.f32 %v4155, %v4507
        %4509 = vmatprep.mubr.bf16.mxu0 0
        %4510 = vmatmul.mubr.bf16.gmra.mrb[0].mxu0 %v3134
        %v4511 = vpop.f32.mrb[0].mxu0
        %v4512 = vadd.f32 %v4159, %v4511
        %v4513 = vpop.f32.mrb[0].mxu0
        %v4514 = vadd.f32 %v4161, %v4513
        %v4515 = vpop.f32.mrb[0].mxu0
        %v4516 = vadd.f32 %v4163, %v4515
        %v4517 = vpop.f32.mrb[0].mxu0
        %v4518 = vadd.f32 %v4165, %v4517
        %4519 = vmatprep.mubr.bf16.mxu0 0
        %4520 = vmatmul.mubr.bf16.gmra.mrb[0].mxu0 %v3137
        %v4521 = vpop.f32.mrb[0].mxu0
        %v4522 = vadd.f32 %v4169, %v4521
        %v4523 = vpop.f32.mrb[0].mxu0
        %v4524 = vadd.f32 %v4171, %v4523
        %v4525 = vpop.f32.mrb[0].mxu0
        %v4526 = vadd.f32 %v4173, %v4525
        %v4527 = vpop.f32.mrb[0].mxu0
        %v4528 = vadd.f32 %v4175, %v4527
        %4529 = vmatprep.mubr.bf16.mxu0 0
        %4530 = vmatmul.mubr.bf16.gmra.mrb[0].mxu0 %v3140
        %v4531 = vpop.f32.mrb[0].mxu0
        %v4532 = vadd.f32 %v4179, %v4531
        %v4533 = vpop.f32.mrb[0].mxu0
        %v4534 = vadd.f32 %v4181, %v4533
        %v4535 = vpop.f32.mrb[0].mxu0
        %v4536 = vadd.f32 %v4183, %v4535
        %v4537 = vpop.f32.mrb[0].mxu0
        %v4538 = vadd.f32 %v4185, %v4537
        %4539 = vmatprep.mubr.bf16.mxu0 0
        %4540 = vmatmul.mubr.bf16.gmra.mrb[0].mxu0 %v3143
        %v4541 = vpop.f32.mrb[0].mxu0
        %v4542 = vadd.f32 %v4189, %v4541
        %v4543 = vpop.f32.mrb[0].mxu0
        %v4544 = vadd.f32 %v4191, %v4543
        %v4545 = vpop.f32.mrb[0].mxu0
        %v4546 = vadd.f32 %v4193, %v4545
        %v4547 = vpop.f32.mrb[0].mxu0
        %v4548 = vadd.f32 %v4195, %v4547
        %4549 = vmatprep.mubr.bf16.mxu0 0
        %4550 = vmatmul.mubr.bf16.gmra.mrb[0].mxu0 %v3146
        %v4551 = vpop.f32.mrb[0].mxu0
        %v4552 = vadd.f32 %v4199, %v4551
        %v4553 = vpop.f32.mrb[0].mxu0
        %v4554 = vadd.f32 %v4201, %v4553
        %v4555 = vpop.f32.mrb[0].mxu0
        %v4556 = vadd.f32 %v4203, %v4555
        %v4557 = vpop.f32.mrb[0].mxu0
        %v4558 = vadd.f32 %v4205, %v4557
        %4559 = vdwg.mxu0
        %v4560 = vmul.f32 %v4242, 0.2
        %v4561 = vmul.f32 %v4244, 0.2
        %v4562 = vmul.f32 %v4246, 0.2
        %v4563 = vmul.f32 %v4248, 0.2
        %v4564 = vmul.f32 %v4252, 0.2
        %v4565 = vmul.f32 %v4254, 0.2
        %v4566 = vmul.f32 %v4256, 0.2
        %v4567 = vmul.f32 %v4258, 0.2
        %v4568 = vmul.f32 %v4262, 0.2
        %v4569 = vmul.f32 %v4264, 0.2
        %v4570 = vmul.f32 %v4266, 0.2
        %v4571 = vmul.f32 %v4268, 0.2
        %v4572 = vmul.f32 %v4272, 0.2
        %v4573 = vmul.f32 %v4274, 0.2
        %v4574 = vmul.f32 %v4276, 0.2
        %v4575 = vmul.f32 %v4278, 0.2
        %v4576 = vmul.f32 %v4282, 0.2
        %v4577 = vmul.f32 %v4284, 0.2
        %v4578 = vmul.f32 %v4286, 0.2
        %v4579 = vmul.f32 %v4288, 0.2
        %v4580 = vmul.f32 %v4292, 0.2
        %v4581 = vmul.f32 %v4294, 0.2
        %v4582 = vmul.f32 %v4296, 0.2
        %v4583 = vmul.f32 %v4298, 0.2
        %v4584 = vmul.f32 %v4302, 0.2
        %v4585 = vmul.f32 %v4304, 0.2
        %v4586 = vmul.f32 %v4306, 0.2
        %v4587 = vmul.f32 %v4308, 0.2
        %v4588 = vmul.f32 %v4312, 0.2
        %v4589 = vmul.f32 %v4314, 0.2
        %v4590 = vmul.f32 %v4316, 0.2
        %v4591 = vmul.f32 %v4318, 0.2
        %v4592 = vmul.f32 %v4322, 0.2
        %v4593 = vmul.f32 %v4324, 0.2
        %v4594 = vmul.f32 %v4326, 0.2
        %v4595 = vmul.f32 %v4328, 0.2
        %v4596 = vmul.f32 %v4332, 0.2
        %v4597 = vmul.f32 %v4334, 0.2
        %v4598 = vmul.f32 %v4336, 0.2
        %v4599 = vmul.f32 %v4338, 0.2
        %v4600 = vmul.f32 %v4342, 0.2
        %v4601 = vmul.f32 %v4344, 0.2
        %v4602 = vmul.f32 %v4346, 0.2
        %v4603 = vmul.f32 %v4348, 0.2
        %v4604 = vmul.f32 %v4352, 0.2
        %v4605 = vmul.f32 %v4354, 0.2
        %v4606 = vmul.f32 %v4356, 0.2
        %v4607 = vmul.f32 %v4358, 0.2
        %v4608 = vmul.f32 %v4362, 0.2
        %v4609 = vmul.f32 %v4364, 0.2
        %v4610 = vmul.f32 %v4366, 0.2
        %v4611 = vmul.f32 %v4368, 0.2
        %v4612 = vmul.f32 %v4372, 0.2
        %v4613 = vmul.f32 %v4374, 0.2
        %v4614 = vmul.f32 %v4376, 0.2
        %v4615 = vmul.f32 %v4378, 0.2
        %v4616 = vmul.f32 %v4382, 0.2
        %v4617 = vmul.f32 %v4384, 0.2
        %v4618 = vmul.f32 %v4386, 0.2
        %v4619 = vmul.f32 %v4388, 0.2
        %v4620 = vmul.f32 %v4392, 0.2
        %v4621 = vmul.f32 %v4394, 0.2
        %v4622 = vmul.f32 %v4396, 0.2
        %v4623 = vmul.f32 %v4398, 0.2
        %v4624 = vmul.f32 %v4402, 0.2
        %v4625 = vmul.f32 %v4404, 0.2
        %v4626 = vmul.f32 %v4406, 0.2
        %v4627 = vmul.f32 %v4408, 0.2
        %v4628 = vmul.f32 %v4412, 0.2
        %v4629 = vmul.f32 %v4414, 0.2
        %v4630 = vmul.f32 %v4416, 0.2
        %v4631 = vmul.f32 %v4418, 0.2
        %v4632 = vmul.f32 %v4422, 0.2
        %v4633 = vmul.f32 %v4424, 0.2
        %v4634 = vmul.f32 %v4426, 0.2
        %v4635 = vmul.f32 %v4428, 0.2
        %v4636 = vmul.f32 %v4432, 0.2
        %v4637 = vmul.f32 %v4434, 0.2
        %v4638 = vmul.f32 %v4436, 0.2
        %v4639 = vmul.f32 %v4438, 0.2
        %v4640 = vmul.f32 %v4442, 0.2
        %v4641 = vmul.f32 %v4444, 0.2
        %v4642 = vmul.f32 %v4446, 0.2
        %v4643 = vmul.f32 %v4448, 0.2
        %v4644 = vmul.f32 %v4452, 0.2
        %v4645 = vmul.f32 %v4454, 0.2
        %v4646 = vmul.f32 %v4456, 0.2
        %v4647 = vmul.f32 %v4458, 0.2
        %v4648 = vmul.f32 %v4462, 0.2
        %v4649 = vmul.f32 %v4464, 0.2
        %v4650 = vmul.f32 %v4466, 0.2
        %v4651 = vmul.f32 %v4468, 0.2
        %v4652 = vmul.f32 %v4472, 0.2
        %v4653 = vmul.f32 %v4474, 0.2
        %v4654 = vmul.f32 %v4476, 0.2
        %v4655 = vmul.f32 %v4478, 0.2
        %v4656 = vmul.f32 %v4482, 0.2
        %v4657 = vmul.f32 %v4484, 0.2
        %v4658 = vmul.f32 %v4486, 0.2
        %v4659 = vmul.f32 %v4488, 0.2
        %v4660 = vmul.f32 %v4492, 0.2
        %v4661 = vmul.f32 %v4494, 0.2
        %v4662 = vmul.f32 %v4496, 0.2
        %v4663 = vmul.f32 %v4498, 0.2
        %v4664 = vmul.f32 %v4502, 0.2
        %v4665 = vmul.f32 %v4504, 0.2
        %v4666 = vmul.f32 %v4506, 0.2
        %v4667 = vmul.f32 %v4508, 0.2
        %v4668 = vmul.f32 %v4512, 0.2
        %v4669 = vmul.f32 %v4514, 0.2
        %v4670 = vmul.f32 %v4516, 0.2
        %v4671 = vmul.f32 %v4518, 0.2
        %v4672 = vmul.f32 %v4522, 0.2
        %v4673 = vmul.f32 %v4524, 0.2
        %v4674 = vmul.f32 %v4526, 0.2
        %v4675 = vmul.f32 %v4528, 0.2
        %v4676 = vmul.f32 %v4532, 0.2
        %v4677 = vmul.f32 %v4534, 0.2
        %v4678 = vmul.f32 %v4536, 0.2
        %v4679 = vmul.f32 %v4538, 0.2
        %v4680 = vmul.f32 %v4542, 0.2
        %v4681 = vmul.f32 %v4544, 0.2
        %v4682 = vmul.f32 %v4546, 0.2
        %v4683 = vmul.f32 %v4548, 0.2
        %v4684 = vmul.f32 %v4552, 0.2
        %v4685 = vmul.f32 %v4554, 0.2
        %v4686 = vmul.f32 %v4556, 0.2
        %v4687 = vmul.f32 %v4558, 0.2
        %v4688 = vmax.f32 %v4242, %v4560
        %v4689 = vmax.f32 %v4244, %v4561
        %v4690 = vmax.f32 %v4246, %v4562
        %v4691 = vmax.f32 %v4248, %v4563
        %v4692 = vmax.f32 %v4252, %v4564
        %v4693 = vmax.f32 %v4254, %v4565
        %v4694 = vmax.f32 %v4256, %v4566
        %v4695 = vmax.f32 %v4258, %v4567
        %v4696 = vmax.f32 %v4262, %v4568
        %v4697 = vmax.f32 %v4264, %v4569
        %v4698 = vmax.f32 %v4266, %v4570
        %v4699 = vmax.f32 %v4268, %v4571
        %v4700 = vmax.f32 %v4272, %v4572
        %v4701 = vmax.f32 %v4274, %v4573
        %v4702 = vmax.f32 %v4276, %v4574
        %v4703 = vmax.f32 %v4278, %v4575
        %v4704 = vmax.f32 %v4282, %v4576
        %v4705 = vmax.f32 %v4284, %v4577
        %v4706 = vmax.f32 %v4286, %v4578
        %v4707 = vmax.f32 %v4288, %v4579
        %v4708 = vmax.f32 %v4292, %v4580
        %v4709 = vmax.f32 %v4294, %v4581
        %v4710 = vmax.f32 %v4296, %v4582
        %v4711 = vmax.f32 %v4298, %v4583
        %v4712 = vmax.f32 %v4302, %v4584
        %v4713 = vmax.f32 %v4304, %v4585
        %v4714 = vmax.f32 %v4306, %v4586
        %v4715 = vmax.f32 %v4308, %v4587
        %v4716 = vmax.f32 %v4312, %v4588
        %v4717 = vmax.f32 %v4314, %v4589
        %v4718 = vmax.f32 %v4316, %v4590
        %v4719 = vmax.f32 %v4318, %v4591
        %v4720 = vmax.f32 %v4322, %v4592
        %v4721 = vmax.f32 %v4324, %v4593
        %v4722 = vmax.f32 %v4326, %v4594
        %v4723 = vmax.f32 %v4328, %v4595
        %v4724 = vmax.f32 %v4332, %v4596
        %v4725 = vmax.f32 %v4334, %v4597
        %v4726 = vmax.f32 %v4336, %v4598
        %v4727 = vmax.f32 %v4338, %v4599
        %v4728 = vmax.f32 %v4342, %v4600
        %v4729 = vmax.f32 %v4344, %v4601
        %v4730 = vmax.f32 %v4346, %v4602
        %v4731 = vmax.f32 %v4348, %v4603
        %v4732 = vmax.f32 %v4352, %v4604
        %v4733 = vmax.f32 %v4354, %v4605
        %v4734 = vmax.f32 %v4356, %v4606
        %v4735 = vmax.f32 %v4358, %v4607
        %v4736 = vmax.f32 %v4362, %v4608
        %v4737 = vmax.f32 %v4364, %v4609
        %v4738 = vmax.f32 %v4366, %v4610
        %v4739 = vmax.f32 %v4368, %v4611
        %v4740 = vmax.f32 %v4372, %v4612
        %v4741 = vmax.f32 %v4374, %v4613
        %v4742 = vmax.f32 %v4376, %v4614
        %v4743 = vmax.f32 %v4378, %v4615
        %v4744 = vmax.f32 %v4382, %v4616
        %v4745 = vmax.f32 %v4384, %v4617
        %v4746 = vmax.f32 %v4386, %v4618
        %v4747 = vmax.f32 %v4388, %v4619
        %v4748 = vmax.f32 %v4392, %v4620
        %v4749 = vmax.f32 %v4394, %v4621
        %v4750 = vmax.f32 %v4396, %v4622
        %v4751 = vmax.f32 %v4398, %v4623
        %v4752 = vmax.f32 %v4402, %v4624
        %v4753 = vmax.f32 %v4404, %v4625
        %v4754 = vmax.f32 %v4406, %v4626
        %v4755 = vmax.f32 %v4408, %v4627
        %v4756 = vmax.f32 %v4412, %v4628
        %v4757 = vmax.f32 %v4414, %v4629
        %v4758 = vmax.f32 %v4416, %v4630
        %v4759 = vmax.f32 %v4418, %v4631
        %v4760 = vmax.f32 %v4422, %v4632
        %v4761 = vmax.f32 %v4424, %v4633
        %v4762 = vmax.f32 %v4426, %v4634
        %v4763 = vmax.f32 %v4428, %v4635
        %v4764 = vmax.f32 %v4432, %v4636
        %v4765 = vmax.f32 %v4434, %v4637
        %v4766 = vmax.f32 %v4436, %v4638
        %v4767 = vmax.f32 %v4438, %v4639
        %v4768 = vmax.f32 %v4442, %v4640
        %v4769 = vmax.f32 %v4444, %v4641
        %v4770 = vmax.f32 %v4446, %v4642
        %v4771 = vmax.f32 %v4448, %v4643
        %v4772 = vmax.f32 %v4452, %v4644
        %v4773 = vmax.f32 %v4454, %v4645
        %v4774 = vmax.f32 %v4456, %v4646
        %v4775 = vmax.f32 %v4458, %v4647
        %v4776 = vmax.f32 %v4462, %v4648
        %v4777 = vmax.f32 %v4464, %v4649
        %v4778 = vmax.f32 %v4466, %v4650
        %v4779 = vmax.f32 %v4468, %v4651
        %v4780 = vmax.f32 %v4472, %v4652
        %v4781 = vmax.f32 %v4474, %v4653
        %v4782 = vmax.f32 %v4476, %v4654
        %v4783 = vmax.f32 %v4478, %v4655
        %v4784 = vmax.f32 %v4482, %v4656
        %v4785 = vmax.f32 %v4484, %v4657
        %v4786 = vmax.f32 %v4486, %v4658
        %v4787 = vmax.f32 %v4488, %v4659
        %v4788 = vmax.f32 %v4492, %v4660
        %v4789 = vmax.f32 %v4494, %v4661
        %v4790 = vmax.f32 %v4496, %v4662
        %v4791 = vmax.f32 %v4498, %v4663
        %v4792 = vmax.f32 %v4502, %v4664
        %v4793 = vmax.f32 %v4504, %v4665
        %v4794 = vmax.f32 %v4506, %v4666
        %v4795 = vmax.f32 %v4508, %v4667
        %v4796 = vmax.f32 %v4512, %v4668
        %v4797 = vmax.f32 %v4514, %v4669
        %v4798 = vmax.f32 %v4516, %v4670
        %v4799 = vmax.f32 %v4518, %v4671
        %v4800 = vmax.f32 %v4522, %v4672
        %v4801 = vmax.f32 %v4524, %v4673
        %v4802 = vmax.f32 %v4526, %v4674
        %v4803 = vmax.f32 %v4528, %v4675
        %v4804 = vmax.f32 %v4532, %v4676
        %v4805 = vmax.f32 %v4534, %v4677
        %v4806 = vmax.f32 %v4536, %v4678
        %v4807 = vmax.f32 %v4538, %v4679
        %v4808 = vmax.f32 %v4542, %v4680
        %v4809 = vmax.f32 %v4544, %v4681
        %v4810 = vmax.f32 %v4546, %v4682
        %v4811 = vmax.f32 %v4548, %v4683
        %v4812 = vmax.f32 %v4552, %v4684
        %v4813 = vmax.f32 %v4554, %v4685
        %v4814 = vmax.f32 %v4556, %v4686
        %v4815 = vmax.f32 %v4558, %v4687
        %v4816 = vld [vmem:[%s3] sm:$0xff]
        %v4817 = vld [vmem:[%s3 + $0x8] sm:$0xff]
        %v4818 = vld [vmem:[%s3 + $0x10] sm:$0xff]
        %v4819 = vld [vmem:[%s3 + $0x18] sm:$0xff]
        %v4820 = vld [vmem:[%s3 + $0x20] sm:$0xff]
        %v4821 = vld [vmem:[%s3 + $0x28] sm:$0xff]
        %v4822 = vld [vmem:[%s3 + $0x30] sm:$0xff]
        %v4823 = vld [vmem:[%s3 + $0x38] sm:$0xff]
        %v4824 = vld [vmem:[%s3 + $0x40] sm:$0xff]
        %v4825 = vld [vmem:[%s3 + $0x48] sm:$0xff]
        %v4826 = vld [vmem:[%s3 + $0x50] sm:$0xff]
        %v4827 = vld [vmem:[%s3 + $0x58] sm:$0xff]
        %v4828 = vld [vmem:[%s3 + $0x60] sm:$0xff]
        %v4829 = vld [vmem:[%s3 + $0x68] sm:$0xff]
        %v4830 = vld [vmem:[%s3 + $0x70] sm:$0xff]
        %v4831 = vld [vmem:[%s3 + $0x78] sm:$0xff]
        %v4832 = vld [vmem:[%s3 + $0x80] sm:$0xff]
        %v4833 = vld [vmem:[%s3 + $0x88] sm:$0xff]
        %v4834 = vld [vmem:[%s3 + $0x90] sm:$0xff]
        %v4835 = vld [vmem:[%s3 + $0x98] sm:$0xff]
        %v4836 = vld [vmem:[%s3 + $0xa0] sm:$0xff]
        %v4837 = vld [vmem:[%s3 + $0xa8] sm:$0xff]
        %v4838 = vld [vmem:[%s3 + $0xb0] sm:$0xff]
        %v4839 = vld [vmem:[%s3 + $0xb8] sm:$0xff]
        %v4840 = vld [vmem:[%s3 + $0xc0] sm:$0xff]
        %v4841 = vld [vmem:[%s3 + $0xc8] sm:$0xff]
        %v4842 = vld [vmem:[%s3 + $0xd0] sm:$0xff]
        %v4843 = vld [vmem:[%s3 + $0xd8] sm:$0xff]
        %v4844 = vld [vmem:[%s3 + $0xe0] sm:$0xff]
        %v4845 = vld [vmem:[%s3 + $0xe8] sm:$0xff]
        %v4846 = vld [vmem:[%s3 + $0xf0] sm:$0xff]
        %v4847 = vld [vmem:[%s3 + $0xf8] sm:$0xff]
        %v4848 = vld [vmem:[%s3 + $0x100] sm:$0xff]
        %v4849 = vld [vmem:[%s3 + $0x108] sm:$0xff]
        %v4850 = vld [vmem:[%s3 + $0x110] sm:$0xff]
        %v4851 = vld [vmem:[%s3 + $0x118] sm:$0xff]
        %v4852 = vld [vmem:[%s3 + $0x120] sm:$0xff]
        %v4853 = vld [vmem:[%s3 + $0x128] sm:$0xff]
        %v4854 = vld [vmem:[%s3 + $0x130] sm:$0xff]
        %v4855 = vld [vmem:[%s3 + $0x138] sm:$0xff]
        %v4856 = vld [vmem:[%s3 + $0x140] sm:$0xff]
        %v4857 = vld [vmem:[%s3 + $0x148] sm:$0xff]
        %v4858 = vld [vmem:[%s3 + $0x150] sm:$0xff]
        %v4859 = vld [vmem:[%s3 + $0x158] sm:$0xff]
        %v4860 = vld [vmem:[%s3 + $0x160] sm:$0xff]
        %v4861 = vld [vmem:[%s3 + $0x168] sm:$0xff]
        %v4862 = vld [vmem:[%s3 + $0x170] sm:$0xff]
        %v4863 = vld [vmem:[%s3 + $0x178] sm:$0xff]
        %v4864 = vld [vmem:[%s3 + $0x180] sm:$0xff]
        %v4865 = vld [vmem:[%s3 + $0x188] sm:$0xff]
        %v4866 = vld [vmem:[%s3 + $0x190] sm:$0xff]
        %v4867 = vld [vmem:[%s3 + $0x198] sm:$0xff]
        %v4868 = vld [vmem:[%s3 + $0x1a0] sm:$0xff]
        %v4869 = vld [vmem:[%s3 + $0x1a8] sm:$0xff]
        %v4870 = vld [vmem:[%s3 + $0x1b0] sm:$0xff]
        %v4871 = vld [vmem:[%s3 + $0x1b8] sm:$0xff]
        %v4872 = vld [vmem:[%s3 + $0x1c0] sm:$0xff]
        %v4873 = vld [vmem:[%s3 + $0x1c8] sm:$0xff]
        %v4874 = vld [vmem:[%s3 + $0x1d0] sm:$0xff]
        %v4875 = vld [vmem:[%s3 + $0x1d8] sm:$0xff]
        %v4876 = vld [vmem:[%s3 + $0x1e0] sm:$0xff]
        %v4877 = vld [vmem:[%s3 + $0x1e8] sm:$0xff]
        %v4878 = vld [vmem:[%s3 + $0x1f0] sm:$0xff]
        %v4879 = vld [vmem:[%s3 + $0x1f8] sm:$0xff]
        %v4880 = vpack.c.bf16 %v4690, %v4688
        %v4881 = vpack.c.bf16 %v4691, %v4689
        %v4882 = vpack.c.bf16 %v4694, %v4692
        %v4883 = vpack.c.bf16 %v4695, %v4693
        %v4884 = vpack.c.bf16 %v4698, %v4696
        %v4885 = vpack.c.bf16 %v4699, %v4697
        %v4886 = vpack.c.bf16 %v4702, %v4700
        %v4887 = vpack.c.bf16 %v4703, %v4701
        %v4888 = vpack.c.bf16 %v4706, %v4704
        %v4889 = vpack.c.bf16 %v4707, %v4705
        %v4890 = vpack.c.bf16 %v4710, %v4708
        %v4891 = vpack.c.bf16 %v4711, %v4709
        %v4892 = vpack.c.bf16 %v4714, %v4712
        %v4893 = vpack.c.bf16 %v4715, %v4713
        %v4894 = vpack.c.bf16 %v4718, %v4716
        %v4895 = vpack.c.bf16 %v4719, %v4717
        %v4896 = vpack.c.bf16 %v4722, %v4720
        %v4897 = vpack.c.bf16 %v4723, %v4721
        %v4898 = vpack.c.bf16 %v4726, %v4724
        %v4899 = vpack.c.bf16 %v4727, %v4725
        %v4900 = vpack.c.bf16 %v4730, %v4728
        %v4901 = vpack.c.bf16 %v4731, %v4729
        %v4902 = vpack.c.bf16 %v4734, %v4732
        %v4903 = vpack.c.bf16 %v4735, %v4733
        %v4904 = vpack.c.bf16 %v4738, %v4736
        %v4905 = vpack.c.bf16 %v4739, %v4737
        %v4906 = vpack.c.bf16 %v4742, %v4740
        %v4907 = vpack.c.bf16 %v4743, %v4741
        %v4908 = vpack.c.bf16 %v4746, %v4744
        %v4909 = vpack.c.bf16 %v4747, %v4745
        %v4910 = vpack.c.bf16 %v4750, %v4748
        %v4911 = vpack.c.bf16 %v4751, %v4749
        %v4912 = vpack.c.bf16 %v4754, %v4752
        %v4913 = vpack.c.bf16 %v4755, %v4753
        %v4914 = vpack.c.bf16 %v4758, %v4756
        %v4915 = vpack.c.bf16 %v4759, %v4757
        %v4916 = vpack.c.bf16 %v4762, %v4760
        %v4917 = vpack.c.bf16 %v4763, %v4761
        %v4918 = vpack.c.bf16 %v4766, %v4764
        %v4919 = vpack.c.bf16 %v4767, %v4765
        %v4920 = vpack.c.bf16 %v4770, %v4768
        %v4921 = vpack.c.bf16 %v4771, %v4769
        %v4922 = vpack.c.bf16 %v4774, %v4772
        %v4923 = vpack.c.bf16 %v4775, %v4773
        %v4924 = vpack.c.bf16 %v4778, %v4776
        %v4925 = vpack.c.bf16 %v4779, %v4777
        %v4926 = vpack.c.bf16 %v4782, %v4780
        %v4927 = vpack.c.bf16 %v4783, %v4781
        %v4928 = vpack.c.bf16 %v4786, %v4784
        %v4929 = vpack.c.bf16 %v4787, %v4785
        %v4930 = vpack.c.bf16 %v4790, %v4788
        %v4931 = vpack.c.bf16 %v4791, %v4789
        %v4932 = vpack.c.bf16 %v4794, %v4792
        %v4933 = vpack.c.bf16 %v4795, %v4793
        %v4934 = vpack.c.bf16 %v4798, %v4796
        %v4935 = vpack.c.bf16 %v4799, %v4797
        %v4936 = vpack.c.bf16 %v4802, %v4800
        %v4937 = vpack.c.bf16 %v4803, %v4801
        %v4938 = vpack.c.bf16 %v4806, %v4804
        %v4939 = vpack.c.bf16 %v4807, %v4805
        %v4940 = vpack.c.bf16 %v4810, %v4808
        %v4941 = vpack.c.bf16 %v4811, %v4809
        %v4942 = vpack.c.bf16 %v4814, %v4812
        %v4943 = vpack.c.bf16 %v4815, %v4813
        %v4944 = vld [vmem:[%s4] sm:$0xff]
        %v4945 = vld [vmem:[%s4 + $0x8] sm:$0xff]
        %v4946 = vld [vmem:[%s4 + $0x10] sm:$0xff]
        %v4947 = vld [vmem:[%s4 + $0x18] sm:$0xff]
        %v4948 = vld [vmem:[%s4 + $0x20] sm:$0xff]
        %v4949 = vld [vmem:[%s4 + $0x28] sm:$0xff]
        %v4950 = vld [vmem:[%s4 + $0x30] sm:$0xff]
        %v4951 = vld [vmem:[%s4 + $0x38] sm:$0xff]
        %v4952 = vld [vmem:[%s4 + $0x40] sm:$0xff]
        %v4953 = vld [vmem:[%s4 + $0x48] sm:$0xff]
        %v4954 = vld [vmem:[%s4 + $0x50] sm:$0xff]
        %v4955 = vld [vmem:[%s4 + $0x58] sm:$0xff]
        %v4956 = vld [vmem:[%s4 + $0x60] sm:$0xff]
        %v4957 = vld [vmem:[%s4 + $0x68] sm:$0xff]
        %v4958 = vld [vmem:[%s4 + $0x70] sm:$0xff]
        %v4959 = vld [vmem:[%s4 + $0x78] sm:$0xff]
        %v4960 = vld [vmem:[%s4 + $0x80] sm:$0xff]
        %v4961 = vld [vmem:[%s4 + $0x88] sm:$0xff]
        %v4962 = vld [vmem:[%s4 + $0x90] sm:$0xff]
        %v4963 = vld [vmem:[%s4 + $0x98] sm:$0xff]
        %v4964 = vld [vmem:[%s4 + $0xa0] sm:$0xff]
        %v4965 = vld [vmem:[%s4 + $0xa8] sm:$0xff]
        %v4966 = vld [vmem:[%s4 + $0xb0] sm:$0xff]
        %v4967 = vld [vmem:[%s4 + $0xb8] sm:$0xff]
        %v4968 = vld [vmem:[%s4 + $0xc0] sm:$0xff]
        %v4969 = vld [vmem:[%s4 + $0xc8] sm:$0xff]
        %v4970 = vld [vmem:[%s4 + $0xd0] sm:$0xff]
        %v4971 = vld [vmem:[%s4 + $0xd8] sm:$0xff]
        %v4972 = vld [vmem:[%s4 + $0xe0] sm:$0xff]
        %v4973 = vld [vmem:[%s4 + $0xe8] sm:$0xff]
        %v4974 = vld [vmem:[%s4 + $0xf0] sm:$0xff]
        %v4975 = vld [vmem:[%s4 + $0xf8] sm:$0xff]
        %4977 = vset.pattern.permute.xlu0 0
        %4978 = vperm.xlu0 %4977, %v4944
        %v4979 = vpop.permute.xlu0 %4978
        %4982 = vset.pattern.permute.xlu0 0
        %4983 = vperm.xlu0 %4982, %v4945
        %v4984 = vpop.permute.xlu0 %4983
        %4987 = vset.pattern.permute.xlu0 0
        %4988 = vperm.xlu0 %4987, %v4946
        %v4989 = vpop.permute.xlu0 %4988
        %4992 = vset.pattern.permute.xlu0 0
        %4993 = vperm.xlu0 %4992, %v4947
        %v4994 = vpop.permute.xlu0 %4993
        %4997 = vset.pattern.permute.xlu0 0
        %4998 = vperm.xlu0 %4997, %v4948
        %v4999 = vpop.permute.xlu0 %4998
        %5002 = vset.pattern.permute.xlu0 0
        %5003 = vperm.xlu0 %5002, %v4949
        %v5004 = vpop.permute.xlu0 %5003
        %5007 = vset.pattern.permute.xlu0 0
        %5008 = vperm.xlu0 %5007, %v4950
        %v5009 = vpop.permute.xlu0 %5008
        %5012 = vset.pattern.permute.xlu0 0
        %5013 = vperm.xlu0 %5012, %v4951
        %v5014 = vpop.permute.xlu0 %5013
        %5017 = vset.pattern.permute.xlu0 0
        %5018 = vperm.xlu0 %5017, %v4952
        %v5019 = vpop.permute.xlu0 %5018
        %5022 = vset.pattern.permute.xlu0 0
        %5023 = vperm.xlu0 %5022, %v4953
        %v5024 = vpop.permute.xlu0 %5023
        %5027 = vset.pattern.permute.xlu0 0
        %5028 = vperm.xlu0 %5027, %v4954
        %v5029 = vpop.permute.xlu0 %5028
        %5032 = vset.pattern.permute.xlu0 0
        %5033 = vperm.xlu0 %5032, %v4955
        %v5034 = vpop.permute.xlu0 %5033
        %5037 = vset.pattern.permute.xlu0 0
        %5038 = vperm.xlu0 %5037, %v4956
        %v5039 = vpop.permute.xlu0 %5038
        %5042 = vset.pattern.permute.xlu0 0
        %5043 = vperm.xlu0 %5042, %v4957
        %v5044 = vpop.permute.xlu0 %5043
        %5047 = vset.pattern.permute.xlu0 0
        %5048 = vperm.xlu0 %5047, %v4958
        %v5049 = vpop.permute.xlu0 %5048
        %5052 = vset.pattern.permute.xlu0 0
        %5053 = vperm.xlu0 %5052, %v4959
        %v5054 = vpop.permute.xlu0 %5053
        %5057 = vset.pattern.permute.xlu0 0
        %5058 = vperm.xlu0 %5057, %v4960
        %v5059 = vpop.permute.xlu0 %5058
        %5062 = vset.pattern.permute.xlu0 0
        %5063 = vperm.xlu0 %5062, %v4961
        %v5064 = vpop.permute.xlu0 %5063
        %5067 = vset.pattern.permute.xlu0 0
        %5068 = vperm.xlu0 %5067, %v4962
        %v5069 = vpop.permute.xlu0 %5068
        %5072 = vset.pattern.permute.xlu0 0
        %5073 = vperm.xlu0 %5072, %v4963
        %v5074 = vpop.permute.xlu0 %5073
        %5077 = vset.pattern.permute.xlu0 0
        %5078 = vperm.xlu0 %5077, %v4964
        %v5079 = vpop.permute.xlu0 %5078
        %5082 = vset.pattern.permute.xlu0 0
        %5083 = vperm.xlu0 %5082, %v4965
        %v5084 = vpop.permute.xlu0 %5083
        %5087 = vset.pattern.permute.xlu0 0
        %5088 = vperm.xlu0 %5087, %v4966
        %v5089 = vpop.permute.xlu0 %5088
        %5092 = vset.pattern.permute.xlu0 0
        %5093 = vperm.xlu0 %5092, %v4967
        %v5094 = vpop.permute.xlu0 %5093
        %5097 = vset.pattern.permute.xlu0 0
        %5098 = vperm.xlu0 %5097, %v4968
        %v5099 = vpop.permute.xlu0 %5098
        %5102 = vset.pattern.permute.xlu0 0
        %5103 = vperm.xlu0 %5102, %v4969
        %v5104 = vpop.permute.xlu0 %5103
        %5107 = vset.pattern.permute.xlu0 0
        %5108 = vperm.xlu0 %5107, %v4970
        %v5109 = vpop.permute.xlu0 %5108
        %5112 = vset.pattern.permute.xlu0 0
        %5113 = vperm.xlu0 %5112, %v4971
        %v5114 = vpop.permute.xlu0 %5113
        %5117 = vset.pattern.permute.xlu0 0
        %5118 = vperm.xlu0 %5117, %v4972
        %v5119 = vpop.permute.xlu0 %5118
        %5122 = vset.pattern.permute.xlu0 0
        %5123 = vperm.xlu0 %5122, %v4973
        %v5124 = vpop.permute.xlu0 %5123
        %5127 = vset.pattern.permute.xlu0 0
        %5128 = vperm.xlu0 %5127, %v4974
        %v5129 = vpop.permute.xlu0 %5128
        %5132 = vset.pattern.permute.xlu0 0
        %5133 = vperm.xlu0 %5132, %v4975
        %v5134 = vpop.permute.xlu0 %5133
        %v5200 = vunpack.c.l.b16 %v4816
        %v5201 = vunpack.c.h.b16 %v4816
        %v5202 = vunpack.c.l.b16 %v4817
        %v5203 = vunpack.c.h.b16 %v4817
        %v5204 = vunpack.c.l.b16 %v4818
        %v5205 = vunpack.c.h.b16 %v4818
        %v5206 = vunpack.c.l.b16 %v4819
        %v5207 = vunpack.c.h.b16 %v4819
        %v5208 = vunpack.c.l.b16 %v4820
        %v5209 = vunpack.c.h.b16 %v4820
        %v5210 = vunpack.c.l.b16 %v4821
        %v5211 = vunpack.c.h.b16 %v4821
        %v5212 = vunpack.c.l.b16 %v4822
        %v5213 = vunpack.c.h.b16 %v4822
        %v5214 = vunpack.c.l.b16 %v4823
        %v5215 = vunpack.c.h.b16 %v4823
        %v5216 = vunpack.c.l.b16 %v4824
        %v5217 = vunpack.c.h.b16 %v4824
        %v5218 = vunpack.c.l.b16 %v4825
        %v5219 = vunpack.c.h.b16 %v4825
        %v5220 = vunpack.c.l.b16 %v4826
        %v5221 = vunpack.c.h.b16 %v4826
        %v5222 = vunpack.c.l.b16 %v4827
        %v5223 = vunpack.c.h.b16 %v4827
        %v5224 = vunpack.c.l.b16 %v4828
        %v5225 = vunpack.c.h.b16 %v4828
        %v5226 = vunpack.c.l.b16 %v4829
        %v5227 = vunpack.c.h.b16 %v4829
        %v5228 = vunpack.c.l.b16 %v4830
        %v5229 = vunpack.c.h.b16 %v4830
        %v5230 = vunpack.c.l.b16 %v4831
        %v5231 = vunpack.c.h.b16 %v4831
        %v5232 = vunpack.c.l.b16 %v4832
        %v5233 = vunpack.c.h.b16 %v4832
        %v5234 = vunpack.c.l.b16 %v4833
        %v5235 = vunpack.c.h.b16 %v4833
        %v5236 = vunpack.c.l.b16 %v4834
        %v5237 = vunpack.c.h.b16 %v4834
        %v5238 = vunpack.c.l.b16 %v4835
        %v5239 = vunpack.c.h.b16 %v4835
        %v5240 = vunpack.c.l.b16 %v4836
        %v5241 = vunpack.c.h.b16 %v4836
        %v5242 = vunpack.c.l.b16 %v4837
        %v5243 = vunpack.c.h.b16 %v4837
        %v5244 = vunpack.c.l.b16 %v4838
        %v5245 = vunpack.c.h.b16 %v4838
        %v5246 = vunpack.c.l.b16 %v4839
        %v5247 = vunpack.c.h.b16 %v4839
        %v5248 = vunpack.c.l.b16 %v4840
        %v5249 = vunpack.c.h.b16 %v4840
        %v5250 = vunpack.c.l.b16 %v4841
        %v5251 = vunpack.c.h.b16 %v4841
        %v5252 = vunpack.c.l.b16 %v4842
        %v5253 = vunpack.c.h.b16 %v4842
        %v5254 = vunpack.c.l.b16 %v4843
        %v5255 = vunpack.c.h.b16 %v4843
        %v5256 = vunpack.c.l.b16 %v4844
        %v5257 = vunpack.c.h.b16 %v4844
        %v5258 = vunpack.c.l.b16 %v4845
        %v5259 = vunpack.c.h.b16 %v4845
        %v5260 = vunpack.c.l.b16 %v4846
        %v5261 = vunpack.c.h.b16 %v4846
        %v5262 = vunpack.c.l.b16 %v4847
        %v5263 = vunpack.c.h.b16 %v4847
        %v5264 = vunpack.c.l.b16 %v4848
        %v5265 = vunpack.c.h.b16 %v4848
        %v5266 = vunpack.c.l.b16 %v4849
        %v5267 = vunpack.c.h.b16 %v4849
        %v5268 = vunpack.c.l.b16 %v4850
        %v5269 = vunpack.c.h.b16 %v4850
        %v5270 = vunpack.c.l.b16 %v4851
        %v5271 = vunpack.c.h.b16 %v4851
        %v5272 = vunpack.c.l.b16 %v4852
        %v5273 = vunpack.c.h.b16 %v4852
        %v5274 = vunpack.c.l.b16 %v4853
        %v5275 = vunpack.c.h.b16 %v4853
        %v5276 = vunpack.c.l.b16 %v4854
        %v5277 = vunpack.c.h.b16 %v4854
        %v5278 = vunpack.c.l.b16 %v4855
        %v5279 = vunpack.c.h.b16 %v4855
        %v5280 = vunpack.c.l.b16 %v4856
        %v5281 = vunpack.c.h.b16 %v4856
        %v5282 = vunpack.c.l.b16 %v4857
        %v5283 = vunpack.c.h.b16 %v4857
        %v5284 = vunpack.c.l.b16 %v4858
        %v5285 = vunpack.c.h.b16 %v4858
        %v5286 = vunpack.c.l.b16 %v4859
        %v5287 = vunpack.c.h.b16 %v4859
        %v5288 = vunpack.c.l.b16 %v4860
        %v5289 = vunpack.c.h.b16 %v4860
        %v5290 = vunpack.c.l.b16 %v4861
        %v5291 = vunpack.c.h.b16 %v4861
        %v5292 = vunpack.c.l.b16 %v4862
        %v5293 = vunpack.c.h.b16 %v4862
        %v5294 = vunpack.c.l.b16 %v4863
        %v5295 = vunpack.c.h.b16 %v4863
        %v5296 = vunpack.c.l.b16 %v4864
        %v5297 = vunpack.c.h.b16 %v4864
        %v5298 = vunpack.c.l.b16 %v4865
        %v5299 = vunpack.c.h.b16 %v4865
        %v5300 = vunpack.c.l.b16 %v4866
        %v5301 = vunpack.c.h.b16 %v4866
        %v5302 = vunpack.c.l.b16 %v4867
        %v5303 = vunpack.c.h.b16 %v4867
        %v5304 = vunpack.c.l.b16 %v4868
        %v5305 = vunpack.c.h.b16 %v4868
        %v5306 = vunpack.c.l.b16 %v4869
        %v5307 = vunpack.c.h.b16 %v4869
        %v5308 = vunpack.c.l.b16 %v4870
        %v5309 = vunpack.c.h.b16 %v4870
        %v5310 = vunpack.c.l.b16 %v4871
        %v5311 = vunpack.c.h.b16 %v4871
        %v5312 = vunpack.c.l.b16 %v4872
        %v5313 = vunpack.c.h.b16 %v4872
        %v5314 = vunpack.c.l.b16 %v4873
        %v5315 = vunpack.c.h.b16 %v4873
        %v5316 = vunpack.c.l.b16 %v4874
        %v5317 = vunpack.c.h.b16 %v4874
        %v5318 = vunpack.c.l.b16 %v4875
        %v5319 = vunpack.c.h.b16 %v4875
        %v5320 = vunpack.c.l.b16 %v4876
        %v5321 = vunpack.c.h.b16 %v4876
        %v5322 = vunpack.c.l.b16 %v4877
        %v5323 = vunpack.c.h.b16 %v4877
        %v5324 = vunpack.c.l.b16 %v4878
        %v5325 = vunpack.c.h.b16 %v4878
        %v5326 = vunpack.c.l.b16 %v4879
        %v5327 = vunpack.c.h.b16 %v4879
        %v5328 = vpack.c.b16 %v5204, %v5200
        %v5329 = vpack.c.b16 %v5205, %v5201
        %v5330 = vpack.c.b16 %v5206, %v5202
        %v5331 = vpack.c.b16 %v5207, %v5203
        %v5332 = vpack.c.b16 %v5212, %v5208
        %v5333 = vpack.c.b16 %v5213, %v5209
        %v5334 = vpack.c.b16 %v5214, %v5210
        %v5335 = vpack.c.b16 %v5215, %v5211
        %v5336 = vpack.c.b16 %v5220, %v5216
        %v5337 = vpack.c.b16 %v5221, %v5217
        %v5338 = vpack.c.b16 %v5222, %v5218
        %v5339 = vpack.c.b16 %v5223, %v5219
        %v5340 = vpack.c.b16 %v5228, %v5224
        %v5341 = vpack.c.b16 %v5229, %v5225
        %v5342 = vpack.c.b16 %v5230, %v5226
        %v5343 = vpack.c.b16 %v5231, %v5227
        %v5344 = vpack.c.b16 %v5236, %v5232
        %v5345 = vpack.c.b16 %v5237, %v5233
        %v5346 = vpack.c.b16 %v5238, %v5234
        %v5347 = vpack.c.b16 %v5239, %v5235
        %v5348 = vpack.c.b16 %v5244, %v5240
        %v5349 = vpack.c.b16 %v5245, %v5241
        %v5350 = vpack.c.b16 %v5246, %v5242
        %v5351 = vpack.c.b16 %v5247, %v5243
        %v5352 = vpack.c.b16 %v5252, %v5248
        %v5353 = vpack.c.b16 %v5253, %v5249
        %v5354 = vpack.c.b16 %v5254, %v5250
        %v5355 = vpack.c.b16 %v5255, %v5251
        %v5356 = vpack.c.b16 %v5260, %v5256
        %v5357 = vpack.c.b16 %v5261, %v5257
        %v5358 = vpack.c.b16 %v5262, %v5258
        %v5359 = vpack.c.b16 %v5263, %v5259
        %v5360 = vpack.c.b16 %v5268, %v5264
        %v5361 = vpack.c.b16 %v5269, %v5265
        %v5362 = vpack.c.b16 %v5270, %v5266
        %v5363 = vpack.c.b16 %v5271, %v5267
        %v5364 = vpack.c.b16 %v5276, %v5272
        %v5365 = vpack.c.b16 %v5277, %v5273
        %v5366 = vpack.c.b16 %v5278, %v5274
        %v5367 = vpack.c.b16 %v5279, %v5275
        %v5368 = vpack.c.b16 %v5284, %v5280
        %v5369 = vpack.c.b16 %v5285, %v5281
        %v5370 = vpack.c.b16 %v5286, %v5282
        %v5371 = vpack.c.b16 %v5287, %v5283
        %v5372 = vpack.c.b16 %v5292, %v5288
        %v5373 = vpack.c.b16 %v5293, %v5289
        %v5374 = vpack.c.b16 %v5294, %v5290
        %v5375 = vpack.c.b16 %v5295, %v5291
        %v5376 = vpack.c.b16 %v5300, %v5296
        %v5377 = vpack.c.b16 %v5301, %v5297
        %v5378 = vpack.c.b16 %v5302, %v5298
        %v5379 = vpack.c.b16 %v5303, %v5299
        %v5380 = vpack.c.b16 %v5308, %v5304
        %v5381 = vpack.c.b16 %v5309, %v5305
        %v5382 = vpack.c.b16 %v5310, %v5306
        %v5383 = vpack.c.b16 %v5311, %v5307
        %v5384 = vpack.c.b16 %v5316, %v5312
        %v5385 = vpack.c.b16 %v5317, %v5313
        %v5386 = vpack.c.b16 %v5318, %v5314
        %v5387 = vpack.c.b16 %v5319, %v5315
        %v5388 = vpack.c.b16 %v5324, %v5320
        %v5389 = vpack.c.b16 %v5325, %v5321
        %v5390 = vpack.c.b16 %v5326, %v5322
        %v5391 = vpack.c.b16 %v5327, %v5323
        %5456 = vmatprep.subr.bf16.mxu0 %v4881
        %5457 = vmatpush1.bf16.msra.mxu0 %v4880
        %5458 = vmatprep.subr.bf16.mxu0 %v4883
        %5459 = vmatpush1.bf16.msra.mxu0 %v4882
        %5460 = vmatprep.subr.bf16.mxu0 %v4885
        %5461 = vmatpush1.bf16.msra.mxu0 %v4884
        %5462 = vmatprep.subr.bf16.mxu0 %v4887
        %5463 = vmatpush1.bf16.msra.mxu0 %v4886
        %5464 = vmatprep.subr.bf16.mxu0 %v4889
        %5465 = vmatpush1.bf16.msra.mxu0 %v4888
        %5466 = vmatprep.subr.bf16.mxu0 %v4891
        %5467 = vmatpush1.bf16.msra.mxu0 %v4890
        %5468 = vmatprep.subr.bf16.mxu0 %v4893
        %5469 = vmatpush1.bf16.msra.mxu0 %v4892
        %5470 = vmatprep.subr.bf16.mxu0 %v4895
        %5471 = vmatpush1.bf16.msra.mxu0 %v4894
        %5472 = vmatprep.subr.bf16.mxu0 %v4897
        %5473 = vmatpush1.bf16.msra.mxu0 %v4896
        %5474 = vmatprep.subr.bf16.mxu0 %v4899
        %5475 = vmatpush1.bf16.msra.mxu0 %v4898
        %5476 = vmatprep.subr.bf16.mxu0 %v4901
        %5477 = vmatpush1.bf16.msra.mxu0 %v4900
        %5478 = vmatprep.subr.bf16.mxu0 %v4903
        %5479 = vmatpush1.bf16.msra.mxu0 %v4902
        %5480 = vmatprep.subr.bf16.mxu0 %v4905
        %5481 = vmatpush1.bf16.msra.mxu0 %v4904
        %5482 = vmatprep.subr.bf16.mxu0 %v4907
        %5483 = vmatpush1.bf16.msra.mxu0 %v4906
        %5484 = vmatprep.subr.bf16.mxu0 %v4909
        %5485 = vmatpush1.bf16.msra.mxu0 %v4908
        %5486 = vmatprep.subr.bf16.mxu0 %v4911
        %5487 = vmatpush1.bf16.msra.mxu0 %v4910
        %5488 = vmatprep.mubr.bf16.mxu0 %v5329
        %5489 = vmatmul.mubr.bf16.gmra.mrb[0].mxu0 %v5328
        %v5490 = vpop.f32.mrb[0].mxu0
        %v5491 = vadd.f32 %v4979, %v5490
        %v5492 = vpop.f32.mrb[0].mxu0
        %v5493 = vadd.f32 %v4979, %v5492
        %v5494 = vpop.f32.mrb[0].mxu0
        %v5495 = vadd.f32 %v4984, %v5494
        %v5496 = vpop.f32.mrb[0].mxu0
        %v5497 = vadd.f32 %v4984, %v5496
        %5498 = vmatprep.mubr.bf16.mxu0 %v5333
        %5499 = vmatmul.mubr.bf16.gmra.mrb[0].mxu0 %v5332
        %v5500 = vpop.f32.mrb[0].mxu0
        %v5501 = vadd.f32 %v4989, %v5500
        %v5502 = vpop.f32.mrb[0].mxu0
        %v5503 = vadd.f32 %v4989, %v5502
        %v5504 = vpop.f32.mrb[0].mxu0
        %v5505 = vadd.f32 %v4994, %v5504
        %v5506 = vpop.f32.mrb[0].mxu0
        %v5507 = vadd.f32 %v4994, %v5506
        %5508 = vmatprep.mubr.bf16.mxu0 %v5337
        %5509 = vmatmul.mubr.bf16.gmra.mrb[0].mxu0 %v5336
        %v5510 = vpop.f32.mrb[0].mxu0
        %v5511 = vadd.f32 %v4999, %v5510
        %v5512 = vpop.f32.mrb[0].mxu0
        %v5513 = vadd.f32 %v4999, %v5512
        %v5514 = vpop.f32.mrb[0].mxu0
        %v5515 = vadd.f32 %v5004, %v5514
        %v5516 = vpop.f32.mrb[0].mxu0
        %v5517 = vadd.f32 %v5004, %v5516
        %5518 = vmatprep.mubr.bf16.mxu0 %v5341
        %5519 = vmatmul.mubr.bf16.gmra.mrb[0].mxu0 %v5340
        %v5520 = vpop.f32.mrb[0].mxu0
        %v5521 = vadd.f32 %v5009, %v5520
        %v5522 = vpop.f32.mrb[0].mxu0
        %v5523 = vadd.f32 %v5009, %v5522
        %v5524 = vpop.f32.mrb[0].mxu0
        %v5525 = vadd.f32 %v5014, %v5524
        %v5526 = vpop.f32.mrb[0].mxu0
        %v5527 = vadd.f32 %v5014, %v5526
        %5528 = vmatprep.mubr.bf16.mxu0 %v5345
        %5529 = vmatmul.mubr.bf16.gmra.mrb[0].mxu0 %v5344
        %v5530 = vpop.f32.mrb[0].mxu0
        %v5531 = vadd.f32 %v5019, %v5530
        %v5532 = vpop.f32.mrb[0].mxu0
        %v5533 = vadd.f32 %v5019, %v5532
        %v5534 = vpop.f32.mrb[0].mxu0
        %v5535 = vadd.f32 %v5024, %v5534
        %v5536 = vpop.f32.mrb[0].mxu0
        %v5537 = vadd.f32 %v5024, %v5536
        %5538 = vmatprep.mubr.bf16.mxu0 %v5349
        %5539 = vmatmul.mubr.bf16.gmra.mrb[0].mxu0 %v5348
        %v5540 = vpop.f32.mrb[0].mxu0
        %v5541 = vadd.f32 %v5029, %v5540
        %v5542 = vpop.f32.mrb[0].mxu0
        %v5543 = vadd.f32 %v5029, %v5542
        %v5544 = vpop.f32.mrb[0].mxu0
        %v5545 = vadd.f32 %v5034, %v5544
        %v5546 = vpop.f32.mrb[0].mxu0
        %v5547 = vadd.f32 %v5034, %v5546
        %5548 = vmatprep.mubr.bf16.mxu0 %v5353
        %5549 = vmatmul.mubr.bf16.gmra.mrb[0].mxu0 %v5352
        %v5550 = vpop.f32.mrb[0].mxu0
        %v5551 = vadd.f32 %v5039, %v5550
        %v5552 = vpop.f32.mrb[0].mxu0
        %v5553 = vadd.f32 %v5039, %v5552
        %v5554 = vpop.f32.mrb[0].mxu0
        %v5555 = vadd.f32 %v5044, %v5554
        %v5556 = vpop.f32.mrb[0].mxu0
        %v5557 = vadd.f32 %v5044, %v5556
        %5558 = vmatprep.mubr.bf16.mxu0 %v5357
        %5559 = vmatmul.mubr.bf16.gmra.mrb[0].mxu0 %v5356
        %v5560 = vpop.f32.mrb[0].mxu0
        %v5561 = vadd.f32 %v5049, %v5560
        %v5562 = vpop.f32.mrb[0].mxu0
        %v5563 = vadd.f32 %v5049, %v5562
        %v5564 = vpop.f32.mrb[0].mxu0
        %v5565 = vadd.f32 %v5054, %v5564
        %v5566 = vpop.f32.mrb[0].mxu0
        %v5567 = vadd.f32 %v5054, %v5566
        %5568 = vmatprep.mubr.bf16.mxu0 %v5361
        %5569 = vmatmul.mubr.bf16.gmra.mrb[0].mxu0 %v5360
        %v5570 = vpop.f32.mrb[0].mxu0
        %v5571 = vadd.f32 %v5059, %v5570
        %v5572 = vpop.f32.mrb[0].mxu0
        %v5573 = vadd.f32 %v5059, %v5572
        %v5574 = vpop.f32.mrb[0].mxu0
        %v5575 = vadd.f32 %v5064, %v5574
        %v5576 = vpop.f32.mrb[0].mxu0
        %v5577 = vadd.f32 %v5064, %v5576
        %5578 = vmatprep.mubr.bf16.mxu0 %v5365
        %5579 = vmatmul.mubr.bf16.gmra.mrb[0].mxu0 %v5364
        %v5580 = vpop.f32.mrb[0].mxu0
        %v5581 = vadd.f32 %v5069, %v5580
        %v5582 = vpop.f32.mrb[0].mxu0
        %v5583 = vadd.f32 %v5069, %v5582
        %v5584 = vpop.f32.mrb[0].mxu0
        %v5585 = vadd.f32 %v5074, %v5584
        %v5586 = vpop.f32.mrb[0].mxu0
        %v5587 = vadd.f32 %v5074, %v5586
        %5588 = vmatprep.mubr.bf16.mxu0 %v5369
        %5589 = vmatmul.mubr.bf16.gmra.mrb[0].mxu0 %v5368
        %v5590 = vpop.f32.mrb[0].mxu0
        %v5591 = vadd.f32 %v5079, %v5590
        %v5592 = vpop.f32.mrb[0].mxu0
        %v5593 = vadd.f32 %v5079, %v5592
        %v5594 = vpop.f32.mrb[0].mxu0
        %v5595 = vadd.f32 %v5084, %v5594
        %v5596 = vpop.f32.mrb[0].mxu0
        %v5597 = vadd.f32 %v5084, %v5596
        %5598 = vmatprep.mubr.bf16.mxu0 %v5373
        %5599 = vmatmul.mubr.bf16.gmra.mrb[0].mxu0 %v5372
        %v5600 = vpop.f32.mrb[0].mxu0
        %v5601 = vadd.f32 %v5089, %v5600
        %v5602 = vpop.f32.mrb[0].mxu0
        %v5603 = vadd.f32 %v5089, %v5602
        %v5604 = vpop.f32.mrb[0].mxu0
        %v5605 = vadd.f32 %v5094, %v5604
        %v5606 = vpop.f32.mrb[0].mxu0
        %v5607 = vadd.f32 %v5094, %v5606
        %5608 = vmatprep.mubr.bf16.mxu0 %v5377
        %5609 = vmatmul.mubr.bf16.gmra.mrb[0].mxu0 %v5376
        %v5610 = vpop.f32.mrb[0].mxu0
        %v5611 = vadd.f32 %v5099, %v5610
        %v5612 = vpop.f32.mrb[0].mxu0
        %v5613 = vadd.f32 %v5099, %v5612
        %v5614 = vpop.f32.mrb[0].mxu0
        %v5615 = vadd.f32 %v5104, %v5614
        %v5616 = vpop.f32.mrb[0].mxu0
        %v5617 = vadd.f32 %v5104, %v5616
        %5618 = vmatprep.mubr.bf16.mxu0 %v5381
        %5619 = vmatmul.mubr.bf16.gmra.mrb[0].mxu0 %v5380
        %v5620 = vpop.f32.mrb[0].mxu0
        %v5621 = vadd.f32 %v5109, %v5620
        %v5622 = vpop.f32.mrb[0].mxu0
        %v5623 = vadd.f32 %v5109, %v5622
        %v5624 = vpop.f32.mrb[0].mxu0
        %v5625 = vadd.f32 %v5114, %v5624
        %v5626 = vpop.f32.mrb[0].mxu0
        %v5627 = vadd.f32 %v5114, %v5626
        %5628 = vmatprep.mubr.bf16.mxu0 %v5385
        %5629 = vmatmul.mubr.bf16.gmra.mrb[0].mxu0 %v5384
        %v5630 = vpop.f32.mrb[0].mxu0
        %v5631 = vadd.f32 %v5119, %v5630
        %v5632 = vpop.f32.mrb[0].mxu0
        %v5633 = vadd.f32 %v5119, %v5632
        %v5634 = vpop.f32.mrb[0].mxu0
        %v5635 = vadd.f32 %v5124, %v5634
        %v5636 = vpop.f32.mrb[0].mxu0
        %v5637 = vadd.f32 %v5124, %v5636
        %5638 = vmatprep.mubr.bf16.mxu0 %v5389
        %5639 = vmatmul.mubr.bf16.gmra.mrb[0].mxu0 %v5388
        %v5640 = vpop.f32.mrb[0].mxu0
        %v5641 = vadd.f32 %v5129, %v5640
        %v5642 = vpop.f32.mrb[0].mxu0
        %v5643 = vadd.f32 %v5129, %v5642
        %v5644 = vpop.f32.mrb[0].mxu0
        %v5645 = vadd.f32 %v5134, %v5644
        %v5646 = vpop.f32.mrb[0].mxu0
        %v5647 = vadd.f32 %v5134, %v5646
        %5648 = vdwg.mxu0
        %5649 = vmatprep.subr.bf16.mxu0 %v4913
        %5650 = vmatpush1.bf16.msra.mxu0 %v4912
        %5651 = vmatprep.subr.bf16.mxu0 %v4915
        %5652 = vmatpush1.bf16.msra.mxu0 %v4914
        %5653 = vmatprep.subr.bf16.mxu0 %v4917
        %5654 = vmatpush1.bf16.msra.mxu0 %v4916
        %5655 = vmatprep.subr.bf16.mxu0 %v4919
        %5656 = vmatpush1.bf16.msra.mxu0 %v4918
        %5657 = vmatprep.subr.bf16.mxu0 %v4921
        %5658 = vmatpush1.bf16.msra.mxu0 %v4920
        %5659 = vmatprep.subr.bf16.mxu0 %v4923
        %5660 = vmatpush1.bf16.msra.mxu0 %v4922
        %5661 = vmatprep.subr.bf16.mxu0 %v4925
        %5662 = vmatpush1.bf16.msra.mxu0 %v4924
        %5663 = vmatprep.subr.bf16.mxu0 %v4927
        %5664 = vmatpush1.bf16.msra.mxu0 %v4926
        %5665 = vmatprep.subr.bf16.mxu0 %v4929
        %5666 = vmatpush1.bf16.msra.mxu0 %v4928
        %5667 = vmatprep.subr.bf16.mxu0 %v4931
        %5668 = vmatpush1.bf16.msra.mxu0 %v4930
        %5669 = vmatprep.subr.bf16.mxu0 %v4933
        %5670 = vmatpush1.bf16.msra.mxu0 %v4932
        %5671 = vmatprep.subr.bf16.mxu0 %v4935
        %5672 = vmatpush1.bf16.msra.mxu0 %v4934
        %5673 = vmatprep.subr.bf16.mxu0 %v4937
        %5674 = vmatpush1.bf16.msra.mxu0 %v4936
        %5675 = vmatprep.subr.bf16.mxu0 %v4939
        %5676 = vmatpush1.bf16.msra.mxu0 %v4938
        %5677 = vmatprep.subr.bf16.mxu0 %v4941
        %5678 = vmatpush1.bf16.msra.mxu0 %v4940
        %5679 = vmatprep.subr.bf16.mxu0 %v4943
        %5680 = vmatpush1.bf16.msra.mxu0 %v4942
        %5681 = vmatprep.mubr.bf16.mxu0 %v5331
        %5682 = vmatmul.mubr.bf16.gmra.mrb[0].mxu0 %v5330
        %v5683 = vpop.f32.mrb[0].mxu0
        %v5684 = vadd.f32 %v5491, %v5683
        %v5685 = vpop.f32.mrb[0].mxu0
        %v5686 = vadd.f32 %v5493, %v5685
        %v5687 = vpop.f32.mrb[0].mxu0
        %v5688 = vadd.f32 %v5495, %v5687
        %v5689 = vpop.f32.mrb[0].mxu0
        %v5690 = vadd.f32 %v5497, %v5689
        %5691 = vmatprep.mubr.bf16.mxu0 %v5335
        %5692 = vmatmul.mubr.bf16.gmra.mrb[0].mxu0 %v5334
        %v5693 = vpop.f32.mrb[0].mxu0
        %v5694 = vadd.f32 %v5501, %v5693
        %v5695 = vpop.f32.mrb[0].mxu0
        %v5696 = vadd.f32 %v5503, %v5695
        %v5697 = vpop.f32.mrb[0].mxu0
        %v5698 = vadd.f32 %v5505, %v5697
        %v5699 = vpop.f32.mrb[0].mxu0
        %v5700 = vadd.f32 %v5507, %v5699
        %5701 = vmatprep.mubr.bf16.mxu0 %v5339
        %5702 = vmatmul.mubr.bf16.gmra.mrb[0].mxu0 %v5338
        %v5703 = vpop.f32.mrb[0].mxu0
        %v5704 = vadd.f32 %v5511, %v5703
        %v5705 = vpop.f32.mrb[0].mxu0
        %v5706 = vadd.f32 %v5513, %v5705
        %v5707 = vpop.f32.mrb[0].mxu0
        %v5708 = vadd.f32 %v5515, %v5707
        %v5709 = vpop.f32.mrb[0].mxu0
        %v5710 = vadd.f32 %v5517, %v5709
        %5711 = vmatprep.mubr.bf16.mxu0 %v5343
        %5712 = vmatmul.mubr.bf16.gmra.mrb[0].mxu0 %v5342
        %v5713 = vpop.f32.mrb[0].mxu0
        %v5714 = vadd.f32 %v5521, %v5713
        %v5715 = vpop.f32.mrb[0].mxu0
        %v5716 = vadd.f32 %v5523, %v5715
        %v5717 = vpop.f32.mrb[0].mxu0
        %v5718 = vadd.f32 %v5525, %v5717
        %v5719 = vpop.f32.mrb[0].mxu0
        %v5720 = vadd.f32 %v5527, %v5719
        %5721 = vmatprep.mubr.bf16.mxu0 %v5347
        %5722 = vmatmul.mubr.bf16.gmra.mrb[0].mxu0 %v5346
        %v5723 = vpop.f32.mrb[0].mxu0
        %v5724 = vadd.f32 %v5531, %v5723
        %v5725 = vpop.f32.mrb[0].mxu0
        %v5726 = vadd.f32 %v5533, %v5725
        %v5727 = vpop.f32.mrb[0].mxu0
        %v5728 = vadd.f32 %v5535, %v5727
        %v5729 = vpop.f32.mrb[0].mxu0
        %v5730 = vadd.f32 %v5537, %v5729
        %5731 = vmatprep.mubr.bf16.mxu0 %v5351
        %5732 = vmatmul.mubr.bf16.gmra.mrb[0].mxu0 %v5350
        %v5733 = vpop.f32.mrb[0].mxu0
        %v5734 = vadd.f32 %v5541, %v5733
        %v5735 = vpop.f32.mrb[0].mxu0
        %v5736 = vadd.f32 %v5543, %v5735
        %v5737 = vpop.f32.mrb[0].mxu0
        %v5738 = vadd.f32 %v5545, %v5737
        %v5739 = vpop.f32.mrb[0].mxu0
        %v5740 = vadd.f32 %v5547, %v5739
        %5741 = vmatprep.mubr.bf16.mxu0 %v5355
        %5742 = vmatmul.mubr.bf16.gmra.mrb[0].mxu0 %v5354
        %v5743 = vpop.f32.mrb[0].mxu0
        %v5744 = vadd.f32 %v5551, %v5743
        %v5745 = vpop.f32.mrb[0].mxu0
        %v5746 = vadd.f32 %v5553, %v5745
        %v5747 = vpop.f32.mrb[0].mxu0
        %v5748 = vadd.f32 %v5555, %v5747
        %v5749 = vpop.f32.mrb[0].mxu0
        %v5750 = vadd.f32 %v5557, %v5749
        %5751 = vmatprep.mubr.bf16.mxu0 %v5359
        %5752 = vmatmul.mubr.bf16.gmra.mrb[0].mxu0 %v5358
        %v5753 = vpop.f32.mrb[0].mxu0
        %v5754 = vadd.f32 %v5561, %v5753
        %v5755 = vpop.f32.mrb[0].mxu0
        %v5756 = vadd.f32 %v5563, %v5755
        %v5757 = vpop.f32.mrb[0].mxu0
        %v5758 = vadd.f32 %v5565, %v5757
        %v5759 = vpop.f32.mrb[0].mxu0
        %v5760 = vadd.f32 %v5567, %v5759
        %5761 = vmatprep.mubr.bf16.mxu0 %v5363
        %5762 = vmatmul.mubr.bf16.gmra.mrb[0].mxu0 %v5362
        %v5763 = vpop.f32.mrb[0].mxu0
        %v5764 = vadd.f32 %v5571, %v5763
        %v5765 = vpop.f32.mrb[0].mxu0
        %v5766 = vadd.f32 %v5573, %v5765
        %v5767 = vpop.f32.mrb[0].mxu0
        %v5768 = vadd.f32 %v5575, %v5767
        %v5769 = vpop.f32.mrb[0].mxu0
        %v5770 = vadd.f32 %v5577, %v5769
        %5771 = vmatprep.mubr.bf16.mxu0 %v5367
        %5772 = vmatmul.mubr.bf16.gmra.mrb[0].mxu0 %v5366
        %v5773 = vpop.f32.mrb[0].mxu0
        %v5774 = vadd.f32 %v5581, %v5773
        %v5775 = vpop.f32.mrb[0].mxu0
        %v5776 = vadd.f32 %v5583, %v5775
        %v5777 = vpop.f32.mrb[0].mxu0
        %v5778 = vadd.f32 %v5585, %v5777
        %v5779 = vpop.f32.mrb[0].mxu0
        %v5780 = vadd.f32 %v5587, %v5779
        %5781 = vmatprep.mubr.bf16.mxu0 %v5371
        %5782 = vmatmul.mubr.bf16.gmra.mrb[0].mxu0 %v5370
        %v5783 = vpop.f32.mrb[0].mxu0
        %v5784 = vadd.f32 %v5591, %v5783
        %v5785 = vpop.f32.mrb[0].mxu0
        %v5786 = vadd.f32 %v5593, %v5785
        %v5787 = vpop.f32.mrb[0].mxu0
        %v5788 = vadd.f32 %v5595, %v5787
        %v5789 = vpop.f32.mrb[0].mxu0
        %v5790 = vadd.f32 %v5597, %v5789
        %5791 = vmatprep.mubr.bf16.mxu0 %v5375
        %5792 = vmatmul.mubr.bf16.gmra.mrb[0].mxu0 %v5374
        %v5793 = vpop.f32.mrb[0].mxu0
        %v5794 = vadd.f32 %v5601, %v5793
        %v5795 = vpop.f32.mrb[0].mxu0
        %v5796 = vadd.f32 %v5603, %v5795
        %v5797 = vpop.f32.mrb[0].mxu0
        %v5798 = vadd.f32 %v5605, %v5797
        %v5799 = vpop.f32.mrb[0].mxu0
        %v5800 = vadd.f32 %v5607, %v5799
        %5801 = vmatprep.mubr.bf16.mxu0 %v5379
        %5802 = vmatmul.mubr.bf16.gmra.mrb[0].mxu0 %v5378
        %v5803 = vpop.f32.mrb[0].mxu0
        %v5804 = vadd.f32 %v5611, %v5803
        %v5805 = vpop.f32.mrb[0].mxu0
        %v5806 = vadd.f32 %v5613, %v5805
        %v5807 = vpop.f32.mrb[0].mxu0
        %v5808 = vadd.f32 %v5615, %v5807
        %v5809 = vpop.f32.mrb[0].mxu0
        %v5810 = vadd.f32 %v5617, %v5809
        %5811 = vmatprep.mubr.bf16.mxu0 %v5383
        %5812 = vmatmul.mubr.bf16.gmra.mrb[0].mxu0 %v5382
        %v5813 = vpop.f32.mrb[0].mxu0
        %v5814 = vadd.f32 %v5621, %v5813
        %v5815 = vpop.f32.mrb[0].mxu0
        %v5816 = vadd.f32 %v5623, %v5815
        %v5817 = vpop.f32.mrb[0].mxu0
        %v5818 = vadd.f32 %v5625, %v5817
        %v5819 = vpop.f32.mrb[0].mxu0
        %v5820 = vadd.f32 %v5627, %v5819
        %5821 = vmatprep.mubr.bf16.mxu0 %v5387
        %5822 = vmatmul.mubr.bf16.gmra.mrb[0].mxu0 %v5386
        %v5823 = vpop.f32.mrb[0].mxu0
        %v5824 = vadd.f32 %v5631, %v5823
        %v5825 = vpop.f32.mrb[0].mxu0
        %v5826 = vadd.f32 %v5633, %v5825
        %v5827 = vpop.f32.mrb[0].mxu0
        %v5828 = vadd.f32 %v5635, %v5827
        %v5829 = vpop.f32.mrb[0].mxu0
        %v5830 = vadd.f32 %v5637, %v5829
        %5831 = vmatprep.mubr.bf16.mxu0 %v5391
        %5832 = vmatmul.mubr.bf16.gmra.mrb[0].mxu0 %v5390
        %v5833 = vpop.f32.mrb[0].mxu0
        %v5834 = vadd.f32 %v5641, %v5833
        %v5835 = vpop.f32.mrb[0].mxu0
        %v5836 = vadd.f32 %v5643, %v5835
        %v5837 = vpop.f32.mrb[0].mxu0
        %v5838 = vadd.f32 %v5645, %v5837
        %v5839 = vpop.f32.mrb[0].mxu0
        %v5840 = vadd.f32 %v5647, %v5839
        %5841 = vdwg.mxu0
        %v5842 = vmul.f32 %v5684, 0.2
        %v5843 = vmul.f32 %v5686, 0.2
        %v5844 = vmul.f32 %v5688, 0.2
        %v5845 = vmul.f32 %v5690, 0.2
        %v5846 = vmul.f32 %v5694, 0.2
        %v5847 = vmul.f32 %v5696, 0.2
        %v5848 = vmul.f32 %v5698, 0.2
        %v5849 = vmul.f32 %v5700, 0.2
        %v5850 = vmul.f32 %v5704, 0.2
        %v5851 = vmul.f32 %v5706, 0.2
        %v5852 = vmul.f32 %v5708, 0.2
        %v5853 = vmul.f32 %v5710, 0.2
        %v5854 = vmul.f32 %v5714, 0.2
        %v5855 = vmul.f32 %v5716, 0.2
        %v5856 = vmul.f32 %v5718, 0.2
        %v5857 = vmul.f32 %v5720, 0.2
        %v5858 = vmul.f32 %v5724, 0.2
        %v5859 = vmul.f32 %v5726, 0.2
        %v5860 = vmul.f32 %v5728, 0.2
        %v5861 = vmul.f32 %v5730, 0.2
        %v5862 = vmul.f32 %v5734, 0.2
        %v5863 = vmul.f32 %v5736, 0.2
        %v5864 = vmul.f32 %v5738, 0.2
        %v5865 = vmul.f32 %v5740, 0.2
        %v5866 = vmul.f32 %v5744, 0.2
        %v5867 = vmul.f32 %v5746, 0.2
        %v5868 = vmul.f32 %v5748, 0.2
        %v5869 = vmul.f32 %v5750, 0.2
        %v5870 = vmul.f32 %v5754, 0.2
        %v5871 = vmul.f32 %v5756, 0.2
        %v5872 = vmul.f32 %v5758, 0.2
        %v5873 = vmul.f32 %v5760, 0.2
        %v5874 = vmul.f32 %v5764, 0.2
        %v5875 = vmul.f32 %v5766, 0.2
        %v5876 = vmul.f32 %v5768, 0.2
        %v5877 = vmul.f32 %v5770, 0.2
        %v5878 = vmul.f32 %v5774, 0.2
        %v5879 = vmul.f32 %v5776, 0.2
        %v5880 = vmul.f32 %v5778, 0.2
        %v5881 = vmul.f32 %v5780, 0.2
        %v5882 = vmul.f32 %v5784, 0.2
        %v5883 = vmul.f32 %v5786, 0.2
        %v5884 = vmul.f32 %v5788, 0.2
        %v5885 = vmul.f32 %v5790, 0.2
        %v5886 = vmul.f32 %v5794, 0.2
        %v5887 = vmul.f32 %v5796, 0.2
        %v5888 = vmul.f32 %v5798, 0.2
        %v5889 = vmul.f32 %v5800, 0.2
        %v5890 = vmul.f32 %v5804, 0.2
        %v5891 = vmul.f32 %v5806, 0.2
        %v5892 = vmul.f32 %v5808, 0.2
        %v5893 = vmul.f32 %v5810, 0.2
        %v5894 = vmul.f32 %v5814, 0.2
        %v5895 = vmul.f32 %v5816, 0.2
        %v5896 = vmul.f32 %v5818, 0.2
        %v5897 = vmul.f32 %v5820, 0.2
        %v5898 = vmul.f32 %v5824, 0.2
        %v5899 = vmul.f32 %v5826, 0.2
        %v5900 = vmul.f32 %v5828, 0.2
        %v5901 = vmul.f32 %v5830, 0.2
        %v5902 = vmul.f32 %v5834, 0.2
        %v5903 = vmul.f32 %v5836, 0.2
        %v5904 = vmul.f32 %v5838, 0.2
        %v5905 = vmul.f32 %v5840, 0.2
        %v5906 = vmax.f32 %v5684, %v5842
        %v5907 = vmax.f32 %v5686, %v5843
        %v5908 = vmax.f32 %v5688, %v5844
        %v5909 = vmax.f32 %v5690, %v5845
        %v5910 = vmax.f32 %v5694, %v5846
        %v5911 = vmax.f32 %v5696, %v5847
        %v5912 = vmax.f32 %v5698, %v5848
        %v5913 = vmax.f32 %v5700, %v5849
        %v5914 = vmax.f32 %v5704, %v5850
        %v5915 = vmax.f32 %v5706, %v5851
        %v5916 = vmax.f32 %v5708, %v5852
        %v5917 = vmax.f32 %v5710, %v5853
        %v5918 = vmax.f32 %v5714, %v5854
        %v5919 = vmax.f32 %v5716, %v5855
        %v5920 = vmax.f32 %v5718, %v5856
        %v5921 = vmax.f32 %v5720, %v5857
        %v5922 = vmax.f32 %v5724, %v5858
        %v5923 = vmax.f32 %v5726, %v5859
        %v5924 = vmax.f32 %v5728, %v5860
        %v5925 = vmax.f32 %v5730, %v5861
        %v5926 = vmax.f32 %v5734, %v5862
        %v5927 = vmax.f32 %v5736, %v5863
        %v5928 = vmax.f32 %v5738, %v5864
        %v5929 = vmax.f32 %v5740, %v5865
        %v5930 = vmax.f32 %v5744, %v5866
        %v5931 = vmax.f32 %v5746, %v5867
        %v5932 = vmax.f32 %v5748, %v5868
        %v5933 = vmax.f32 %v5750, %v5869
        %v5934 = vmax.f32 %v5754, %v5870
        %v5935 = vmax.f32 %v5756, %v5871
        %v5936 = vmax.f32 %v5758, %v5872
        %v5937 = vmax.f32 %v5760, %v5873
        %v5938 = vmax.f32 %v5764, %v5874
        %v5939 = vmax.f32 %v5766, %v5875
        %v5940 = vmax.f32 %v5768, %v5876
        %v5941 = vmax.f32 %v5770, %v5877
        %v5942 = vmax.f32 %v5774, %v5878
        %v5943 = vmax.f32 %v5776, %v5879
        %v5944 = vmax.f32 %v5778, %v5880
        %v5945 = vmax.f32 %v5780, %v5881
        %v5946 = vmax.f32 %v5784, %v5882
        %v5947 = vmax.f32 %v5786, %v5883
        %v5948 = vmax.f32 %v5788, %v5884
        %v5949 = vmax.f32 %v5790, %v5885
        %v5950 = vmax.f32 %v5794, %v5886
        %v5951 = vmax.f32 %v5796, %v5887
        %v5952 = vmax.f32 %v5798, %v5888
        %v5953 = vmax.f32 %v5800, %v5889
        %v5954 = vmax.f32 %v5804, %v5890
        %v5955 = vmax.f32 %v5806, %v5891
        %v5956 = vmax.f32 %v5808, %v5892
        %v5957 = vmax.f32 %v5810, %v5893
        %v5958 = vmax.f32 %v5814, %v5894
        %v5959 = vmax.f32 %v5816, %v5895
        %v5960 = vmax.f32 %v5818, %v5896
        %v5961 = vmax.f32 %v5820, %v5897
        %v5962 = vmax.f32 %v5824, %v5898
        %v5963 = vmax.f32 %v5826, %v5899
        %v5964 = vmax.f32 %v5828, %v5900
        %v5965 = vmax.f32 %v5830, %v5901
        %v5966 = vmax.f32 %v5834, %v5902
        %v5967 = vmax.f32 %v5836, %v5903
        %v5968 = vmax.f32 %v5838, %v5904
        %v5969 = vmax.f32 %v5840, %v5905
        %v5970 = vld [vmem:[%s5] sm:$0xff]
        %v5971 = vld [vmem:[%s5 + $0x8] sm:$0xff]
        %v5972 = vld [vmem:[%s5 + $0x10] sm:$0xff]
        %v5973 = vld [vmem:[%s5 + $0x18] sm:$0xff]
        %v5974 = vld [vmem:[%s5 + $0x20] sm:$0xff]
        %v5975 = vld [vmem:[%s5 + $0x28] sm:$0xff]
        %v5976 = vld [vmem:[%s5 + $0x30] sm:$0xff]
        %v5977 = vld [vmem:[%s5 + $0x38] sm:$0xff]
        %v5978 = vld [vmem:[%s5 + $0x40] sm:$0xff]
        %v5979 = vld [vmem:[%s5 + $0x48] sm:$0xff]
        %v5980 = vld [vmem:[%s5 + $0x50] sm:$0xff]
        %v5981 = vld [vmem:[%s5 + $0x58] sm:$0xff]
        %v5982 = vld [vmem:[%s5 + $0x60] sm:$0xff]
        %v5983 = vld [vmem:[%s5 + $0x68] sm:$0xff]
        %v5984 = vld [vmem:[%s5 + $0x70] sm:$0xff]
        %v5985 = vld [vmem:[%s5 + $0x78] sm:$0xff]
        %v5986 = vld [vmem:[%s5 + $0x80] sm:$0xff]
        %v5987 = vld [vmem:[%s5 + $0x88] sm:$0xff]
        %v5988 = vld [vmem:[%s5 + $0x90] sm:$0xff]
        %v5989 = vld [vmem:[%s5 + $0x98] sm:$0xff]
        %v5990 = vld [vmem:[%s5 + $0xa0] sm:$0xff]
        %v5991 = vld [vmem:[%s5 + $0xa8] sm:$0xff]
        %v5992 = vld [vmem:[%s5 + $0xb0] sm:$0xff]
        %v5993 = vld [vmem:[%s5 + $0xb8] sm:$0xff]
        %v5994 = vld [vmem:[%s5 + $0xc0] sm:$0xff]
        %v5995 = vld [vmem:[%s5 + $0xc8] sm:$0xff]
        %v5996 = vld [vmem:[%s5 + $0xd0] sm:$0xff]
        %v5997 = vld [vmem:[%s5 + $0xd8] sm:$0xff]
        %v5998 = vld [vmem:[%s5 + $0xe0] sm:$0xff]
        %v5999 = vld [vmem:[%s5 + $0xe8] sm:$0xff]
        %v6000 = vld [vmem:[%s5 + $0xf0] sm:$0xff]
        %v6001 = vld [vmem:[%s5 + $0xf8] sm:$0xff]
        %6003 = vset.pattern.permute.xlu0 0
        %6004 = vperm.xlu0 %6003, %v5970
        %v6005 = vpop.permute.xlu0 %6004
        %6008 = vset.pattern.permute.xlu0 0
        %6009 = vperm.xlu0 %6008, %v5971
        %v6010 = vpop.permute.xlu0 %6009
        %6013 = vset.pattern.permute.xlu0 0
        %6014 = vperm.xlu0 %6013, %v5972
        %v6015 = vpop.permute.xlu0 %6014
        %6018 = vset.pattern.permute.xlu0 0
        %6019 = vperm.xlu0 %6018, %v5973
        %v6020 = vpop.permute.xlu0 %6019
        %6023 = vset.pattern.permute.xlu0 0
        %6024 = vperm.xlu0 %6023, %v5974
        %v6025 = vpop.permute.xlu0 %6024
        %6028 = vset.pattern.permute.xlu0 0
        %6029 = vperm.xlu0 %6028, %v5975
        %v6030 = vpop.permute.xlu0 %6029
        %6033 = vset.pattern.permute.xlu0 0
        %6034 = vperm.xlu0 %6033, %v5976
        %v6035 = vpop.permute.xlu0 %6034
        %6038 = vset.pattern.permute.xlu0 0
        %6039 = vperm.xlu0 %6038, %v5977
        %v6040 = vpop.permute.xlu0 %6039
        %6043 = vset.pattern.permute.xlu0 0
        %6044 = vperm.xlu0 %6043, %v5978
        %v6045 = vpop.permute.xlu0 %6044
        %6048 = vset.pattern.permute.xlu0 0
        %6049 = vperm.xlu0 %6048, %v5979
        %v6050 = vpop.permute.xlu0 %6049
        %6053 = vset.pattern.permute.xlu0 0
        %6054 = vperm.xlu0 %6053, %v5980
        %v6055 = vpop.permute.xlu0 %6054
        %6058 = vset.pattern.permute.xlu0 0
        %6059 = vperm.xlu0 %6058, %v5981
        %v6060 = vpop.permute.xlu0 %6059
        %6063 = vset.pattern.permute.xlu0 0
        %6064 = vperm.xlu0 %6063, %v5982
        %v6065 = vpop.permute.xlu0 %6064
        %6068 = vset.pattern.permute.xlu0 0
        %6069 = vperm.xlu0 %6068, %v5983
        %v6070 = vpop.permute.xlu0 %6069
        %6073 = vset.pattern.permute.xlu0 0
        %6074 = vperm.xlu0 %6073, %v5984
        %v6075 = vpop.permute.xlu0 %6074
        %6078 = vset.pattern.permute.xlu0 0
        %6079 = vperm.xlu0 %6078, %v5985
        %v6080 = vpop.permute.xlu0 %6079
        %6083 = vset.pattern.permute.xlu0 0
        %6084 = vperm.xlu0 %6083, %v5986
        %v6085 = vpop.permute.xlu0 %6084
        %6088 = vset.pattern.permute.xlu0 0
        %6089 = vperm.xlu0 %6088, %v5987
        %v6090 = vpop.permute.xlu0 %6089
        %6093 = vset.pattern.permute.xlu0 0
        %6094 = vperm.xlu0 %6093, %v5988
        %v6095 = vpop.permute.xlu0 %6094
        %6098 = vset.pattern.permute.xlu0 0
        %6099 = vperm.xlu0 %6098, %v5989
        %v6100 = vpop.permute.xlu0 %6099
        %6103 = vset.pattern.permute.xlu0 0
        %6104 = vperm.xlu0 %6103, %v5990
        %v6105 = vpop.permute.xlu0 %6104
        %6108 = vset.pattern.permute.xlu0 0
        %6109 = vperm.xlu0 %6108, %v5991
        %v6110 = vpop.permute.xlu0 %6109
        %6113 = vset.pattern.permute.xlu0 0
        %6114 = vperm.xlu0 %6113, %v5992
        %v6115 = vpop.permute.xlu0 %6114
        %6118 = vset.pattern.permute.xlu0 0
        %6119 = vperm.xlu0 %6118, %v5993
        %v6120 = vpop.permute.xlu0 %6119
        %6123 = vset.pattern.permute.xlu0 0
        %6124 = vperm.xlu0 %6123, %v5994
        %v6125 = vpop.permute.xlu0 %6124
        %6128 = vset.pattern.permute.xlu0 0
        %6129 = vperm.xlu0 %6128, %v5995
        %v6130 = vpop.permute.xlu0 %6129
        %6133 = vset.pattern.permute.xlu0 0
        %6134 = vperm.xlu0 %6133, %v5996
        %v6135 = vpop.permute.xlu0 %6134
        %6138 = vset.pattern.permute.xlu0 0
        %6139 = vperm.xlu0 %6138, %v5997
        %v6140 = vpop.permute.xlu0 %6139
        %6143 = vset.pattern.permute.xlu0 0
        %6144 = vperm.xlu0 %6143, %v5998
        %v6145 = vpop.permute.xlu0 %6144
        %6148 = vset.pattern.permute.xlu0 0
        %6149 = vperm.xlu0 %6148, %v5999
        %v6150 = vpop.permute.xlu0 %6149
        %6153 = vset.pattern.permute.xlu0 0
        %6154 = vperm.xlu0 %6153, %v6000
        %v6155 = vpop.permute.xlu0 %6154
        %6158 = vset.pattern.permute.xlu0 0
        %6159 = vperm.xlu0 %6158, %v6001
        %v6160 = vpop.permute.xlu0 %6159
        %v6162 = vmul.f32 %v5906, %v6005
        %v6163 = vmul.f32 %v5907, %v6005
        %v6164 = vmul.f32 %v5908, %v6010
        %v6165 = vmul.f32 %v5909, %v6010
        %v6166 = vmul.f32 %v5910, %v6015
        %v6167 = vmul.f32 %v5911, %v6015
        %v6168 = vmul.f32 %v5912, %v6020
        %v6169 = vmul.f32 %v5913, %v6020
        %v6170 = vmul.f32 %v5914, %v6025
        %v6171 = vmul.f32 %v5915, %v6025
        %v6172 = vmul.f32 %v5916, %v6030
        %v6173 = vmul.f32 %v5917, %v6030
        %v6174 = vmul.f32 %v5918, %v6035
        %v6175 = vmul.f32 %v5919, %v6035
        %v6176 = vmul.f32 %v5920, %v6040
        %v6177 = vmul.f32 %v5921, %v6040
        %v6178 = vmul.f32 %v5922, %v6045
        %v6179 = vmul.f32 %v5923, %v6045
        %v6180 = vmul.f32 %v5924, %v6050
        %v6181 = vmul.f32 %v5925, %v6050
        %v6182 = vmul.f32 %v5926, %v6055
        %v6183 = vmul.f32 %v5927, %v6055
        %v6184 = vmul.f32 %v5928, %v6060
        %v6185 = vmul.f32 %v5929, %v6060
        %v6186 = vmul.f32 %v5930, %v6065
        %v6187 = vmul.f32 %v5931, %v6065
        %v6188 = vmul.f32 %v5932, %v6070
        %v6189 = vmul.f32 %v5933, %v6070
        %v6190 = vmul.f32 %v5934, %v6075
        %v6191 = vmul.f32 %v5935, %v6075
        %v6192 = vmul.f32 %v5936, %v6080
        %v6193 = vmul.f32 %v5937, %v6080
        %v6194 = vmul.f32 %v5938, %v6085
        %v6195 = vmul.f32 %v5939, %v6085
        %v6196 = vmul.f32 %v5940, %v6090
        %v6197 = vmul.f32 %v5941, %v6090
        %v6198 = vmul.f32 %v5942, %v6095
        %v6199 = vmul.f32 %v5943, %v6095
        %v6200 = vmul.f32 %v5944, %v6100
        %v6201 = vmul.f32 %v5945, %v6100
        %v6202 = vmul.f32 %v5946, %v6105
        %v6203 = vmul.f32 %v5947, %v6105
        %v6204 = vmul.f32 %v5948, %v6110
        %v6205 = vmul.f32 %v5949, %v6110
        %v6206 = vmul.f32 %v5950, %v6115
        %v6207 = vmul.f32 %v5951, %v6115
        %v6208 = vmul.f32 %v5952, %v6120
        %v6209 = vmul.f32 %v5953, %v6120
        %v6210 = vmul.f32 %v5954, %v6125
        %v6211 = vmul.f32 %v5955, %v6125
        %v6212 = vmul.f32 %v5956, %v6130
        %v6213 = vmul.f32 %v5957, %v6130
        %v6214 = vmul.f32 %v5958, %v6135
        %v6215 = vmul.f32 %v5959, %v6135
        %v6216 = vmul.f32 %v5960, %v6140
        %v6217 = vmul.f32 %v5961, %v6140
        %v6218 = vmul.f32 %v5962, %v6145
        %v6219 = vmul.f32 %v5963, %v6145
        %v6220 = vmul.f32 %v5964, %v6150
        %v6221 = vmul.f32 %v5965, %v6150
        %v6222 = vmul.f32 %v5966, %v6155
        %v6223 = vmul.f32 %v5967, %v6155
        %v6224 = vmul.f32 %v5968, %v6160
        %v6225 = vmul.f32 %v5969, %v6160
        %v6226 = vadd.f32 %v6162, %v6164
        %v6227 = vadd.f32 %v6226, %v6166
        %v6228 = vadd.f32 %v6227, %v6168
        %v6229 = vadd.f32 %v6228, %v6170
        %v6230 = vadd.f32 %v6229, %v6172
        %v6231 = vadd.f32 %v6230, %v6174
        %v6232 = vadd.f32 %v6231, %v6176
        %v6233 = vadd.f32 %v6232, %v6178
        %v6234 = vadd.f32 %v6233, %v6180
        %v6235 = vadd.f32 %v6234, %v6182
        %v6236 = vadd.f32 %v6235, %v6184
        %v6237 = vadd.f32 %v6236, %v6186
        %v6238 = vadd.f32 %v6237, %v6188
        %v6239 = vadd.f32 %v6238, %v6190
        %v6240 = vadd.f32 %v6239, %v6192
        %v6241 = vadd.f32 %v6240, %v6194
        %v6242 = vadd.f32 %v6241, %v6196
        %v6243 = vadd.f32 %v6242, %v6198
        %v6244 = vadd.f32 %v6243, %v6200
        %v6245 = vadd.f32 %v6244, %v6202
        %v6246 = vadd.f32 %v6245, %v6204
        %v6247 = vadd.f32 %v6246, %v6206
        %v6248 = vadd.f32 %v6247, %v6208
        %v6249 = vadd.f32 %v6248, %v6210
        %v6250 = vadd.f32 %v6249, %v6212
        %v6251 = vadd.f32 %v6250, %v6214
        %v6252 = vadd.f32 %v6251, %v6216
        %v6253 = vadd.f32 %v6252, %v6218
        %v6254 = vadd.f32 %v6253, %v6220
        %v6255 = vadd.f32 %v6254, %v6222
        %v6256 = vadd.f32 %v6255, %v6224
        %v6257 = vrot.slane %v6256, 4
        %v6258 = vadd.f32 %v6256, %v6257
        %v6259 = vrot.slane %v6258, 2
        %v6260 = vadd.f32 %v6258, %v6259
        %v6261 = vrot.slane %v6260, 1
        %v6262 = vadd.f32 %v6260, %v6261
        %v6263 = vadd.f32 %v6163, %v6165
        %v6264 = vadd.f32 %v6263, %v6167
        %v6265 = vadd.f32 %v6264, %v6169
        %v6266 = vadd.f32 %v6265, %v6171
        %v6267 = vadd.f32 %v6266, %v6173
        %v6268 = vadd.f32 %v6267, %v6175
        %v6269 = vadd.f32 %v6268, %v6177
        %v6270 = vadd.f32 %v6269, %v6179
        %v6271 = vadd.f32 %v6270, %v6181
        %v6272 = vadd.f32 %v6271, %v6183
        %v6273 = vadd.f32 %v6272, %v6185
        %v6274 = vadd.f32 %v6273, %v6187
        %v6275 = vadd.f32 %v6274, %v6189
        %v6276 = vadd.f32 %v6275, %v6191
        %v6277 = vadd.f32 %v6276, %v6193
        %v6278 = vadd.f32 %v6277, %v6195
        %v6279 = vadd.f32 %v6278, %v6197
        %v6280 = vadd.f32 %v6279, %v6199
        %v6281 = vadd.f32 %v6280, %v6201
        %v6282 = vadd.f32 %v6281, %v6203
        %v6283 = vadd.f32 %v6282, %v6205
        %v6284 = vadd.f32 %v6283, %v6207
        %v6285 = vadd.f32 %v6284, %v6209
        %v6286 = vadd.f32 %v6285, %v6211
        %v6287 = vadd.f32 %v6286, %v6213
        %v6288 = vadd.f32 %v6287, %v6215
        %v6289 = vadd.f32 %v6288, %v6217
        %v6290 = vadd.f32 %v6289, %v6219
        %v6291 = vadd.f32 %v6290, %v6221
        %v6292 = vadd.f32 %v6291, %v6223
        %v6293 = vadd.f32 %v6292, %v6225
        %v6294 = vrot.slane %v6293, 4
        %v6295 = vadd.f32 %v6293, %v6294
        %v6296 = vrot.slane %v6295, 2
        %v6297 = vadd.f32 %v6295, %v6296
        %v6298 = vrot.slane %v6297, 1
        %v6299 = vadd.f32 %v6297, %v6298
        %s6300 = sld [smem:[#allocation2]]
        %v6301 = vstv %s6300
        %v6302 = vadd.f32 %v6262, %v6301
        %v6303 = vadd.f32 %v6299, %v6301
        %v6304 = vxor.u32 %v6302, 2147483648
        %v6305 = vxor.u32 %v6303, 2147483648
        %v6306 = vmul.f32 %v6304, 1.442695
        %v6307 = vpow.pop %v6306
        %v6308 = vmul.f32 %v6305, 1.442695
        %v6309 = vpow.pop %v6308
        %v6310 = vadd.f32 %v6307, 1.0
        %v6311 = vadd.f32 %v6309, 1.0
        %v6312 = vrcp.pop %v6310
        %v6313 = vmul.f32 1.0, %v6312
        %v6314 = vrcp.pop %v6311
        %v6315 = vmul.f32 1.0, %v6314
        %v6318 = vcombine.low %v6313, %v6315
        %v6320 = vunpack.c.l.s4 1966171168
        %v6321 = vunpack.c.0.s8 %v6320
        %v6322 = vlaneseq
        %v6323 = vshrl.u32 %v6322, 7
        %v6324 = vsub.s32 %v6321, %v6323
        %v6325 = vrot.slane %v6318, %v6324
        %v6327 = vunpack.c.l.s4 1966171168
        %v6328 = vunpack.c.0.s8 %v6327
        %v6329 = vlaneseq
        %v6330 = vshrl.u32 %v6329, 7
        %v6331 = vsub.s32 %v6328, %v6330
        %v6332 = vrot.slane %v6325, %v6331
        %v6334 = vlaneseq
        %vm6335 = vcmp.ge.s32.totalorder %v6334, 0
        %vm6336 = vcmp.lt.s32.totalorder %v6334, 256
        %vm6337 = vmand %vm6335, %vm6336
        %6338 = vst.msk [vmem:[%s700] sm:$0x3] %vm6337, %v6332
        %s6339 = sand.u32 %s182, 1
        %s6340 = scalar_lea.sflag [#allocation5], %s6339
        %s6341 = sand.u32 %s182, 1
        %s6342 = smul.addr %s6341, 2
        %s6343 = scalar_lea.vmem [#allocation4], %s6342
        // Predicated region
        $region87: #{discriminator_forward.1} parent=81 // pred_check
          %p6344 = pneg %p192
        $region88: #{discriminator_forward.1} parent=81 // pred_check_branch
          %6346 = sbr.rel (%p6344) target = $region90
        $region89: #{discriminator_forward.1} parent=81 // pred_region
          %s6348 = ssub.s32 32, 32
          %6349 = vsyncadd %s6340, %s6348
          %s6350 = smul.addr %s22, 2
          %s6351 = smul.addr %s6350, 16
          %s6352 = scalar_lea.hbm %s7, %s6351
          %s6354 = sshll.u32 %s6343, 4
          %s6355 = int_to_ptr.vmem [resolvable:$true] %s6354
          %6357 = dma.vmem_to_hbm [thread:$0]  %s6355, 32, %s6352, %s6340
        $region90: #{discriminator_forward.1} parent=81 // pred_fallthru
          _
      $region82: #{discriminator_forward.1} parent=5 // pred_fallthru
        _
      %p6358 = scmp.le.s32.totalorder 2, %s17
      // Predicated region
      $region91: #{discriminator_forward.1} parent=5 // pred_check
        %p6359 = pneg %p6358
      $region92: #{discriminator_forward.1} parent=5 // pred_check_branch
        %6361 = sbr.rel (%p6359) target = $region94
      $region93: #{discriminator_forward.1} parent=5 // pred_region
        %s6362 = ssub.s32 %s17, 2
        // Predicated region
        $region95: #{discriminator_forward.1} parent=93 // pred_check
          %p6363 = pneg %p198
        $region96: #{discriminator_forward.1} parent=93 // pred_check_branch
          %6365 = sbr.rel (%p6363) target = $region98
        $region97: #{discriminator_forward.1} parent=93 // pred_region
          %s6366 = sand.u32 %s183, 1
          %s6367 = scalar_lea.sflag [#allocation5], %s6366
          %s6368 = sand.u32 %s183, 1
          %s6369 = smul.addr %s6368, 2
          %s6370 = scalar_lea.vmem [#allocation4], %s6369
          %6371 = dma.done %s6367, 32
        $region98: #{discriminator_forward.1} parent=93 // pred_fallthru
          _
      $region94: #{discriminator_forward.1} parent=5 // pred_fallthru
        _
    $region6: #{discriminator_forward.1} parent=1 // loop_footer
      %s21 = sadd.s32 1, %s17
    $region7: #{discriminator_forward.1} parent=1 // loop_footer_branch
      %16 = sbr.rel target = $region3
    $region8: #{discriminator_forward.1} parent=1 // loop_exit
      _
    %6372 = vsyncpa [#allocation5], 1
    %s6373 = scalar_lea.sflag [#allocation5], 1
    %6374 = vsyncpa %s6373, 1

</llo_original>
